<compile_context>
chip_gen: v5e
topology: v5e:2x2
jax: 0.10.0
libtpu: 0.0.40
codegen_flags: <defaults>
</compile_context>

<pallas_src>
import functools

import jax
import jax.numpy as jnp
from jax.experimental import pallas as pl
from jax.experimental.pallas import tpu as pltpu


# ----------------------------------------------------------------------------
# Pallas kernel
# ----------------------------------------------------------------------------
def _lattention_kernel(x_ref, wq_ref, wk_ref, wv_ref, wr_ref,
                       alpha_ref, beta_ref, seg_ref, o_ref,
                       *, n, scale, inv_d):
    """One row block = g windows * n rows, channels packed head-major (dim)."""
    R, dim = x_ref.shape
    g = R // n

    # Projections: bf16 operands, f32 accumulate (MXU full rate, half the bytes).
    xb = x_ref[...].astype(jnp.bfloat16)
    q = jnp.dot(xb, wq_ref[...], preferred_element_type=jnp.float32)   # (R, dim)
    k = jnp.dot(xb, wk_ref[...], preferred_element_type=jnp.float32)
    v = jnp.dot(xb, wv_ref[...], preferred_element_type=jnp.float32)

    seg = seg_ref[...]        # (dim, dim) block-diagonal 0/1, f32
    alpha = alpha_ref[...]    # (1, dim)
    beta = beta_ref[...]      # (1, dim)

    def seg_softmax(logits):
        # Per-head (segment of width d along lanes) softmax.
        # Stabilize with the per-head mean: it is uniform within each head's
        # segment, so it cancels exactly in the softmax, and it is per-head so
        # one head's large logits cannot underflow another head's exponentials.
        shift = jnp.dot(logits, seg, preferred_element_type=jnp.float32) * inv_d
        e = jnp.exp(logits - shift)
        denom = jnp.dot(e, seg, preferred_element_type=jnp.float32)
        # denom >= exp(logit - shift) > 0 always; approx reciprocal -> EUP slot.
        return e * pl.reciprocal(denom, approx=True)

    # alpha_weight = softmax_d(q * alpha * scale); global_query = sum_n q*aw
    aw = seg_softmax(q * alpha * scale)
    gq = jnp.sum((q * aw).reshape(g, n, dim), axis=1, keepdims=True)   # (g,1,dim)

    # p = repeat_n(global_query) * k   (broadcast over the n rows of a window)
    p = (gq * k.reshape(g, n, dim)).reshape(R, dim)

    # beta_weight = softmax_d(p * beta * scale); global_key = sum_n p*bw
    bw = seg_softmax(p * beta * scale)
    gk = jnp.sum((p * bw).reshape(g, n, dim), axis=1, keepdims=True)   # (g,1,dim)

    # key_value_interaction = repeat_n(global_key) * v ; weight_r ; + q residual
    kvi = (gk * v.reshape(g, n, dim)).reshape(R, dim)
    out = jnp.dot(kvi.astype(jnp.bfloat16), wr_ref[...],
                  preferred_element_type=jnp.float32) + q
    o_ref[...] = out.astype(o_ref.dtype)


# ----------------------------------------------------------------------------
# Wrapper
# ----------------------------------------------------------------------------
def _pick_block_groups(groups, n, target_rows=512):
    """Largest divisor gb of `groups` with gb*n <= target_rows and 8 | gb*n."""
    upper = min(groups, max(1, target_rows // n))
    for gb in range(upper, 0, -1):
        if groups % gb == 0 and (gb * n) % 8 == 0:
            return gb
    return groups  # fall back to one full-extent block (always legal)


def lattention(x, params, *, heads, target_rows=512):
    """x: (b, s, n, dim) -> (b, s, n, dim).  Matches LAttention.forward."""
    b, s, n, dim = x.shape
    d = dim // heads
    groups = b * s
    M = groups * n
    scale = float(dim) ** (-0.5)

    # Kernel-layout parameters (tiny; constant-folded / negligible under jit).
    eye = jnp.eye(heads, dtype=jnp.float32)
    wq_t = params["wq"].T.astype(jnp.bfloat16)                    # x @ Wq^T
    wk_t = params["wk"].T.astype(jnp.bfloat16)
    wv_t = params["wv"].T.astype(jnp.bfloat16)
    wr_bd = jnp.kron(eye, params["wr"].T).astype(jnp.bfloat16)    # block-diag Wr^T
    seg = jnp.kron(eye, jnp.ones((d, d), jnp.float32))            # (dim, dim) 0/1
    alpha_row = jnp.tile(params["alpha"], heads).reshape(1, dim).astype(jnp.float32)
    beta_row = jnp.tile(params["beta"], heads).reshape(1, dim).astype(jnp.float32)

    gb = _pick_block_groups(groups, n, target_rows)
    block_rows = gb * n
    grid = (groups // gb,)

    kernel = functools.partial(_lattention_kernel, n=n, scale=scale,
                               inv_d=1.0 / float(d))

    xf = x.reshape(M, dim)
    out = pl.pallas_call(
        kernel,
        out_shape=jax.ShapeDtypeStruct((M, dim), jnp.float32),
        grid=grid,
        in_specs=[
            pl.BlockSpec((block_rows, dim), lambda i: (i, 0)),   # x rows
            pl.BlockSpec((dim, dim), lambda i: (0, 0)),          # Wq^T (bf16)
            pl.BlockSpec((dim, dim), lambda i: (0, 0)),          # Wk^T (bf16)
            pl.BlockSpec((dim, dim), lambda i: (0, 0)),          # Wv^T (bf16)
            pl.BlockSpec((dim, dim), lambda i: (0, 0)),          # Wr blockdiag (bf16)
            pl.BlockSpec((1, dim), lambda i: (0, 0)),            # alpha (tiled)
            pl.BlockSpec((1, dim), lambda i: (0, 0)),            # beta (tiled)
            pl.BlockSpec((dim, dim), lambda i: (0, 0)),          # head segment mask
        ],
        out_specs=pl.BlockSpec((block_rows, dim), lambda i: (i, 0)),
        compiler_params=pltpu.CompilerParams(
            dimension_semantics=("parallel",),          # blocks are independent
            vmem_limit_bytes=48 * 1024 * 1024,          # safe on v7x's 64 MiB
        ),
    )(xf, wq_t, wk_t, wv_t, wr_bd, alpha_row, beta_row, seg)
    return out.reshape(b, s, n, dim)


# ----------------------------------------------------------------------------
# Pure-JAX reference (mirrors the PyTorch forward exactly, f32)
# ----------------------------------------------------------------------------
def lattention_ref(x, params, heads):
    b, s, n, dim = x.shape
    d = dim // heads
    scale = float(dim) ** (-0.5)

    def proj(w):                     # torch Linear: y = x @ W^T
        return jnp.einsum("bsnc,oc->bsno", x, w)

    def split(t):                    # 'b s n (h d) -> b s h n d'
        return t.reshape(b, s, n, heads, d).transpose(0, 1, 3, 2, 4)

    q = split(proj(params["wq"]))
    k = split(proj(params["wk"]))
    v = split(proj(params["wv"]))

    aw = jax.nn.softmax(q * params["alpha"] * scale, axis=-1)
    gq = jnp.sum(q * aw, axis=3, keepdims=True)            # b s h 1 d
    p = gq * k
    bw = jax.nn.softmax(p * params["beta"] * scale, axis=-1)
    gk = jnp.sum(p * bw, axis=3, keepdims=True)            # b s h 1 d
    kvi = gk * v
    out = jnp.einsum("bshnd,ed->bshne", kvi, params["wr"]) + q
    return out.transpose(0, 1, 3, 2, 4).reshape(b, s, n, dim)


# ----------------------------------------------------------------------------
# Deterministic parameters (mirrors LAttention.__init__ / weights_init_classifier)
# ----------------------------------------------------------------------------
def make_params(key, dim, heads):
    d = dim // heads
    ks = jax.random.split(key, 6)
    lim = 1.0 / (d ** 0.5)
    return {
        # to_q / to_k / to_v: Linear(dim, dim, bias=False), std=0.001 init
        "wq": jax.random.normal(ks[0], (dim, dim), jnp.float32) * 0.001,
        "wk": jax.random.normal(ks[1], (dim, dim), jnp.float32) * 0.001,
        "wv": jax.random.normal(ks[2], (dim, dim), jnp.float32) * 0.001,
        # weight_r: Linear(d, d, bias=False), default uniform(+-1/sqrt(d)) init
        "wr": jax.random.uniform(ks[3], (d, d), jnp.float32, -lim, lim),
        # weight_alpha / weight_beta ~ randn(d)
        "alpha": jax.random.normal(ks[4], (d,), jnp.float32),
        "beta": jax.random.normal(ks[5], (d,), jnp.float32),
        # o_proj / g_proj: defined in __init__ but unused in forward -> omitted.
    }


if __name__ == "__main__":
    b, s, n, dim, heads = 2, 32, 16, 128, 8     # d = 16, rows = 1024, lane-dense
    key = jax.random.PRNGKey(0)
    kx, kp = jax.random.split(key)
    x = jax.random.normal(kx, (b, s, n, dim), dtype=jnp.float32)
    params = make_params(kp, dim, heads)

    fwd = jax.jit(functools.partial(lattention, heads=heads))
    out = jax.block_until_ready(fwd(x, params))
    assert out.shape == (b, s, n, dim), out.shape
    assert bool(jnp.isfinite(out).all())

    ref = lattention_ref(x, params, heads)
    max_err = float(jnp.max(jnp.abs(out - ref)))
    # bf16 matmul operands + approx reciprocal => modest tolerance vs f32 ref.
    assert bool(jnp.allclose(out, ref, atol=2e-3, rtol=2e-2)), max_err
    print("KERNEL_OK")
</pallas_src>

<mosaic_0001>
module attributes {stable_mosaic.version = 11 : i64} {
  func.func @_lattention_kernel(%arg0: i32, %arg1: memref<512x128xf32, #tpu.memory_space<vmem>>, %arg2: memref<128x128xbf16, #tpu.memory_space<vmem>>, %arg3: memref<128x128xbf16, #tpu.memory_space<vmem>>, %arg4: memref<128x128xbf16, #tpu.memory_space<vmem>>, %arg5: memref<128x128xbf16, #tpu.memory_space<vmem>>, %arg6: memref<1x128xf32, #tpu.memory_space<vmem>>, %arg7: memref<1x128xf32, #tpu.memory_space<vmem>>, %arg8: memref<128x128xf32, #tpu.memory_space<vmem>>, %arg9: memref<512x128xf32, #tpu.memory_space<vmem>>) attributes {dimension_semantics = [#tpu.dimension_semantics<parallel>], iteration_bounds = array<i64: 2>, scalar_prefetch = 0 : i64, scratch_operands = 0 : i64, tpu.core_type = #tpu.core_type<tc>, window_params = [{transform_indices = @transform_0, window_bounds = array<i64: 512, 128>}, {pipeline_mode = #tpu.pipeline_mode<synchronous>, transform_indices = @transform_1, window_bounds = array<i64: 128, 128>}, {pipeline_mode = #tpu.pipeline_mode<synchronous>, transform_indices = @transform_2, window_bounds = array<i64: 128, 128>}, {pipeline_mode = #tpu.pipeline_mode<synchronous>, transform_indices = @transform_3, window_bounds = array<i64: 128, 128>}, {pipeline_mode = #tpu.pipeline_mode<synchronous>, transform_indices = @transform_4, window_bounds = array<i64: 128, 128>}, {pipeline_mode = #tpu.pipeline_mode<synchronous>, transform_indices = @transform_5, window_bounds = array<i64: 1, 128>}, {pipeline_mode = #tpu.pipeline_mode<synchronous>, transform_indices = @transform_6, window_bounds = array<i64: 1, 128>}, {pipeline_mode = #tpu.pipeline_mode<synchronous>, transform_indices = @transform_7, window_bounds = array<i64: 128, 128>}, {transform_indices = @transform_8, window_bounds = array<i64: 512, 128>}]} {
    %c0 = arith.constant 0 : index
    %c0_0 = arith.constant 0 : index
    %0 = vector.load %arg1[%c0, %c0_0] : memref<512x128xf32, #tpu.memory_space<vmem>>, vector<512x128xf32>
    %1 = arith.truncf %0 : vector<512x128xf32> to vector<512x128xbf16>
    %c0_1 = arith.constant 0 : index
    %c0_2 = arith.constant 0 : index
    %2 = vector.load %arg2[%c0_1, %c0_2] : memref<128x128xbf16, #tpu.memory_space<vmem>>, vector<128x128xbf16>
    %cst = arith.constant dense<0.000000e+00> : vector<512x128xf32>
    %3 = tpu.matmul %1, %2, %cst {dimension_numbers = #tpu.dot_dimension_numbers<[1], [0], [0], [1], [0, 0, 1, 1], [], []>} : vector<512x128xbf16>, vector<128x128xbf16>, vector<512x128xf32> -> vector<512x128xf32>
    %c0_3 = arith.constant 0 : index
    %c0_4 = arith.constant 0 : index
    %4 = vector.load %arg3[%c0_3, %c0_4] : memref<128x128xbf16, #tpu.memory_space<vmem>>, vector<128x128xbf16>
    %cst_5 = arith.constant dense<0.000000e+00> : vector<512x128xf32>
    %5 = tpu.matmul %1, %4, %cst_5 {dimension_numbers = #tpu.dot_dimension_numbers<[1], [0], [0], [1], [0, 0, 1, 1], [], []>} : vector<512x128xbf16>, vector<128x128xbf16>, vector<512x128xf32> -> vector<512x128xf32>
    %c0_6 = arith.constant 0 : index
    %c0_7 = arith.constant 0 : index
    %6 = vector.load %arg4[%c0_6, %c0_7] : memref<128x128xbf16, #tpu.memory_space<vmem>>, vector<128x128xbf16>
    %cst_8 = arith.constant dense<0.000000e+00> : vector<512x128xf32>
    %7 = tpu.matmul %1, %6, %cst_8 {dimension_numbers = #tpu.dot_dimension_numbers<[1], [0], [0], [1], [0, 0, 1, 1], [], []>} : vector<512x128xbf16>, vector<128x128xbf16>, vector<512x128xf32> -> vector<512x128xf32>
    %c0_9 = arith.constant 0 : index
    %c0_10 = arith.constant 0 : index
    %8 = vector.load %arg8[%c0_9, %c0_10] : memref<128x128xf32, #tpu.memory_space<vmem>>, vector<128x128xf32>
    %c0_11 = arith.constant 0 : index
    %c0_12 = arith.constant 0 : index
    %9 = vector.load %arg6[%c0_11, %c0_12] : memref<1x128xf32, #tpu.memory_space<vmem>>, vector<1x128xf32>
    %c0_13 = arith.constant 0 : index
    %c0_14 = arith.constant 0 : index
    %10 = vector.load %arg7[%c0_13, %c0_14] : memref<1x128xf32, #tpu.memory_space<vmem>>, vector<1x128xf32>
    %11 = vector.broadcast %9 : vector<1x128xf32> to vector<512x128xf32>
    %12 = arith.mulf %3, %11 : vector<512x128xf32>
    %cst_15 = arith.constant 0.0883883461 : f32
    %13 = vector.broadcast %cst_15 : f32 to vector<512x128xf32>
    %14 = arith.mulf %12, %13 : vector<512x128xf32>
    %cst_16 = arith.constant dense<0.000000e+00> : vector<512x128xf32>
    %15 = tpu.matmul %14, %8, %cst_16 {dimension_numbers = #tpu.dot_dimension_numbers<[1], [0], [0], [1], [0, 0, 1, 1], [], []>} : vector<512x128xf32>, vector<128x128xf32>, vector<512x128xf32> -> vector<512x128xf32>
    %cst_17 = arith.constant 6.250000e-02 : f32
    %16 = vector.broadcast %cst_17 : f32 to vector<512x128xf32>
    %17 = arith.mulf %15, %16 : vector<512x128xf32>
    %18 = arith.subf %14, %17 : vector<512x128xf32>
    %19 = math.exp %18 : vector<512x128xf32>
    %cst_18 = arith.constant dense<0.000000e+00> : vector<512x128xf32>
    %20 = tpu.matmul %19, %8, %cst_18 {dimension_numbers = #tpu.dot_dimension_numbers<[1], [0], [0], [1], [0, 0, 1, 1], [], []>} : vector<512x128xf32>, vector<128x128xf32>, vector<512x128xf32> -> vector<512x128xf32>
    %21 = tpu.reciprocal %20 {approx = true} : vector<512x128xf32> -> vector<512x128xf32>
    %22 = arith.mulf %19, %21 : vector<512x128xf32>
    %23 = arith.mulf %3, %22 : vector<512x128xf32>
    %24 = vector.shape_cast %23 : vector<512x128xf32> to vector<32x16x128xf32>
    %cst_19 = arith.constant dense<0.000000e+00> : vector<32x128xf32>
    %25 = vector.multi_reduction <add>, %24, %cst_19 [1] : vector<32x16x128xf32> to vector<32x128xf32>
    %26 = vector.shape_cast %25 : vector<32x128xf32> to vector<32x1x128xf32>
    %27 = vector.shape_cast %5 : vector<512x128xf32> to vector<32x16x128xf32>
    %28 = vector.broadcast %26 : vector<32x1x128xf32> to vector<32x16x128xf32>
    %29 = arith.mulf %28, %27 : vector<32x16x128xf32>
    %30 = vector.shape_cast %29 : vector<32x16x128xf32> to vector<512x128xf32>
    %31 = vector.broadcast %10 : vector<1x128xf32> to vector<512x128xf32>
    %32 = arith.mulf %30, %31 : vector<512x128xf32>
    %cst_20 = arith.constant 0.0883883461 : f32
    %33 = vector.broadcast %cst_20 : f32 to vector<512x128xf32>
    %34 = arith.mulf %32, %33 : vector<512x128xf32>
    %cst_21 = arith.constant dense<0.000000e+00> : vector<512x128xf32>
    %35 = tpu.matmul %34, %8, %cst_21 {dimension_numbers = #tpu.dot_dimension_numbers<[1], [0], [0], [1], [0, 0, 1, 1], [], []>} : vector<512x128xf32>, vector<128x128xf32>, vector<512x128xf32> -> vector<512x128xf32>
    %cst_22 = arith.constant 6.250000e-02 : f32
    %36 = vector.broadcast %cst_22 : f32 to vector<512x128xf32>
    %37 = arith.mulf %35, %36 : vector<512x128xf32>
    %38 = arith.subf %34, %37 : vector<512x128xf32>
    %39 = math.exp %38 : vector<512x128xf32>
    %cst_23 = arith.constant dense<0.000000e+00> : vector<512x128xf32>
    %40 = tpu.matmul %39, %8, %cst_23 {dimension_numbers = #tpu.dot_dimension_numbers<[1], [0], [0], [1], [0, 0, 1, 1], [], []>} : vector<512x128xf32>, vector<128x128xf32>, vector<512x128xf32> -> vector<512x128xf32>
    %41 = tpu.reciprocal %40 {approx = true} : vector<512x128xf32> -> vector<512x128xf32>
    %42 = arith.mulf %39, %41 : vector<512x128xf32>
    %43 = arith.mulf %30, %42 : vector<512x128xf32>
    %44 = vector.shape_cast %43 : vector<512x128xf32> to vector<32x16x128xf32>
    %cst_24 = arith.constant dense<0.000000e+00> : vector<32x128xf32>
    %45 = vector.multi_reduction <add>, %44, %cst_24 [1] : vector<32x16x128xf32> to vector<32x128xf32>
    %46 = vector.shape_cast %45 : vector<32x128xf32> to vector<32x1x128xf32>
    %47 = vector.shape_cast %7 : vector<512x128xf32> to vector<32x16x128xf32>
    %48 = vector.broadcast %46 : vector<32x1x128xf32> to vector<32x16x128xf32>
    %49 = arith.mulf %48, %47 : vector<32x16x128xf32>
    %50 = vector.shape_cast %49 : vector<32x16x128xf32> to vector<512x128xf32>
    %51 = arith.truncf %50 : vector<512x128xf32> to vector<512x128xbf16>
    %c0_25 = arith.constant 0 : index
    %c0_26 = arith.constant 0 : index
    %52 = vector.load %arg5[%c0_25, %c0_26] : memref<128x128xbf16, #tpu.memory_space<vmem>>, vector<128x128xbf16>
    %cst_27 = arith.constant dense<0.000000e+00> : vector<512x128xf32>
    %53 = tpu.matmul %51, %52, %cst_27 {dimension_numbers = #tpu.dot_dimension_numbers<[1], [0], [0], [1], [0, 0, 1, 1], [], []>} : vector<512x128xbf16>, vector<128x128xbf16>, vector<512x128xf32> -> vector<512x128xf32>
    %54 = arith.addf %53, %3 : vector<512x128xf32>
    %c0_28 = arith.constant 0 : index
    %c0_29 = arith.constant 0 : index
    %55 = vector.load %arg9[%c0_28, %c0_29] : memref<512x128xf32, #tpu.memory_space<vmem>>, vector<512x128xf32>
    tpu.vector_store %arg9[%c0_28, %c0_29], %54 {strides = array<i32>} : memref<512x128xf32, #tpu.memory_space<vmem>>, vector<512x128xf32>,
    return
  }
  func.func @transform_0(%arg0: i32) -> (i32, i32) {
    %c0_i32 = arith.constant 0 : i32
    %c0_i32_0 = arith.constant 0 : i32
    return %arg0, %c0_i32 : i32, i32
  }
  func.func @transform_1(%arg0: i32) -> (i32, i32) {
    %c0_i32 = arith.constant 0 : i32
    %c0_i32_0 = arith.constant 0 : i32
    %c0_i32_1 = arith.constant 0 : i32
    return %c0_i32, %c0_i32_0 : i32, i32
  }
  func.func @transform_2(%arg0: i32) -> (i32, i32) {
    %c0_i32 = arith.constant 0 : i32
    %c0_i32_0 = arith.constant 0 : i32
    %c0_i32_1 = arith.constant 0 : i32
    return %c0_i32, %c0_i32_0 : i32, i32
  }
  func.func @transform_3(%arg0: i32) -> (i32, i32) {
    %c0_i32 = arith.constant 0 : i32
    %c0_i32_0 = arith.constant 0 : i32
    %c0_i32_1 = arith.constant 0 : i32
    return %c0_i32, %c0_i32_0 : i32, i32
  }
  func.func @transform_4(%arg0: i32) -> (i32, i32) {
    %c0_i32 = arith.constant 0 : i32
    %c0_i32_0 = arith.constant 0 : i32
    %c0_i32_1 = arith.constant 0 : i32
    return %c0_i32, %c0_i32_0 : i32, i32
  }
  func.func @transform_5(%arg0: i32) -> (i32, i32) {
    %c0_i32 = arith.constant 0 : i32
    %c0_i32_0 = arith.constant 0 : i32
    %c0_i32_1 = arith.constant 0 : i32
    return %c0_i32, %c0_i32_0 : i32, i32
  }
  func.func @transform_6(%arg0: i32) -> (i32, i32) {
    %c0_i32 = arith.constant 0 : i32
    %c0_i32_0 = arith.constant 0 : i32
    %c0_i32_1 = arith.constant 0 : i32
    return %c0_i32, %c0_i32_0 : i32, i32
  }
  func.func @transform_7(%arg0: i32) -> (i32, i32) {
    %c0_i32 = arith.constant 0 : i32
    %c0_i32_0 = arith.constant 0 : i32
    %c0_i32_1 = arith.constant 0 : i32
    return %c0_i32, %c0_i32_0 : i32, i32
  }
  func.func @transform_8(%arg0: i32) -> (i32, i32) {
    %c0_i32 = arith.constant 0 : i32
    %c0_i32_0 = arith.constant 0 : i32
    return %arg0, %c0_i32 : i32, i32
  }
}

</mosaic_0001>

<llo_original>
// kernel: tile.13
$region0: #{tile.13}
  #allocation0 [shape = 's32[1]{0}', space=sflag, size = 0x4, scoped, tag = 'scoped memory for tile.13']
  %s0 = inlined_call_operand.vmem [shape: f32[16], index: 0, kind: input, shape index: {}]
  %s1 = inlined_call_operand.vmem [shape: f32[8,16], index: 1, kind: output, shape index: {}]
  // Predicated region
  $region2: #{tile.13} parent=0 // pred_check
    _
  $region3: #{tile.13} parent=0 // pred_check_branch
    %3 = sbr.rel (0) target = $region5
  $region4: #{tile.13} parent=0 // pred_region
    _
  $region5: #{tile.13} parent=0 // pred_fallthru
    _
  %v4 = vld [vmem:[%s0] ss:$0 sm:$0xff]
  %5 = vst [vmem:[%s1] sm:$0xff] %v4

// kernel: tile.14
$region0: #{tile.14}
  %s0 = inlined_call_operand.vmem [shape: f32[8,16], index: 0, kind: input, shape index: {}]
  %s1 = inlined_call_operand.vmem [shape: f32[1,128], index: 1, kind: output, shape index: {}]
  $region1: #{tile.14} parent=0
    #allocation0 [shape = 'u8[4096]{0}', space=vmem, size = 0x1000, scoped, tag = 'scoped mem for output reshape']
    %v2 = vld [vmem:[%s0] sm:$0x1]
    %vm3 = vcmask 130048
    %4 = vst.msk [vmem:[#allocation0] sm:$0x1] %vm3, %v2
    %s5 = scalar_lea.vmem %s0, 7
    %v6 = vld [vmem:[%s5] sm:$0x1]
    %7 = vrot.lane.b32.xlu0 %v6, 112
    %v8 = vpop.permute.xlu0 %7
    %vm9 = vcmask 1048448
    %10 = vst.msk [vmem:[#allocation0] sm:$0x1] %vm9, %v8
    %s11 = scalar_lea.vmem %s0, 6
    %v12 = vld [vmem:[%s11] sm:$0x1]
    %13 = vrot.lane.b32.xlu0 %v12, 96
    %v14 = vpop.permute.xlu0 %13
    %vm15 = vcmask 917248
    %16 = vst.msk [vmem:[#allocation0] sm:$0x1] %vm15, %v14
    %s17 = scalar_lea.vmem %s0, 5
    %v18 = vld [vmem:[%s17] sm:$0x1]
    %19 = vrot.lane.b32.xlu0 %v18, 80
    %v20 = vpop.permute.xlu0 %19
    %vm21 = vcmask 786048
    %22 = vst.msk [vmem:[#allocation0] sm:$0x1] %vm21, %v20
    %s23 = scalar_lea.vmem %s0, 4
    %v24 = vld [vmem:[%s23] sm:$0x1]
    %25 = vrot.lane.b32.xlu0 %v24, 64
    %v26 = vpop.permute.xlu0 %25
    %vm27 = vcmask 654848
    %28 = vst.msk [vmem:[#allocation0] sm:$0x1] %vm27, %v26
    %s29 = scalar_lea.vmem %s0, 3
    %v30 = vld [vmem:[%s29] sm:$0x1]
    %31 = vrot.lane.b32.xlu0 %v30, 48
    %v32 = vpop.permute.xlu0 %31
    %vm33 = vcmask 523648
    %34 = vst.msk [vmem:[#allocation0] sm:$0x1] %vm33, %v32
    %s35 = scalar_lea.vmem %s0, 2
    %v36 = vld [vmem:[%s35] sm:$0x1]
    %37 = vrot.lane.b32.xlu0 %v36, 32
    %v38 = vpop.permute.xlu0 %37
    %vm39 = vcmask 392448
    %40 = vst.msk [vmem:[#allocation0] sm:$0x1] %vm39, %v38
    %s41 = scalar_lea.vmem %s0, 1
    %v42 = vld [vmem:[%s41] sm:$0x1]
    %43 = vrot.lane.b32.xlu0 %v42, 16
    %v44 = vpop.permute.xlu0 %43
    %vm45 = vcmask 261248
    %46 = vst.msk [vmem:[#allocation0] sm:$0x1] %vm45, %v44
    %s48 = ssub.s32 2, 1
    %v49 = vld [vmem:[#allocation0] sm:%s48]
    %s51 = ssub.s32 2, 1
    %52 = vst [vmem:[%s1] sm:%s51] %v49

// kernel: lattention.1
$region0: #{lattention.1}
  #allocation0 [shape = 'u32[]', space=smem, size = 0x4, offset = 0x4, fixed_abs, tag = 'smem constant byte address 0x4 - core index']
  #allocation1 [shape = 'u32[72,128]{1,0:T(1,128)}', space=vmem, size = 0x9000, scoped, tag = 'internal scratch']
  %s0 = inlined_call_operand.vmem [shape: f32[1024,128], index: 0, kind: input, shape index: {}]
  %s1 = inlined_call_operand.vmem [shape: bf16[128,128], index: 1, kind: input, shape index: {}]
  %s2 = inlined_call_operand.vmem [shape: bf16[128,128], index: 2, kind: input, shape index: {}]
  %s3 = inlined_call_operand.vmem [shape: bf16[128,128], index: 3, kind: input, shape index: {}]
  %s4 = inlined_call_operand.vmem [shape: bf16[128,128], index: 4, kind: input, shape index: {}]
  %s5 = inlined_call_operand.vmem [shape: f32[1,128], index: 5, kind: input, shape index: {}]
  %s6 = inlined_call_operand.vmem [shape: f32[1,128], index: 6, kind: input, shape index: {}]
  %s7 = inlined_call_operand.vmem [shape: f32[128,128], index: 7, kind: input, shape index: {}]
  %s8 = inlined_call_operand.hbm [shape: f32[1024,128], index: 8, kind: output, shape index: {}]
  %s9 = sld [smem:[#allocation0]]
  $region65: #{lattention.1} parent=0
    _
  %s11 = ssub.s32 1, %s9
  %s12 = scalar_select 0, %s11, %s9
  $region1: #{lattention.1} parent=0
    #allocation2 [shape = 'u8[524288]{0}', space=vmem, size = 0x80000, scoped, tag = 'output window, operand 0']
    #allocation3 [shape = 's32[2]{0}', space=sflag, size = 0x8, scoped, tag = 'scoped memory for lattention.1']
    %13 = vsyncpa [#allocation3], 0
    %s14 = scalar_lea.sflag [#allocation3], 1
    %15 = vsyncpa %s14, 0
    loop: start=0, step=1, limit=4
    $region2: #{lattention.1} parent=1 // loop_pre_header
      _
    $region3: #{lattention.1} parent=1 // loop_header
      %s17 = sphi 0, %s21
      %p18 = scmp.ge.s32.totalorder %s17, 4
      %s27 = sphi 0, %s29
      %s30 = sphi 0, %s27
      %s31 = sphi 0, %s30
      %s47 = sphi 0, %s31
      %s51 = sphi 0, %s51
      %s53 = sphi 0, %s51
      %s54 = sphi 0, %s53
      %s68 = sphi 0, %s54
      %s72 = sphi 0, %s72
      %s74 = sphi 0, %s72
      %s75 = sphi 0, %s74
      %s89 = sphi 0, %s75
      %s93 = sphi 0, %s93
      %s95 = sphi 0, %s93
      %s96 = sphi 0, %s95
      %s110 = sphi 0, %s96
      %s114 = sphi 0, %s114
      %s116 = sphi 0, %s114
      %s117 = sphi 0, %s116
      %s131 = sphi 0, %s117
      %s135 = sphi 0, %s135
      %s137 = sphi 0, %s135
      %s138 = sphi 0, %s137
      %s152 = sphi 0, %s138
      %s156 = sphi 0, %s156
      %s158 = sphi 0, %s156
      %s159 = sphi 0, %s158
      %s173 = sphi 0, %s159
      %s177 = sphi 0, %s177
      %s179 = sphi 0, %s177
      %s180 = sphi 0, %s179
      %s194 = sphi 0, %s180
      %s200 = sphi 0, %s202
      %s203 = sphi 0, %s200
      %s204 = sphi 0, %s203
      %s220 = sphi 0, %s204
    $region4: #{lattention.1} parent=1 // loop_header_branch
      %20 = sbr.rel (%p18) target = $region8
    $region5: #{lattention.1} parent=1 // loop_body
      %s22 = ssub.s32 %s17, 1
      %s23 = ssub.s32 %s17, 2
      %s24 = sadd.s32 %s17, 1
      %s25 = ssub.s32 %s17, %s24
      %p26 = scmp.eq.s32.totalorder %s25, 0
      %s28 = sadd.s32 %s27, 1
      %s29 = scalar_select %p26, %s27, %s28
      %p32 = pneg %p26
      %p33 = scmp.eq.s32.totalorder %s17, 1
      %p34 = por %p32, %p33
      %p35 = scmp.ne.s32.totalorder %s27, %s30
      %p36 = scmp.eq.s32.totalorder %s17, 0
      %p37 = por %p35, %p36
      %p38 = scmp.ne.s32.totalorder %s27, %s30
      %p39 = scmp.eq.s32.totalorder %s22, 1
      %p40 = por %p38, %p39
      %p41 = scmp.ne.s32.totalorder %s30, %s31
      %p42 = scmp.eq.s32.totalorder %s22, 0
      %p43 = por %p41, %p42
      %p44 = scmp.ne.s32.totalorder %s30, %s31
      %p45 = scmp.eq.s32.totalorder %s23, 1
      %p46 = por %p44, %p45
      %p48 = scmp.ne.s32.totalorder %s31, %s47
      %p49 = scmp.eq.s32.totalorder %s23, 0
      %p50 = por %p48, %p49
      %s52 = sadd.s32 %s51, 1
      %p55 = scmp.eq.s32.totalorder %s17, 1
      %p56 = scmp.ne.s32.totalorder %s51, %s53
      %p57 = scmp.eq.s32.totalorder %s17, 0
      %p58 = por %p56, %p57
      %p59 = scmp.ne.s32.totalorder %s51, %s53
      %p60 = scmp.eq.s32.totalorder %s22, 1
      %p61 = por %p59, %p60
      %p62 = scmp.ne.s32.totalorder %s53, %s54
      %p63 = scmp.eq.s32.totalorder %s22, 0
      %p64 = por %p62, %p63
      %p65 = scmp.ne.s32.totalorder %s53, %s54
      %p66 = scmp.eq.s32.totalorder %s23, 1
      %p67 = por %p65, %p66
      %p69 = scmp.ne.s32.totalorder %s54, %s68
      %p70 = scmp.eq.s32.totalorder %s23, 0
      %p71 = por %p69, %p70
      %s73 = sadd.s32 %s72, 1
      %p76 = scmp.eq.s32.totalorder %s17, 1
      %p77 = scmp.ne.s32.totalorder %s72, %s74
      %p78 = scmp.eq.s32.totalorder %s17, 0
      %p79 = por %p77, %p78
      %p80 = scmp.ne.s32.totalorder %s72, %s74
      %p81 = scmp.eq.s32.totalorder %s22, 1
      %p82 = por %p80, %p81
      %p83 = scmp.ne.s32.totalorder %s74, %s75
      %p84 = scmp.eq.s32.totalorder %s22, 0
      %p85 = por %p83, %p84
      %p86 = scmp.ne.s32.totalorder %s74, %s75
      %p87 = scmp.eq.s32.totalorder %s23, 1
      %p88 = por %p86, %p87
      %p90 = scmp.ne.s32.totalorder %s75, %s89
      %p91 = scmp.eq.s32.totalorder %s23, 0
      %p92 = por %p90, %p91
      %s94 = sadd.s32 %s93, 1
      %p97 = scmp.eq.s32.totalorder %s17, 1
      %p98 = scmp.ne.s32.totalorder %s93, %s95
      %p99 = scmp.eq.s32.totalorder %s17, 0
      %p100 = por %p98, %p99
      %p101 = scmp.ne.s32.totalorder %s93, %s95
      %p102 = scmp.eq.s32.totalorder %s22, 1
      %p103 = por %p101, %p102
      %p104 = scmp.ne.s32.totalorder %s95, %s96
      %p105 = scmp.eq.s32.totalorder %s22, 0
      %p106 = por %p104, %p105
      %p107 = scmp.ne.s32.totalorder %s95, %s96
      %p108 = scmp.eq.s32.totalorder %s23, 1
      %p109 = por %p107, %p108
      %p111 = scmp.ne.s32.totalorder %s96, %s110
      %p112 = scmp.eq.s32.totalorder %s23, 0
      %p113 = por %p111, %p112
      %s115 = sadd.s32 %s114, 1
      %p118 = scmp.eq.s32.totalorder %s17, 1
      %p119 = scmp.ne.s32.totalorder %s114, %s116
      %p120 = scmp.eq.s32.totalorder %s17, 0
      %p121 = por %p119, %p120
      %p122 = scmp.ne.s32.totalorder %s114, %s116
      %p123 = scmp.eq.s32.totalorder %s22, 1
      %p124 = por %p122, %p123
      %p125 = scmp.ne.s32.totalorder %s116, %s117
      %p126 = scmp.eq.s32.totalorder %s22, 0
      %p127 = por %p125, %p126
      %p128 = scmp.ne.s32.totalorder %s116, %s117
      %p129 = scmp.eq.s32.totalorder %s23, 1
      %p130 = por %p128, %p129
      %p132 = scmp.ne.s32.totalorder %s117, %s131
      %p133 = scmp.eq.s32.totalorder %s23, 0
      %p134 = por %p132, %p133
      %s136 = sadd.s32 %s135, 1
      %p139 = scmp.eq.s32.totalorder %s17, 1
      %p140 = scmp.ne.s32.totalorder %s135, %s137
      %p141 = scmp.eq.s32.totalorder %s17, 0
      %p142 = por %p140, %p141
      %p143 = scmp.ne.s32.totalorder %s135, %s137
      %p144 = scmp.eq.s32.totalorder %s22, 1
      %p145 = por %p143, %p144
      %p146 = scmp.ne.s32.totalorder %s137, %s138
      %p147 = scmp.eq.s32.totalorder %s22, 0
      %p148 = por %p146, %p147
      %p149 = scmp.ne.s32.totalorder %s137, %s138
      %p150 = scmp.eq.s32.totalorder %s23, 1
      %p151 = por %p149, %p150
      %p153 = scmp.ne.s32.totalorder %s138, %s152
      %p154 = scmp.eq.s32.totalorder %s23, 0
      %p155 = por %p153, %p154
      %s157 = sadd.s32 %s156, 1
      %p160 = scmp.eq.s32.totalorder %s17, 1
      %p161 = scmp.ne.s32.totalorder %s156, %s158
      %p162 = scmp.eq.s32.totalorder %s17, 0
      %p163 = por %p161, %p162
      %p164 = scmp.ne.s32.totalorder %s156, %s158
      %p165 = scmp.eq.s32.totalorder %s22, 1
      %p166 = por %p164, %p165
      %p167 = scmp.ne.s32.totalorder %s158, %s159
      %p168 = scmp.eq.s32.totalorder %s22, 0
      %p169 = por %p167, %p168
      %p170 = scmp.ne.s32.totalorder %s158, %s159
      %p171 = scmp.eq.s32.totalorder %s23, 1
      %p172 = por %p170, %p171
      %p174 = scmp.ne.s32.totalorder %s159, %s173
      %p175 = scmp.eq.s32.totalorder %s23, 0
      %p176 = por %p174, %p175
      %s178 = sadd.s32 %s177, 1
      %p181 = scmp.eq.s32.totalorder %s17, 1
      %p182 = scmp.ne.s32.totalorder %s177, %s179
      %p183 = scmp.eq.s32.totalorder %s17, 0
      %p184 = por %p182, %p183
      %p185 = scmp.ne.s32.totalorder %s177, %s179
      %p186 = scmp.eq.s32.totalorder %s22, 1
      %p187 = por %p185, %p186
      %p188 = scmp.ne.s32.totalorder %s179, %s180
      %p189 = scmp.eq.s32.totalorder %s22, 0
      %p190 = por %p188, %p189
      %p191 = scmp.ne.s32.totalorder %s179, %s180
      %p192 = scmp.eq.s32.totalorder %s23, 1
      %p193 = por %p191, %p192
      %p195 = scmp.ne.s32.totalorder %s180, %s194
      %p196 = scmp.eq.s32.totalorder %s23, 0
      %p197 = por %p195, %p196
      %s198 = ssub.s32 %s17, %s24
      %p199 = scmp.eq.s32.totalorder %s198, 0
      %s201 = sadd.s32 %s200, 1
      %s202 = scalar_select %p199, %s200, %s201
      %p205 = pneg %p199
      %p206 = scmp.eq.s32.totalorder %s17, 1
      %p207 = por %p205, %p206
      %p208 = scmp.ne.s32.totalorder %s200, %s203
      %p209 = scmp.eq.s32.totalorder %s17, 0
      %p210 = por %p208, %p209
      %p211 = scmp.ne.s32.totalorder %s200, %s203
      %p212 = scmp.eq.s32.totalorder %s22, 1
      %p213 = por %p211, %p212
      %p214 = scmp.ne.s32.totalorder %s203, %s204
      %p215 = scmp.eq.s32.totalorder %s22, 0
      %p216 = por %p214, %p215
      %p217 = scmp.ne.s32.totalorder %s203, %s204
      %p218 = scmp.eq.s32.totalorder %s23, 1
      %p219 = por %p217, %p218
      %p221 = scmp.ne.s32.totalorder %s204, %s220
      %p222 = scmp.eq.s32.totalorder %s23, 0
      %p223 = por %p221, %p222
      %p224 = scmp.le.s32.totalorder 1, %s17
      %p225 = scmp.lt.s32.totalorder %s17, 3
      %p226 = pnand %p224, %p225
      %p227 = pneg %p226
      // Predicated region
      $region9: #{lattention.1} parent=5 // pred_check
        _
      $region10: #{lattention.1} parent=5 // pred_check_branch
        %229 = sbr.rel (%p226) target = $region12
      $region11: #{lattention.1} parent=5 // pred_region
        %s230 = ssub.s32 %s17, 1
        // Predicated region
        $region13: #{lattention.1} parent=11 // pred_check
          %p231 = pneg %p64
        $region14: #{lattention.1} parent=11 // pred_check_branch
          %233 = sbr.rel (%p231) target = $region16
        $region15: #{lattention.1} parent=11 // pred_region
          _
        $region16: #{lattention.1} parent=11 // pred_fallthru
          _
        // Predicated region
        $region17: #{lattention.1} parent=11 // pred_check
          %p234 = pneg %p85
        $region18: #{lattention.1} parent=11 // pred_check_branch
          %236 = sbr.rel (%p234) target = $region20
        $region19: #{lattention.1} parent=11 // pred_region
          _
        $region20: #{lattention.1} parent=11 // pred_fallthru
          _
        // Predicated region
        $region21: #{lattention.1} parent=11 // pred_check
          %p237 = pneg %p106
        $region22: #{lattention.1} parent=11 // pred_check_branch
          %239 = sbr.rel (%p237) target = $region24
        $region23: #{lattention.1} parent=11 // pred_region
          _
        $region24: #{lattention.1} parent=11 // pred_fallthru
          _
        // Predicated region
        $region25: #{lattention.1} parent=11 // pred_check
          %p240 = pneg %p127
        $region26: #{lattention.1} parent=11 // pred_check_branch
          %242 = sbr.rel (%p240) target = $region28
        $region27: #{lattention.1} parent=11 // pred_region
          _
        $region28: #{lattention.1} parent=11 // pred_fallthru
          _
        // Predicated region
        $region29: #{lattention.1} parent=11 // pred_check
          %p243 = pneg %p148
        $region30: #{lattention.1} parent=11 // pred_check_branch
          %245 = sbr.rel (%p243) target = $region32
        $region31: #{lattention.1} parent=11 // pred_region
          _
        $region32: #{lattention.1} parent=11 // pred_fallthru
          _
        // Predicated region
        $region33: #{lattention.1} parent=11 // pred_check
          %p246 = pneg %p169
        $region34: #{lattention.1} parent=11 // pred_check_branch
          %248 = sbr.rel (%p246) target = $region36
        $region35: #{lattention.1} parent=11 // pred_region
          _
        $region36: #{lattention.1} parent=11 // pred_fallthru
          _
        // Predicated region
        $region37: #{lattention.1} parent=11 // pred_check
          %p249 = pneg %p190
        $region38: #{lattention.1} parent=11 // pred_check_branch
          %251 = sbr.rel (%p249) target = $region40
        $region39: #{lattention.1} parent=11 // pred_region
          _
        $region40: #{lattention.1} parent=11 // pred_fallthru
          _
      $region12: #{lattention.1} parent=5 // pred_fallthru
        _
      %p252 = scmp.lt.s32.totalorder %s17, 2
      // Predicated region
      $region41: #{lattention.1} parent=5 // pred_check
        %p253 = pneg %p252
      $region42: #{lattention.1} parent=5 // pred_check_branch
        %255 = sbr.rel (%p253) target = $region44
      $region43: #{lattention.1} parent=5 // pred_region
        // Predicated region
        $region45: #{lattention.1} parent=43 // pred_check
          %p256 = pneg %p37
        $region46: #{lattention.1} parent=43 // pred_check_branch
          %258 = sbr.rel (%p256) target = $region48
        $region47: #{lattention.1} parent=43 // pred_region
          %s259 = smul.u32 64, %s17
          %p260 = scmp.lt.s32.totalorder %s259, 127
          %s261 = scalar_select %p260, %s259, 127
          %s262 = smul.addr %s261, 8
          %s263 = scalar_lea.vmem %s0, %s262
          %s264 = smul.u32 64, %s17
        $region48: #{lattention.1} parent=43 // pred_fallthru
          _
      $region44: #{lattention.1} parent=5 // pred_fallthru
        _
      %p265 = scmp.le.s32.totalorder 1, %s17
      %p266 = scmp.lt.s32.totalorder %s17, 3
      %p267 = pnand %p265, %p266
      %p268 = pneg %p267
      // Predicated region
      $region49: #{lattention.1} parent=5 // pred_check
        _
      $region50: #{lattention.1} parent=5 // pred_check_branch
        %270 = sbr.rel (%p267) target = $region52
      $region51: #{lattention.1} parent=5 // pred_region
        %s271 = ssub.s32 %s17, 1
        %s272 = smul.u32 64, %s22
        %p273 = scmp.lt.s32.totalorder %s272, 127
        %s274 = scalar_select %p273, %s272, 127
        %s275 = smul.addr %s274, 8
        %s276 = scalar_lea.vmem %s0, %s275
        %p277 = pneg %p43
        %p278 = pneg %p40
        %p279 = pneg %p64
        %p280 = pneg %p61
        %p281 = pneg %p85
        %p282 = pneg %p82
        %p283 = pneg %p106
        %p284 = pneg %p103
        %p285 = pneg %p127
        %p286 = pneg %p124
        %p287 = pneg %p148
        %p288 = pneg %p145
        %p289 = pneg %p169
        %p290 = pneg %p166
        %p291 = pneg %p190
        %p292 = pneg %p187
        %p293 = pneg %p216
        %p294 = pneg %p213
        %s295 = sand.u32 %s203, 1
        %s296 = scalar_lea.sflag [#allocation3], %s295
        %s297 = sand.u32 %s203, 1
        %s298 = smul.addr %s297, 512
        %s299 = scalar_lea.vmem [#allocation2], %s298
        %s300 = smul.u32 64, %s22
        %p301 = scmp.lt.s32.totalorder %s300, 127
        %s302 = scalar_select %p301, %s300, 127
        %s303 = smul.addr %s302, 8
        %s304 = scalar_lea.vmem %s0, %s303
        %s305 = smul.u32 64, %s22
        %s306 = smul.u32 64, %s22
        %v307 = vld [vmem:[%s304] sm:$0xff]
        %v308 = vld [vmem:[%s304 + $0x8] sm:$0xff]
        %v309 = vld [vmem:[%s304 + $0x10] sm:$0xff]
        %v310 = vld [vmem:[%s304 + $0x18] sm:$0xff]
        %v311 = vld [vmem:[%s304 + $0x20] sm:$0xff]
        %v312 = vld [vmem:[%s304 + $0x28] sm:$0xff]
        %v313 = vld [vmem:[%s304 + $0x30] sm:$0xff]
        %v314 = vld [vmem:[%s304 + $0x38] sm:$0xff]
        %v315 = vld [vmem:[%s304 + $0x40] sm:$0xff]
        %v316 = vld [vmem:[%s304 + $0x48] sm:$0xff]
        %v317 = vld [vmem:[%s304 + $0x50] sm:$0xff]
        %v318 = vld [vmem:[%s304 + $0x58] sm:$0xff]
        %v319 = vld [vmem:[%s304 + $0x60] sm:$0xff]
        %v320 = vld [vmem:[%s304 + $0x68] sm:$0xff]
        %v321 = vld [vmem:[%s304 + $0x70] sm:$0xff]
        %v322 = vld [vmem:[%s304 + $0x78] sm:$0xff]
        %v323 = vld [vmem:[%s304 + $0x80] sm:$0xff]
        %v324 = vld [vmem:[%s304 + $0x88] sm:$0xff]
        %v325 = vld [vmem:[%s304 + $0x90] sm:$0xff]
        %v326 = vld [vmem:[%s304 + $0x98] sm:$0xff]
        %v327 = vld [vmem:[%s304 + $0xa0] sm:$0xff]
        %v328 = vld [vmem:[%s304 + $0xa8] sm:$0xff]
        %v329 = vld [vmem:[%s304 + $0xb0] sm:$0xff]
        %v330 = vld [vmem:[%s304 + $0xb8] sm:$0xff]
        %v331 = vld [vmem:[%s304 + $0xc0] sm:$0xff]
        %v332 = vld [vmem:[%s304 + $0xc8] sm:$0xff]
        %v333 = vld [vmem:[%s304 + $0xd0] sm:$0xff]
        %v334 = vld [vmem:[%s304 + $0xd8] sm:$0xff]
        %v335 = vld [vmem:[%s304 + $0xe0] sm:$0xff]
        %v336 = vld [vmem:[%s304 + $0xe8] sm:$0xff]
        %v337 = vld [vmem:[%s304 + $0xf0] sm:$0xff]
        %v338 = vld [vmem:[%s304 + $0xf8] sm:$0xff]
        %v339 = vld [vmem:[%s304 + $0x100] sm:$0xff]
        %v340 = vld [vmem:[%s304 + $0x108] sm:$0xff]
        %v341 = vld [vmem:[%s304 + $0x110] sm:$0xff]
        %v342 = vld [vmem:[%s304 + $0x118] sm:$0xff]
        %v343 = vld [vmem:[%s304 + $0x120] sm:$0xff]
        %v344 = vld [vmem:[%s304 + $0x128] sm:$0xff]
        %v345 = vld [vmem:[%s304 + $0x130] sm:$0xff]
        %v346 = vld [vmem:[%s304 + $0x138] sm:$0xff]
        %v347 = vld [vmem:[%s304 + $0x140] sm:$0xff]
        %v348 = vld [vmem:[%s304 + $0x148] sm:$0xff]
        %v349 = vld [vmem:[%s304 + $0x150] sm:$0xff]
        %v350 = vld [vmem:[%s304 + $0x158] sm:$0xff]
        %v351 = vld [vmem:[%s304 + $0x160] sm:$0xff]
        %v352 = vld [vmem:[%s304 + $0x168] sm:$0xff]
        %v353 = vld [vmem:[%s304 + $0x170] sm:$0xff]
        %v354 = vld [vmem:[%s304 + $0x178] sm:$0xff]
        %v355 = vld [vmem:[%s304 + $0x180] sm:$0xff]
        %v356 = vld [vmem:[%s304 + $0x188] sm:$0xff]
        %v357 = vld [vmem:[%s304 + $0x190] sm:$0xff]
        %v358 = vld [vmem:[%s304 + $0x198] sm:$0xff]
        %v359 = vld [vmem:[%s304 + $0x1a0] sm:$0xff]
        %v360 = vld [vmem:[%s304 + $0x1a8] sm:$0xff]
        %v361 = vld [vmem:[%s304 + $0x1b0] sm:$0xff]
        %v362 = vld [vmem:[%s304 + $0x1b8] sm:$0xff]
        %v363 = vld [vmem:[%s304 + $0x1c0] sm:$0xff]
        %v364 = vld [vmem:[%s304 + $0x1c8] sm:$0xff]
        %v365 = vld [vmem:[%s304 + $0x1d0] sm:$0xff]
        %v366 = vld [vmem:[%s304 + $0x1d8] sm:$0xff]
        %v367 = vld [vmem:[%s304 + $0x1e0] sm:$0xff]
        %v368 = vld [vmem:[%s304 + $0x1e8] sm:$0xff]
        %v369 = vld [vmem:[%s304 + $0x1f0] sm:$0xff]
        %v370 = vld [vmem:[%s304 + $0x1f8] sm:$0xff]
        %v371 = vpack.c.bf16 %v308, %v307
        %v372 = vpack.c.bf16 %v310, %v309
        %v373 = vpack.c.bf16 %v312, %v311
        %v374 = vpack.c.bf16 %v314, %v313
        %v375 = vpack.c.bf16 %v316, %v315
        %v376 = vpack.c.bf16 %v318, %v317
        %v377 = vpack.c.bf16 %v320, %v319
        %v378 = vpack.c.bf16 %v322, %v321
        %v379 = vpack.c.bf16 %v324, %v323
        %v380 = vpack.c.bf16 %v326, %v325
        %v381 = vpack.c.bf16 %v328, %v327
        %v382 = vpack.c.bf16 %v330, %v329
        %v383 = vpack.c.bf16 %v332, %v331
        %v384 = vpack.c.bf16 %v334, %v333
        %v385 = vpack.c.bf16 %v336, %v335
        %v386 = vpack.c.bf16 %v338, %v337
        %v387 = vpack.c.bf16 %v340, %v339
        %v388 = vpack.c.bf16 %v342, %v341
        %v389 = vpack.c.bf16 %v344, %v343
        %v390 = vpack.c.bf16 %v346, %v345
        %v391 = vpack.c.bf16 %v348, %v347
        %v392 = vpack.c.bf16 %v350, %v349
        %v393 = vpack.c.bf16 %v352, %v351
        %v394 = vpack.c.bf16 %v354, %v353
        %v395 = vpack.c.bf16 %v356, %v355
        %v396 = vpack.c.bf16 %v358, %v357
        %v397 = vpack.c.bf16 %v360, %v359
        %v398 = vpack.c.bf16 %v362, %v361
        %v399 = vpack.c.bf16 %v364, %v363
        %v400 = vpack.c.bf16 %v366, %v365
        %v401 = vpack.c.bf16 %v368, %v367
        %v402 = vpack.c.bf16 %v370, %v369
        %v403 = vld [vmem:[%s1] sm:$0xf]
        %v404 = vld [vmem:[%s1 + $0x4] sm:$0xf]
        %v405 = vld [vmem:[%s1 + $0x8] sm:$0xf]
        %v406 = vld [vmem:[%s1 + $0xc] sm:$0xf]
        %v407 = vld [vmem:[%s1 + $0x10] sm:$0xf]
        %v408 = vld [vmem:[%s1 + $0x14] sm:$0xf]
        %v409 = vld [vmem:[%s1 + $0x18] sm:$0xf]
        %v410 = vld [vmem:[%s1 + $0x1c] sm:$0xf]
        %v411 = vld [vmem:[%s1 + $0x20] sm:$0xf]
        %v412 = vld [vmem:[%s1 + $0x24] sm:$0xf]
        %v413 = vld [vmem:[%s1 + $0x28] sm:$0xf]
        %v414 = vld [vmem:[%s1 + $0x2c] sm:$0xf]
        %v415 = vld [vmem:[%s1 + $0x30] sm:$0xf]
        %v416 = vld [vmem:[%s1 + $0x34] sm:$0xf]
        %v417 = vld [vmem:[%s1 + $0x38] sm:$0xf]
        %v418 = vld [vmem:[%s1 + $0x3c] sm:$0xf]
        %v435 = vunpack.c.l.b16 %v403
        %v436 = vunpack.c.l.b16 %v404
        %v437 = vunpack.c.l.b16 %v405
        %v438 = vunpack.c.l.b16 %v406
        %v439 = vunpack.c.l.b16 %v407
        %v440 = vunpack.c.l.b16 %v408
        %v441 = vunpack.c.l.b16 %v409
        %v442 = vunpack.c.l.b16 %v410
        %v443 = vunpack.c.l.b16 %v411
        %v444 = vunpack.c.l.b16 %v412
        %v445 = vunpack.c.l.b16 %v413
        %v446 = vunpack.c.l.b16 %v414
        %v447 = vunpack.c.l.b16 %v415
        %v448 = vunpack.c.l.b16 %v416
        %v449 = vunpack.c.l.b16 %v417
        %v450 = vunpack.c.l.b16 %v418
        %v451 = vpack.c.b16 %v436, %v435
        %v452 = vpack.c.b16 %v438, %v437
        %v453 = vpack.c.b16 %v440, %v439
        %v454 = vpack.c.b16 %v442, %v441
        %v455 = vpack.c.b16 %v444, %v443
        %v456 = vpack.c.b16 %v446, %v445
        %v457 = vpack.c.b16 %v448, %v447
        %v458 = vpack.c.b16 %v450, %v449
        %467 = vmatpush.bf16.msra.mxu0 %v458
        %468 = vmatpush.bf16.msra.mxu0 %v457
        %469 = vmatpush.bf16.msra.mxu0 %v456
        %470 = vmatpush.bf16.msra.mxu0 %v455
        %471 = vmatpush.bf16.msra.mxu0 %v454
        %472 = vmatpush.bf16.msra.mxu0 %v453
        %473 = vmatpush.bf16.msra.mxu0 %v452
        %474 = vmatpush.bf16.msra.mxu0 %v451
        %475 = vmatmul.bf16.gmra.mxu0 %v371
        %v476 = vpop.f32.mrf.mxu0
        %v477 = vadd.f32 0.0, %v476
        %v478 = vpop.f32.mrf.mxu0
        %v479 = vadd.f32 0.0, %v478
        %480 = vmatmul.bf16.gmra.mxu0 %v372
        %v481 = vpop.f32.mrf.mxu0
        %v482 = vadd.f32 0.0, %v481
        %v483 = vpop.f32.mrf.mxu0
        %v484 = vadd.f32 0.0, %v483
        %485 = vmatmul.bf16.gmra.mxu0 %v373
        %v486 = vpop.f32.mrf.mxu0
        %v487 = vadd.f32 0.0, %v486
        %v488 = vpop.f32.mrf.mxu0
        %v489 = vadd.f32 0.0, %v488
        %490 = vmatmul.bf16.gmra.mxu0 %v374
        %v491 = vpop.f32.mrf.mxu0
        %v492 = vadd.f32 0.0, %v491
        %v493 = vpop.f32.mrf.mxu0
        %v494 = vadd.f32 0.0, %v493
        %495 = vmatmul.bf16.gmra.mxu0 %v375
        %v496 = vpop.f32.mrf.mxu0
        %v497 = vadd.f32 0.0, %v496
        %v498 = vpop.f32.mrf.mxu0
        %v499 = vadd.f32 0.0, %v498
        %500 = vmatmul.bf16.gmra.mxu0 %v376
        %v501 = vpop.f32.mrf.mxu0
        %v502 = vadd.f32 0.0, %v501
        %v503 = vpop.f32.mrf.mxu0
        %v504 = vadd.f32 0.0, %v503
        %505 = vmatmul.bf16.gmra.mxu0 %v377
        %v506 = vpop.f32.mrf.mxu0
        %v507 = vadd.f32 0.0, %v506
        %v508 = vpop.f32.mrf.mxu0
        %v509 = vadd.f32 0.0, %v508
        %510 = vmatmul.bf16.gmra.mxu0 %v378
        %v511 = vpop.f32.mrf.mxu0
        %v512 = vadd.f32 0.0, %v511
        %v513 = vpop.f32.mrf.mxu0
        %v514 = vadd.f32 0.0, %v513
        %515 = vmatmul.bf16.gmra.mxu0 %v379
        %v516 = vpop.f32.mrf.mxu0
        %v517 = vadd.f32 0.0, %v516
        %v518 = vpop.f32.mrf.mxu0
        %v519 = vadd.f32 0.0, %v518
        %520 = vmatmul.bf16.gmra.mxu0 %v380
        %v521 = vpop.f32.mrf.mxu0
        %v522 = vadd.f32 0.0, %v521
        %v523 = vpop.f32.mrf.mxu0
        %v524 = vadd.f32 0.0, %v523
        %525 = vmatmul.bf16.gmra.mxu0 %v381
        %v526 = vpop.f32.mrf.mxu0
        %v527 = vadd.f32 0.0, %v526
        %v528 = vpop.f32.mrf.mxu0
        %v529 = vadd.f32 0.0, %v528
        %530 = vmatmul.bf16.gmra.mxu0 %v382
        %v531 = vpop.f32.mrf.mxu0
        %v532 = vadd.f32 0.0, %v531
        %v533 = vpop.f32.mrf.mxu0
        %v534 = vadd.f32 0.0, %v533
        %535 = vmatmul.bf16.gmra.mxu0 %v383
        %v536 = vpop.f32.mrf.mxu0
        %v537 = vadd.f32 0.0, %v536
        %v538 = vpop.f32.mrf.mxu0
        %v539 = vadd.f32 0.0, %v538
        %540 = vmatmul.bf16.gmra.mxu0 %v384
        %v541 = vpop.f32.mrf.mxu0
        %v542 = vadd.f32 0.0, %v541
        %v543 = vpop.f32.mrf.mxu0
        %v544 = vadd.f32 0.0, %v543
        %545 = vmatmul.bf16.gmra.mxu0 %v385
        %v546 = vpop.f32.mrf.mxu0
        %v547 = vadd.f32 0.0, %v546
        %v548 = vpop.f32.mrf.mxu0
        %v549 = vadd.f32 0.0, %v548
        %550 = vmatmul.bf16.gmra.mxu0 %v386
        %v551 = vpop.f32.mrf.mxu0
        %v552 = vadd.f32 0.0, %v551
        %v553 = vpop.f32.mrf.mxu0
        %v554 = vadd.f32 0.0, %v553
        %555 = vmatmul.bf16.gmra.mxu0 %v387
        %v556 = vpop.f32.mrf.mxu0
        %v557 = vadd.f32 0.0, %v556
        %v558 = vpop.f32.mrf.mxu0
        %v559 = vadd.f32 0.0, %v558
        %560 = vmatmul.bf16.gmra.mxu0 %v388
        %v561 = vpop.f32.mrf.mxu0
        %v562 = vadd.f32 0.0, %v561
        %v563 = vpop.f32.mrf.mxu0
        %v564 = vadd.f32 0.0, %v563
        %565 = vmatmul.bf16.gmra.mxu0 %v389
        %v566 = vpop.f32.mrf.mxu0
        %v567 = vadd.f32 0.0, %v566
        %v568 = vpop.f32.mrf.mxu0
        %v569 = vadd.f32 0.0, %v568
        %570 = vmatmul.bf16.gmra.mxu0 %v390
        %v571 = vpop.f32.mrf.mxu0
        %v572 = vadd.f32 0.0, %v571
        %v573 = vpop.f32.mrf.mxu0
        %v574 = vadd.f32 0.0, %v573
        %575 = vmatmul.bf16.gmra.mxu0 %v391
        %v576 = vpop.f32.mrf.mxu0
        %v577 = vadd.f32 0.0, %v576
        %v578 = vpop.f32.mrf.mxu0
        %v579 = vadd.f32 0.0, %v578
        %580 = vmatmul.bf16.gmra.mxu0 %v392
        %v581 = vpop.f32.mrf.mxu0
        %v582 = vadd.f32 0.0, %v581
        %v583 = vpop.f32.mrf.mxu0
        %v584 = vadd.f32 0.0, %v583
        %585 = vmatmul.bf16.gmra.mxu0 %v393
        %v586 = vpop.f32.mrf.mxu0
        %v587 = vadd.f32 0.0, %v586
        %v588 = vpop.f32.mrf.mxu0
        %v589 = vadd.f32 0.0, %v588
        %590 = vmatmul.bf16.gmra.mxu0 %v394
        %v591 = vpop.f32.mrf.mxu0
        %v592 = vadd.f32 0.0, %v591
        %v593 = vpop.f32.mrf.mxu0
        %v594 = vadd.f32 0.0, %v593
        %595 = vmatmul.bf16.gmra.mxu0 %v395
        %v596 = vpop.f32.mrf.mxu0
        %v597 = vadd.f32 0.0, %v596
        %v598 = vpop.f32.mrf.mxu0
        %v599 = vadd.f32 0.0, %v598
        %600 = vmatmul.bf16.gmra.mxu0 %v396
        %v601 = vpop.f32.mrf.mxu0
        %v602 = vadd.f32 0.0, %v601
        %v603 = vpop.f32.mrf.mxu0
        %v604 = vadd.f32 0.0, %v603
        %605 = vmatmul.bf16.gmra.mxu0 %v397
        %v606 = vpop.f32.mrf.mxu0
        %v607 = vadd.f32 0.0, %v606
        %v608 = vpop.f32.mrf.mxu0
        %v609 = vadd.f32 0.0, %v608
        %610 = vmatmul.bf16.gmra.mxu0 %v398
        %v611 = vpop.f32.mrf.mxu0
        %v612 = vadd.f32 0.0, %v611
        %v613 = vpop.f32.mrf.mxu0
        %v614 = vadd.f32 0.0, %v613
        %615 = vmatmul.bf16.gmra.mxu0 %v399
        %v616 = vpop.f32.mrf.mxu0
        %v617 = vadd.f32 0.0, %v616
        %v618 = vpop.f32.mrf.mxu0
        %v619 = vadd.f32 0.0, %v618
        %620 = vmatmul.bf16.gmra.mxu0 %v400
        %v621 = vpop.f32.mrf.mxu0
        %v622 = vadd.f32 0.0, %v621
        %v623 = vpop.f32.mrf.mxu0
        %v624 = vadd.f32 0.0, %v623
        %625 = vmatmul.bf16.gmra.mxu0 %v401
        %v626 = vpop.f32.mrf.mxu0
        %v627 = vadd.f32 0.0, %v626
        %v628 = vpop.f32.mrf.mxu0
        %v629 = vadd.f32 0.0, %v628
        %630 = vmatmul.bf16.gmra.mxu0 %v402
        %v631 = vpop.f32.mrf.mxu0
        %v632 = vadd.f32 0.0, %v631
        %v633 = vpop.f32.mrf.mxu0
        %v634 = vadd.f32 0.0, %v633
        %635 = vdwg.mxu0
        %v636 = vld [vmem:[%s2] sm:$0xf]
        %v637 = vld [vmem:[%s2 + $0x4] sm:$0xf]
        %v638 = vld [vmem:[%s2 + $0x8] sm:$0xf]
        %v639 = vld [vmem:[%s2 + $0xc] sm:$0xf]
        %v640 = vld [vmem:[%s2 + $0x10] sm:$0xf]
        %v641 = vld [vmem:[%s2 + $0x14] sm:$0xf]
        %v642 = vld [vmem:[%s2 + $0x18] sm:$0xf]
        %v643 = vld [vmem:[%s2 + $0x1c] sm:$0xf]
        %v644 = vld [vmem:[%s2 + $0x20] sm:$0xf]
        %v645 = vld [vmem:[%s2 + $0x24] sm:$0xf]
        %v646 = vld [vmem:[%s2 + $0x28] sm:$0xf]
        %v647 = vld [vmem:[%s2 + $0x2c] sm:$0xf]
        %v648 = vld [vmem:[%s2 + $0x30] sm:$0xf]
        %v649 = vld [vmem:[%s2 + $0x34] sm:$0xf]
        %v650 = vld [vmem:[%s2 + $0x38] sm:$0xf]
        %v651 = vld [vmem:[%s2 + $0x3c] sm:$0xf]
        %v668 = vunpack.c.l.b16 %v636
        %v669 = vunpack.c.l.b16 %v637
        %v670 = vunpack.c.l.b16 %v638
        %v671 = vunpack.c.l.b16 %v639
        %v672 = vunpack.c.l.b16 %v640
        %v673 = vunpack.c.l.b16 %v641
        %v674 = vunpack.c.l.b16 %v642
        %v675 = vunpack.c.l.b16 %v643
        %v676 = vunpack.c.l.b16 %v644
        %v677 = vunpack.c.l.b16 %v645
        %v678 = vunpack.c.l.b16 %v646
        %v679 = vunpack.c.l.b16 %v647
        %v680 = vunpack.c.l.b16 %v648
        %v681 = vunpack.c.l.b16 %v649
        %v682 = vunpack.c.l.b16 %v650
        %v683 = vunpack.c.l.b16 %v651
        %v684 = vpack.c.b16 %v669, %v668
        %v685 = vpack.c.b16 %v671, %v670
        %v686 = vpack.c.b16 %v673, %v672
        %v687 = vpack.c.b16 %v675, %v674
        %v688 = vpack.c.b16 %v677, %v676
        %v689 = vpack.c.b16 %v679, %v678
        %v690 = vpack.c.b16 %v681, %v680
        %v691 = vpack.c.b16 %v683, %v682
        %700 = vmatpush.bf16.msra.mxu0 %v691
        %701 = vmatpush.bf16.msra.mxu0 %v690
        %702 = vmatpush.bf16.msra.mxu0 %v689
        %703 = vmatpush.bf16.msra.mxu0 %v688
        %704 = vmatpush.bf16.msra.mxu0 %v687
        %705 = vmatpush.bf16.msra.mxu0 %v686
        %706 = vmatpush.bf16.msra.mxu0 %v685
        %707 = vmatpush.bf16.msra.mxu0 %v684
        %708 = vmatmul.bf16.gmra.mxu0 %v371
        %v709 = vpop.f32.mrf.mxu0
        %v710 = vadd.f32 0.0, %v709
        %v711 = vpop.f32.mrf.mxu0
        %v712 = vadd.f32 0.0, %v711
        %713 = vmatmul.bf16.gmra.mxu0 %v372
        %v714 = vpop.f32.mrf.mxu0
        %v715 = vadd.f32 0.0, %v714
        %v716 = vpop.f32.mrf.mxu0
        %v717 = vadd.f32 0.0, %v716
        %718 = vmatmul.bf16.gmra.mxu0 %v373
        %v719 = vpop.f32.mrf.mxu0
        %v720 = vadd.f32 0.0, %v719
        %v721 = vpop.f32.mrf.mxu0
        %v722 = vadd.f32 0.0, %v721
        %723 = vmatmul.bf16.gmra.mxu0 %v374
        %v724 = vpop.f32.mrf.mxu0
        %v725 = vadd.f32 0.0, %v724
        %v726 = vpop.f32.mrf.mxu0
        %v727 = vadd.f32 0.0, %v726
        %728 = vmatmul.bf16.gmra.mxu0 %v375
        %v729 = vpop.f32.mrf.mxu0
        %v730 = vadd.f32 0.0, %v729
        %v731 = vpop.f32.mrf.mxu0
        %v732 = vadd.f32 0.0, %v731
        %733 = vmatmul.bf16.gmra.mxu0 %v376
        %v734 = vpop.f32.mrf.mxu0
        %v735 = vadd.f32 0.0, %v734
        %v736 = vpop.f32.mrf.mxu0
        %v737 = vadd.f32 0.0, %v736
        %738 = vmatmul.bf16.gmra.mxu0 %v377
        %v739 = vpop.f32.mrf.mxu0
        %v740 = vadd.f32 0.0, %v739
        %v741 = vpop.f32.mrf.mxu0
        %v742 = vadd.f32 0.0, %v741
        %743 = vmatmul.bf16.gmra.mxu0 %v378
        %v744 = vpop.f32.mrf.mxu0
        %v745 = vadd.f32 0.0, %v744
        %v746 = vpop.f32.mrf.mxu0
        %v747 = vadd.f32 0.0, %v746
        %748 = vmatmul.bf16.gmra.mxu0 %v379
        %v749 = vpop.f32.mrf.mxu0
        %v750 = vadd.f32 0.0, %v749
        %v751 = vpop.f32.mrf.mxu0
        %v752 = vadd.f32 0.0, %v751
        %753 = vmatmul.bf16.gmra.mxu0 %v380
        %v754 = vpop.f32.mrf.mxu0
        %v755 = vadd.f32 0.0, %v754
        %v756 = vpop.f32.mrf.mxu0
        %v757 = vadd.f32 0.0, %v756
        %758 = vmatmul.bf16.gmra.mxu0 %v381
        %v759 = vpop.f32.mrf.mxu0
        %v760 = vadd.f32 0.0, %v759
        %v761 = vpop.f32.mrf.mxu0
        %v762 = vadd.f32 0.0, %v761
        %763 = vmatmul.bf16.gmra.mxu0 %v382
        %v764 = vpop.f32.mrf.mxu0
        %v765 = vadd.f32 0.0, %v764
        %v766 = vpop.f32.mrf.mxu0
        %v767 = vadd.f32 0.0, %v766
        %768 = vmatmul.bf16.gmra.mxu0 %v383
        %v769 = vpop.f32.mrf.mxu0
        %v770 = vadd.f32 0.0, %v769
        %v771 = vpop.f32.mrf.mxu0
        %v772 = vadd.f32 0.0, %v771
        %773 = vmatmul.bf16.gmra.mxu0 %v384
        %v774 = vpop.f32.mrf.mxu0
        %v775 = vadd.f32 0.0, %v774
        %v776 = vpop.f32.mrf.mxu0
        %v777 = vadd.f32 0.0, %v776
        %778 = vmatmul.bf16.gmra.mxu0 %v385
        %v779 = vpop.f32.mrf.mxu0
        %v780 = vadd.f32 0.0, %v779
        %v781 = vpop.f32.mrf.mxu0
        %v782 = vadd.f32 0.0, %v781
        %783 = vmatmul.bf16.gmra.mxu0 %v386
        %v784 = vpop.f32.mrf.mxu0
        %v785 = vadd.f32 0.0, %v784
        %v786 = vpop.f32.mrf.mxu0
        %v787 = vadd.f32 0.0, %v786
        %788 = vmatmul.bf16.gmra.mxu0 %v387
        %v789 = vpop.f32.mrf.mxu0
        %v790 = vadd.f32 0.0, %v789
        %v791 = vpop.f32.mrf.mxu0
        %v792 = vadd.f32 0.0, %v791
        %793 = vmatmul.bf16.gmra.mxu0 %v388
        %v794 = vpop.f32.mrf.mxu0
        %v795 = vadd.f32 0.0, %v794
        %v796 = vpop.f32.mrf.mxu0
        %v797 = vadd.f32 0.0, %v796
        %798 = vmatmul.bf16.gmra.mxu0 %v389
        %v799 = vpop.f32.mrf.mxu0
        %v800 = vadd.f32 0.0, %v799
        %v801 = vpop.f32.mrf.mxu0
        %v802 = vadd.f32 0.0, %v801
        %803 = vmatmul.bf16.gmra.mxu0 %v390
        %v804 = vpop.f32.mrf.mxu0
        %v805 = vadd.f32 0.0, %v804
        %v806 = vpop.f32.mrf.mxu0
        %v807 = vadd.f32 0.0, %v806
        %808 = vmatmul.bf16.gmra.mxu0 %v391
        %v809 = vpop.f32.mrf.mxu0
        %v810 = vadd.f32 0.0, %v809
        %v811 = vpop.f32.mrf.mxu0
        %v812 = vadd.f32 0.0, %v811
        %813 = vmatmul.bf16.gmra.mxu0 %v392
        %v814 = vpop.f32.mrf.mxu0
        %v815 = vadd.f32 0.0, %v814
        %v816 = vpop.f32.mrf.mxu0
        %v817 = vadd.f32 0.0, %v816
        %818 = vmatmul.bf16.gmra.mxu0 %v393
        %v819 = vpop.f32.mrf.mxu0
        %v820 = vadd.f32 0.0, %v819
        %v821 = vpop.f32.mrf.mxu0
        %v822 = vadd.f32 0.0, %v821
        %823 = vmatmul.bf16.gmra.mxu0 %v394
        %v824 = vpop.f32.mrf.mxu0
        %v825 = vadd.f32 0.0, %v824
        %v826 = vpop.f32.mrf.mxu0
        %v827 = vadd.f32 0.0, %v826
        %828 = vmatmul.bf16.gmra.mxu0 %v395
        %v829 = vpop.f32.mrf.mxu0
        %v830 = vadd.f32 0.0, %v829
        %v831 = vpop.f32.mrf.mxu0
        %v832 = vadd.f32 0.0, %v831
        %833 = vmatmul.bf16.gmra.mxu0 %v396
        %v834 = vpop.f32.mrf.mxu0
        %v835 = vadd.f32 0.0, %v834
        %v836 = vpop.f32.mrf.mxu0
        %v837 = vadd.f32 0.0, %v836
        %838 = vmatmul.bf16.gmra.mxu0 %v397
        %v839 = vpop.f32.mrf.mxu0
        %v840 = vadd.f32 0.0, %v839
        %v841 = vpop.f32.mrf.mxu0
        %v842 = vadd.f32 0.0, %v841
        %843 = vmatmul.bf16.gmra.mxu0 %v398
        %v844 = vpop.f32.mrf.mxu0
        %v845 = vadd.f32 0.0, %v844
        %v846 = vpop.f32.mrf.mxu0
        %v847 = vadd.f32 0.0, %v846
        %848 = vmatmul.bf16.gmra.mxu0 %v399
        %v849 = vpop.f32.mrf.mxu0
        %v850 = vadd.f32 0.0, %v849
        %v851 = vpop.f32.mrf.mxu0
        %v852 = vadd.f32 0.0, %v851
        %853 = vmatmul.bf16.gmra.mxu0 %v400
        %v854 = vpop.f32.mrf.mxu0
        %v855 = vadd.f32 0.0, %v854
        %v856 = vpop.f32.mrf.mxu0
        %v857 = vadd.f32 0.0, %v856
        %858 = vmatmul.bf16.gmra.mxu0 %v401
        %v859 = vpop.f32.mrf.mxu0
        %v860 = vadd.f32 0.0, %v859
        %v861 = vpop.f32.mrf.mxu0
        %v862 = vadd.f32 0.0, %v861
        %863 = vmatmul.bf16.gmra.mxu0 %v402
        %v864 = vpop.f32.mrf.mxu0
        %v865 = vadd.f32 0.0, %v864
        %v866 = vpop.f32.mrf.mxu0
        %v867 = vadd.f32 0.0, %v866
        %868 = vdwg.mxu0
        %v869 = vld [vmem:[%s3] sm:$0xf]
        %v870 = vld [vmem:[%s3 + $0x4] sm:$0xf]
        %v871 = vld [vmem:[%s3 + $0x8] sm:$0xf]
        %v872 = vld [vmem:[%s3 + $0xc] sm:$0xf]
        %v873 = vld [vmem:[%s3 + $0x10] sm:$0xf]
        %v874 = vld [vmem:[%s3 + $0x14] sm:$0xf]
        %v875 = vld [vmem:[%s3 + $0x18] sm:$0xf]
        %v876 = vld [vmem:[%s3 + $0x1c] sm:$0xf]
        %v877 = vld [vmem:[%s3 + $0x20] sm:$0xf]
        %v878 = vld [vmem:[%s3 + $0x24] sm:$0xf]
        %v879 = vld [vmem:[%s3 + $0x28] sm:$0xf]
        %v880 = vld [vmem:[%s3 + $0x2c] sm:$0xf]
        %v881 = vld [vmem:[%s3 + $0x30] sm:$0xf]
        %v882 = vld [vmem:[%s3 + $0x34] sm:$0xf]
        %v883 = vld [vmem:[%s3 + $0x38] sm:$0xf]
        %v884 = vld [vmem:[%s3 + $0x3c] sm:$0xf]
        %v901 = vunpack.c.l.b16 %v869
        %v902 = vunpack.c.l.b16 %v870
        %v903 = vunpack.c.l.b16 %v871
        %v904 = vunpack.c.l.b16 %v872
        %v905 = vunpack.c.l.b16 %v873
        %v906 = vunpack.c.l.b16 %v874
        %v907 = vunpack.c.l.b16 %v875
        %v908 = vunpack.c.l.b16 %v876
        %v909 = vunpack.c.l.b16 %v877
        %v910 = vunpack.c.l.b16 %v878
        %v911 = vunpack.c.l.b16 %v879
        %v912 = vunpack.c.l.b16 %v880
        %v913 = vunpack.c.l.b16 %v881
        %v914 = vunpack.c.l.b16 %v882
        %v915 = vunpack.c.l.b16 %v883
        %v916 = vunpack.c.l.b16 %v884
        %v917 = vpack.c.b16 %v902, %v901
        %v918 = vpack.c.b16 %v904, %v903
        %v919 = vpack.c.b16 %v906, %v905
        %v920 = vpack.c.b16 %v908, %v907
        %v921 = vpack.c.b16 %v910, %v909
        %v922 = vpack.c.b16 %v912, %v911
        %v923 = vpack.c.b16 %v914, %v913
        %v924 = vpack.c.b16 %v916, %v915
        %933 = vmatpush.bf16.msra.mxu0 %v924
        %934 = vmatpush.bf16.msra.mxu0 %v923
        %935 = vmatpush.bf16.msra.mxu0 %v922
        %936 = vmatpush.bf16.msra.mxu0 %v921
        %937 = vmatpush.bf16.msra.mxu0 %v920
        %938 = vmatpush.bf16.msra.mxu0 %v919
        %939 = vmatpush.bf16.msra.mxu0 %v918
        %940 = vmatpush.bf16.msra.mxu0 %v917
        %941 = vmatmul.bf16.gmra.mxu0 %v371
        %v942 = vpop.f32.mrf.mxu0
        %v943 = vadd.f32 0.0, %v942
        %v944 = vpop.f32.mrf.mxu0
        %v945 = vadd.f32 0.0, %v944
        %946 = vmatmul.bf16.gmra.mxu0 %v372
        %v947 = vpop.f32.mrf.mxu0
        %v948 = vadd.f32 0.0, %v947
        %v949 = vpop.f32.mrf.mxu0
        %v950 = vadd.f32 0.0, %v949
        %951 = vmatmul.bf16.gmra.mxu0 %v373
        %v952 = vpop.f32.mrf.mxu0
        %v953 = vadd.f32 0.0, %v952
        %v954 = vpop.f32.mrf.mxu0
        %v955 = vadd.f32 0.0, %v954
        %956 = vmatmul.bf16.gmra.mxu0 %v374
        %v957 = vpop.f32.mrf.mxu0
        %v958 = vadd.f32 0.0, %v957
        %v959 = vpop.f32.mrf.mxu0
        %v960 = vadd.f32 0.0, %v959
        %961 = vmatmul.bf16.gmra.mxu0 %v375
        %v962 = vpop.f32.mrf.mxu0
        %v963 = vadd.f32 0.0, %v962
        %v964 = vpop.f32.mrf.mxu0
        %v965 = vadd.f32 0.0, %v964
        %966 = vmatmul.bf16.gmra.mxu0 %v376
        %v967 = vpop.f32.mrf.mxu0
        %v968 = vadd.f32 0.0, %v967
        %v969 = vpop.f32.mrf.mxu0
        %v970 = vadd.f32 0.0, %v969
        %971 = vmatmul.bf16.gmra.mxu0 %v377
        %v972 = vpop.f32.mrf.mxu0
        %v973 = vadd.f32 0.0, %v972
        %v974 = vpop.f32.mrf.mxu0
        %v975 = vadd.f32 0.0, %v974
        %976 = vmatmul.bf16.gmra.mxu0 %v378
        %v977 = vpop.f32.mrf.mxu0
        %v978 = vadd.f32 0.0, %v977
        %v979 = vpop.f32.mrf.mxu0
        %v980 = vadd.f32 0.0, %v979
        %981 = vmatmul.bf16.gmra.mxu0 %v379
        %v982 = vpop.f32.mrf.mxu0
        %v983 = vadd.f32 0.0, %v982
        %v984 = vpop.f32.mrf.mxu0
        %v985 = vadd.f32 0.0, %v984
        %986 = vmatmul.bf16.gmra.mxu0 %v380
        %v987 = vpop.f32.mrf.mxu0
        %v988 = vadd.f32 0.0, %v987
        %v989 = vpop.f32.mrf.mxu0
        %v990 = vadd.f32 0.0, %v989
        %991 = vmatmul.bf16.gmra.mxu0 %v381
        %v992 = vpop.f32.mrf.mxu0
        %v993 = vadd.f32 0.0, %v992
        %v994 = vpop.f32.mrf.mxu0
        %v995 = vadd.f32 0.0, %v994
        %996 = vmatmul.bf16.gmra.mxu0 %v382
        %v997 = vpop.f32.mrf.mxu0
        %v998 = vadd.f32 0.0, %v997
        %v999 = vpop.f32.mrf.mxu0
        %v1000 = vadd.f32 0.0, %v999
        %1001 = vmatmul.bf16.gmra.mxu0 %v383
        %v1002 = vpop.f32.mrf.mxu0
        %v1003 = vadd.f32 0.0, %v1002
        %v1004 = vpop.f32.mrf.mxu0
        %v1005 = vadd.f32 0.0, %v1004
        %1006 = vmatmul.bf16.gmra.mxu0 %v384
        %v1007 = vpop.f32.mrf.mxu0
        %v1008 = vadd.f32 0.0, %v1007
        %v1009 = vpop.f32.mrf.mxu0
        %v1010 = vadd.f32 0.0, %v1009
        %1011 = vmatmul.bf16.gmra.mxu0 %v385
        %v1012 = vpop.f32.mrf.mxu0
        %v1013 = vadd.f32 0.0, %v1012
        %v1014 = vpop.f32.mrf.mxu0
        %v1015 = vadd.f32 0.0, %v1014
        %1016 = vmatmul.bf16.gmra.mxu0 %v386
        %v1017 = vpop.f32.mrf.mxu0
        %v1018 = vadd.f32 0.0, %v1017
        %v1019 = vpop.f32.mrf.mxu0
        %v1020 = vadd.f32 0.0, %v1019
        %1021 = vmatmul.bf16.gmra.mxu0 %v387
        %v1022 = vpop.f32.mrf.mxu0
        %v1023 = vadd.f32 0.0, %v1022
        %v1024 = vpop.f32.mrf.mxu0
        %v1025 = vadd.f32 0.0, %v1024
        %1026 = vmatmul.bf16.gmra.mxu0 %v388
        %v1027 = vpop.f32.mrf.mxu0
        %v1028 = vadd.f32 0.0, %v1027
        %v1029 = vpop.f32.mrf.mxu0
        %v1030 = vadd.f32 0.0, %v1029
        %1031 = vmatmul.bf16.gmra.mxu0 %v389
        %v1032 = vpop.f32.mrf.mxu0
        %v1033 = vadd.f32 0.0, %v1032
        %v1034 = vpop.f32.mrf.mxu0
        %v1035 = vadd.f32 0.0, %v1034
        %1036 = vmatmul.bf16.gmra.mxu0 %v390
        %v1037 = vpop.f32.mrf.mxu0
        %v1038 = vadd.f32 0.0, %v1037
        %v1039 = vpop.f32.mrf.mxu0
        %v1040 = vadd.f32 0.0, %v1039
        %1041 = vmatmul.bf16.gmra.mxu0 %v391
        %v1042 = vpop.f32.mrf.mxu0
        %v1043 = vadd.f32 0.0, %v1042
        %v1044 = vpop.f32.mrf.mxu0
        %v1045 = vadd.f32 0.0, %v1044
        %1046 = vmatmul.bf16.gmra.mxu0 %v392
        %v1047 = vpop.f32.mrf.mxu0
        %v1048 = vadd.f32 0.0, %v1047
        %v1049 = vpop.f32.mrf.mxu0
        %v1050 = vadd.f32 0.0, %v1049
        %1051 = vmatmul.bf16.gmra.mxu0 %v393
        %v1052 = vpop.f32.mrf.mxu0
        %v1053 = vadd.f32 0.0, %v1052
        %v1054 = vpop.f32.mrf.mxu0
        %v1055 = vadd.f32 0.0, %v1054
        %1056 = vmatmul.bf16.gmra.mxu0 %v394
        %v1057 = vpop.f32.mrf.mxu0
        %v1058 = vadd.f32 0.0, %v1057
        %v1059 = vpop.f32.mrf.mxu0
        %v1060 = vadd.f32 0.0, %v1059
        %1061 = vmatmul.bf16.gmra.mxu0 %v395
        %v1062 = vpop.f32.mrf.mxu0
        %v1063 = vadd.f32 0.0, %v1062
        %v1064 = vpop.f32.mrf.mxu0
        %v1065 = vadd.f32 0.0, %v1064
        %1066 = vmatmul.bf16.gmra.mxu0 %v396
        %v1067 = vpop.f32.mrf.mxu0
        %v1068 = vadd.f32 0.0, %v1067
        %v1069 = vpop.f32.mrf.mxu0
        %v1070 = vadd.f32 0.0, %v1069
        %1071 = vmatmul.bf16.gmra.mxu0 %v397
        %v1072 = vpop.f32.mrf.mxu0
        %v1073 = vadd.f32 0.0, %v1072
        %v1074 = vpop.f32.mrf.mxu0
        %v1075 = vadd.f32 0.0, %v1074
        %1076 = vmatmul.bf16.gmra.mxu0 %v398
        %v1077 = vpop.f32.mrf.mxu0
        %v1078 = vadd.f32 0.0, %v1077
        %v1079 = vpop.f32.mrf.mxu0
        %v1080 = vadd.f32 0.0, %v1079
        %1081 = vmatmul.bf16.gmra.mxu0 %v399
        %v1082 = vpop.f32.mrf.mxu0
        %v1083 = vadd.f32 0.0, %v1082
        %v1084 = vpop.f32.mrf.mxu0
        %v1085 = vadd.f32 0.0, %v1084
        %1086 = vmatmul.bf16.gmra.mxu0 %v400
        %v1087 = vpop.f32.mrf.mxu0
        %v1088 = vadd.f32 0.0, %v1087
        %v1089 = vpop.f32.mrf.mxu0
        %v1090 = vadd.f32 0.0, %v1089
        %1091 = vmatmul.bf16.gmra.mxu0 %v401
        %v1092 = vpop.f32.mrf.mxu0
        %v1093 = vadd.f32 0.0, %v1092
        %v1094 = vpop.f32.mrf.mxu0
        %v1095 = vadd.f32 0.0, %v1094
        %1096 = vmatmul.bf16.gmra.mxu0 %v402
        %v1097 = vpop.f32.mrf.mxu0
        %v1098 = vadd.f32 0.0, %v1097
        %v1099 = vpop.f32.mrf.mxu0
        %v1100 = vadd.f32 0.0, %v1099
        %1101 = vdwg.mxu0
        %v1102 = vld [vmem:[%s7] sm:$0xff]
        %v1103 = vld [vmem:[%s7 + $0x8] sm:$0xff]
        %v1104 = vld [vmem:[%s7 + $0x10] sm:$0xff]
        %v1105 = vld [vmem:[%s7 + $0x18] sm:$0xff]
        %v1106 = vld [vmem:[%s7 + $0x20] sm:$0xff]
        %v1107 = vld [vmem:[%s7 + $0x28] sm:$0xff]
        %v1108 = vld [vmem:[%s7 + $0x30] sm:$0xff]
        %v1109 = vld [vmem:[%s7 + $0x38] sm:$0xff]
        %v1110 = vld [vmem:[%s7 + $0x40] sm:$0xff]
        %v1111 = vld [vmem:[%s7 + $0x48] sm:$0xff]
        %v1112 = vld [vmem:[%s7 + $0x50] sm:$0xff]
        %v1113 = vld [vmem:[%s7 + $0x58] sm:$0xff]
        %v1114 = vld [vmem:[%s7 + $0x60] sm:$0xff]
        %v1115 = vld [vmem:[%s7 + $0x68] sm:$0xff]
        %v1116 = vld [vmem:[%s7 + $0x70] sm:$0xff]
        %v1117 = vld [vmem:[%s7 + $0x78] sm:$0xff]
        %v1118 = vld [vmem:[%s5] sm:$0x1]
        %v1119 = vld [vmem:[%s6] sm:$0x1]
        %v1121 = vperm.slane %v1118, 0
        %v1123 = vmul.f32 %v477, %v1121
        %v1124 = vmul.f32 %v479, %v1121
        %v1125 = vmul.f32 %v482, %v1121
        %v1126 = vmul.f32 %v484, %v1121
        %v1127 = vmul.f32 %v487, %v1121
        %v1128 = vmul.f32 %v489, %v1121
        %v1129 = vmul.f32 %v492, %v1121
        %v1130 = vmul.f32 %v494, %v1121
        %v1131 = vmul.f32 %v497, %v1121
        %v1132 = vmul.f32 %v499, %v1121
        %v1133 = vmul.f32 %v502, %v1121
        %v1134 = vmul.f32 %v504, %v1121
        %v1135 = vmul.f32 %v507, %v1121
        %v1136 = vmul.f32 %v509, %v1121
        %v1137 = vmul.f32 %v512, %v1121
        %v1138 = vmul.f32 %v514, %v1121
        %v1139 = vmul.f32 %v517, %v1121
        %v1140 = vmul.f32 %v519, %v1121
        %v1141 = vmul.f32 %v522, %v1121
        %v1142 = vmul.f32 %v524, %v1121
        %v1143 = vmul.f32 %v527, %v1121
        %v1144 = vmul.f32 %v529, %v1121
        %v1145 = vmul.f32 %v532, %v1121
        %v1146 = vmul.f32 %v534, %v1121
        %v1147 = vmul.f32 %v537, %v1121
        %v1148 = vmul.f32 %v539, %v1121
        %v1149 = vmul.f32 %v542, %v1121
        %v1150 = vmul.f32 %v544, %v1121
        %v1151 = vmul.f32 %v547, %v1121
        %v1152 = vmul.f32 %v549, %v1121
        %v1153 = vmul.f32 %v552, %v1121
        %v1154 = vmul.f32 %v554, %v1121
        %v1155 = vmul.f32 %v557, %v1121
        %v1156 = vmul.f32 %v559, %v1121
        %v1157 = vmul.f32 %v562, %v1121
        %v1158 = vmul.f32 %v564, %v1121
        %v1159 = vmul.f32 %v567, %v1121
        %v1160 = vmul.f32 %v569, %v1121
        %v1161 = vmul.f32 %v572, %v1121
        %v1162 = vmul.f32 %v574, %v1121
        %v1163 = vmul.f32 %v577, %v1121
        %v1164 = vmul.f32 %v579, %v1121
        %v1165 = vmul.f32 %v582, %v1121
        %v1166 = vmul.f32 %v584, %v1121
        %v1167 = vmul.f32 %v587, %v1121
        %v1168 = vmul.f32 %v589, %v1121
        %v1169 = vmul.f32 %v592, %v1121
        %v1170 = vmul.f32 %v594, %v1121
        %v1171 = vmul.f32 %v597, %v1121
        %v1172 = vmul.f32 %v599, %v1121
        %v1173 = vmul.f32 %v602, %v1121
        %v1174 = vmul.f32 %v604, %v1121
        %v1175 = vmul.f32 %v607, %v1121
        %v1176 = vmul.f32 %v609, %v1121
        %v1177 = vmul.f32 %v612, %v1121
        %v1178 = vmul.f32 %v614, %v1121
        %v1179 = vmul.f32 %v617, %v1121
        %v1180 = vmul.f32 %v619, %v1121
        %v1181 = vmul.f32 %v622, %v1121
        %v1182 = vmul.f32 %v624, %v1121
        %v1183 = vmul.f32 %v627, %v1121
        %v1184 = vmul.f32 %v629, %v1121
        %v1185 = vmul.f32 %v632, %v1121
        %v1186 = vmul.f32 %v634, %v1121
        %v1187 = vmul.f32 %v1123, 0.088388346
        %v1188 = vmul.f32 %v1124, 0.088388346
        %v1189 = vmul.f32 %v1125, 0.088388346
        %v1190 = vmul.f32 %v1126, 0.088388346
        %v1191 = vmul.f32 %v1127, 0.088388346
        %v1192 = vmul.f32 %v1128, 0.088388346
        %v1193 = vmul.f32 %v1129, 0.088388346
        %v1194 = vmul.f32 %v1130, 0.088388346
        %v1195 = vmul.f32 %v1131, 0.088388346
        %v1196 = vmul.f32 %v1132, 0.088388346
        %v1197 = vmul.f32 %v1133, 0.088388346
        %v1198 = vmul.f32 %v1134, 0.088388346
        %v1199 = vmul.f32 %v1135, 0.088388346
        %v1200 = vmul.f32 %v1136, 0.088388346
        %v1201 = vmul.f32 %v1137, 0.088388346
        %v1202 = vmul.f32 %v1138, 0.088388346
        %v1203 = vmul.f32 %v1139, 0.088388346
        %v1204 = vmul.f32 %v1140, 0.088388346
        %v1205 = vmul.f32 %v1141, 0.088388346
        %v1206 = vmul.f32 %v1142, 0.088388346
        %v1207 = vmul.f32 %v1143, 0.088388346
        %v1208 = vmul.f32 %v1144, 0.088388346
        %v1209 = vmul.f32 %v1145, 0.088388346
        %v1210 = vmul.f32 %v1146, 0.088388346
        %v1211 = vmul.f32 %v1147, 0.088388346
        %v1212 = vmul.f32 %v1148, 0.088388346
        %v1213 = vmul.f32 %v1149, 0.088388346
        %v1214 = vmul.f32 %v1150, 0.088388346
        %v1215 = vmul.f32 %v1151, 0.088388346
        %v1216 = vmul.f32 %v1152, 0.088388346
        %v1217 = vmul.f32 %v1153, 0.088388346
        %v1218 = vmul.f32 %v1154, 0.088388346
        %v1219 = vmul.f32 %v1155, 0.088388346
        %v1220 = vmul.f32 %v1156, 0.088388346
        %v1221 = vmul.f32 %v1157, 0.088388346
        %v1222 = vmul.f32 %v1158, 0.088388346
        %v1223 = vmul.f32 %v1159, 0.088388346
        %v1224 = vmul.f32 %v1160, 0.088388346
        %v1225 = vmul.f32 %v1161, 0.088388346
        %v1226 = vmul.f32 %v1162, 0.088388346
        %v1227 = vmul.f32 %v1163, 0.088388346
        %v1228 = vmul.f32 %v1164, 0.088388346
        %v1229 = vmul.f32 %v1165, 0.088388346
        %v1230 = vmul.f32 %v1166, 0.088388346
        %v1231 = vmul.f32 %v1167, 0.088388346
        %v1232 = vmul.f32 %v1168, 0.088388346
        %v1233 = vmul.f32 %v1169, 0.088388346
        %v1234 = vmul.f32 %v1170, 0.088388346
        %v1235 = vmul.f32 %v1171, 0.088388346
        %v1236 = vmul.f32 %v1172, 0.088388346
        %v1237 = vmul.f32 %v1173, 0.088388346
        %v1238 = vmul.f32 %v1174, 0.088388346
        %v1239 = vmul.f32 %v1175, 0.088388346
        %v1240 = vmul.f32 %v1176, 0.088388346
        %v1241 = vmul.f32 %v1177, 0.088388346
        %v1242 = vmul.f32 %v1178, 0.088388346
        %v1243 = vmul.f32 %v1179, 0.088388346
        %v1244 = vmul.f32 %v1180, 0.088388346
        %v1245 = vmul.f32 %v1181, 0.088388346
        %v1246 = vmul.f32 %v1182, 0.088388346
        %v1247 = vmul.f32 %v1183, 0.088388346
        %v1248 = vmul.f32 %v1184, 0.088388346
        %v1249 = vmul.f32 %v1185, 0.088388346
        %v1250 = vmul.f32 %v1186, 0.088388346
        %1251 = vmatpush.msra.mxu0 %v1117
        %1252 = vmatpush.msra.mxu0 %v1116
        %1253 = vmatpush.msra.mxu0 %v1115
        %1254 = vmatpush.msra.mxu0 %v1114
        %1255 = vmatpush.msra.mxu0 %v1113
        %1256 = vmatpush.msra.mxu0 %v1112
        %1257 = vmatpush.msra.mxu0 %v1111
        %1258 = vmatpush.msra.mxu0 %v1110
        %1259 = vmatpush.msra.mxu0 %v1109
        %1260 = vmatpush.msra.mxu0 %v1108
        %1261 = vmatpush.msra.mxu0 %v1107
        %1262 = vmatpush.msra.mxu0 %v1106
        %1263 = vmatpush.msra.mxu0 %v1105
        %1264 = vmatpush.msra.mxu0 %v1104
        %1265 = vmatpush.msra.mxu0 %v1103
        %1266 = vmatpush.msra.mxu0 %v1102
        %1267 = vmatmul.f32.gmra.mxu0 %v1187
        %v1268 = vpop.f32.mrf.mxu0
        %v1269 = vadd.f32 0.0, %v1268
        %1270 = vmatmul.f32.gmra.mxu0 %v1188
        %v1271 = vpop.f32.mrf.mxu0
        %v1272 = vadd.f32 0.0, %v1271
        %1273 = vmatmul.f32.gmra.mxu0 %v1189
        %v1274 = vpop.f32.mrf.mxu0
        %v1275 = vadd.f32 0.0, %v1274
        %1276 = vmatmul.f32.gmra.mxu0 %v1190
        %v1277 = vpop.f32.mrf.mxu0
        %v1278 = vadd.f32 0.0, %v1277
        %1279 = vmatmul.f32.gmra.mxu0 %v1191
        %v1280 = vpop.f32.mrf.mxu0
        %v1281 = vadd.f32 0.0, %v1280
        %1282 = vmatmul.f32.gmra.mxu0 %v1192
        %v1283 = vpop.f32.mrf.mxu0
        %v1284 = vadd.f32 0.0, %v1283
        %1285 = vmatmul.f32.gmra.mxu0 %v1193
        %v1286 = vpop.f32.mrf.mxu0
        %v1287 = vadd.f32 0.0, %v1286
        %1288 = vmatmul.f32.gmra.mxu0 %v1194
        %v1289 = vpop.f32.mrf.mxu0
        %v1290 = vadd.f32 0.0, %v1289
        %1291 = vmatmul.f32.gmra.mxu0 %v1195
        %v1292 = vpop.f32.mrf.mxu0
        %v1293 = vadd.f32 0.0, %v1292
        %1294 = vmatmul.f32.gmra.mxu0 %v1196
        %v1295 = vpop.f32.mrf.mxu0
        %v1296 = vadd.f32 0.0, %v1295
        %1297 = vmatmul.f32.gmra.mxu0 %v1197
        %v1298 = vpop.f32.mrf.mxu0
        %v1299 = vadd.f32 0.0, %v1298
        %1300 = vmatmul.f32.gmra.mxu0 %v1198
        %v1301 = vpop.f32.mrf.mxu0
        %v1302 = vadd.f32 0.0, %v1301
        %1303 = vmatmul.f32.gmra.mxu0 %v1199
        %v1304 = vpop.f32.mrf.mxu0
        %v1305 = vadd.f32 0.0, %v1304
        %1306 = vmatmul.f32.gmra.mxu0 %v1200
        %v1307 = vpop.f32.mrf.mxu0
        %v1308 = vadd.f32 0.0, %v1307
        %1309 = vmatmul.f32.gmra.mxu0 %v1201
        %v1310 = vpop.f32.mrf.mxu0
        %v1311 = vadd.f32 0.0, %v1310
        %1312 = vmatmul.f32.gmra.mxu0 %v1202
        %v1313 = vpop.f32.mrf.mxu0
        %v1314 = vadd.f32 0.0, %v1313
        %1315 = vmatmul.f32.gmra.mxu0 %v1203
        %v1316 = vpop.f32.mrf.mxu0
        %v1317 = vadd.f32 0.0, %v1316
        %1318 = vmatmul.f32.gmra.mxu0 %v1204
        %v1319 = vpop.f32.mrf.mxu0
        %v1320 = vadd.f32 0.0, %v1319
        %1321 = vmatmul.f32.gmra.mxu0 %v1205
        %v1322 = vpop.f32.mrf.mxu0
        %v1323 = vadd.f32 0.0, %v1322
        %1324 = vmatmul.f32.gmra.mxu0 %v1206
        %v1325 = vpop.f32.mrf.mxu0
        %v1326 = vadd.f32 0.0, %v1325
        %1327 = vmatmul.f32.gmra.mxu0 %v1207
        %v1328 = vpop.f32.mrf.mxu0
        %v1329 = vadd.f32 0.0, %v1328
        %1330 = vmatmul.f32.gmra.mxu0 %v1208
        %v1331 = vpop.f32.mrf.mxu0
        %v1332 = vadd.f32 0.0, %v1331
        %1333 = vmatmul.f32.gmra.mxu0 %v1209
        %v1334 = vpop.f32.mrf.mxu0
        %v1335 = vadd.f32 0.0, %v1334
        %1336 = vmatmul.f32.gmra.mxu0 %v1210
        %v1337 = vpop.f32.mrf.mxu0
        %v1338 = vadd.f32 0.0, %v1337
        %1339 = vmatmul.f32.gmra.mxu0 %v1211
        %v1340 = vpop.f32.mrf.mxu0
        %v1341 = vadd.f32 0.0, %v1340
        %1342 = vmatmul.f32.gmra.mxu0 %v1212
        %v1343 = vpop.f32.mrf.mxu0
        %v1344 = vadd.f32 0.0, %v1343
        %1345 = vmatmul.f32.gmra.mxu0 %v1213
        %v1346 = vpop.f32.mrf.mxu0
        %v1347 = vadd.f32 0.0, %v1346
        %1348 = vmatmul.f32.gmra.mxu0 %v1214
        %v1349 = vpop.f32.mrf.mxu0
        %v1350 = vadd.f32 0.0, %v1349
        %1351 = vmatmul.f32.gmra.mxu0 %v1215
        %v1352 = vpop.f32.mrf.mxu0
        %v1353 = vadd.f32 0.0, %v1352
        %1354 = vmatmul.f32.gmra.mxu0 %v1216
        %v1355 = vpop.f32.mrf.mxu0
        %v1356 = vadd.f32 0.0, %v1355
        %1357 = vmatmul.f32.gmra.mxu0 %v1217
        %v1358 = vpop.f32.mrf.mxu0
        %v1359 = vadd.f32 0.0, %v1358
        %1360 = vmatmul.f32.gmra.mxu0 %v1218
        %v1361 = vpop.f32.mrf.mxu0
        %v1362 = vadd.f32 0.0, %v1361
        %1363 = vmatmul.f32.gmra.mxu0 %v1219
        %v1364 = vpop.f32.mrf.mxu0
        %v1365 = vadd.f32 0.0, %v1364
        %1366 = vmatmul.f32.gmra.mxu0 %v1220
        %v1367 = vpop.f32.mrf.mxu0
        %v1368 = vadd.f32 0.0, %v1367
        %1369 = vmatmul.f32.gmra.mxu0 %v1221
        %v1370 = vpop.f32.mrf.mxu0
        %v1371 = vadd.f32 0.0, %v1370
        %1372 = vmatmul.f32.gmra.mxu0 %v1222
        %v1373 = vpop.f32.mrf.mxu0
        %v1374 = vadd.f32 0.0, %v1373
        %1375 = vmatmul.f32.gmra.mxu0 %v1223
        %v1376 = vpop.f32.mrf.mxu0
        %v1377 = vadd.f32 0.0, %v1376
        %1378 = vmatmul.f32.gmra.mxu0 %v1224
        %v1379 = vpop.f32.mrf.mxu0
        %v1380 = vadd.f32 0.0, %v1379
        %1381 = vmatmul.f32.gmra.mxu0 %v1225
        %v1382 = vpop.f32.mrf.mxu0
        %v1383 = vadd.f32 0.0, %v1382
        %1384 = vmatmul.f32.gmra.mxu0 %v1226
        %v1385 = vpop.f32.mrf.mxu0
        %v1386 = vadd.f32 0.0, %v1385
        %1387 = vmatmul.f32.gmra.mxu0 %v1227
        %v1388 = vpop.f32.mrf.mxu0
        %v1389 = vadd.f32 0.0, %v1388
        %1390 = vmatmul.f32.gmra.mxu0 %v1228
        %v1391 = vpop.f32.mrf.mxu0
        %v1392 = vadd.f32 0.0, %v1391
        %1393 = vmatmul.f32.gmra.mxu0 %v1229
        %v1394 = vpop.f32.mrf.mxu0
        %v1395 = vadd.f32 0.0, %v1394
        %1396 = vmatmul.f32.gmra.mxu0 %v1230
        %v1397 = vpop.f32.mrf.mxu0
        %v1398 = vadd.f32 0.0, %v1397
        %1399 = vmatmul.f32.gmra.mxu0 %v1231
        %v1400 = vpop.f32.mrf.mxu0
        %v1401 = vadd.f32 0.0, %v1400
        %1402 = vmatmul.f32.gmra.mxu0 %v1232
        %v1403 = vpop.f32.mrf.mxu0
        %v1404 = vadd.f32 0.0, %v1403
        %1405 = vmatmul.f32.gmra.mxu0 %v1233
        %v1406 = vpop.f32.mrf.mxu0
        %v1407 = vadd.f32 0.0, %v1406
        %1408 = vmatmul.f32.gmra.mxu0 %v1234
        %v1409 = vpop.f32.mrf.mxu0
        %v1410 = vadd.f32 0.0, %v1409
        %1411 = vmatmul.f32.gmra.mxu0 %v1235
        %v1412 = vpop.f32.mrf.mxu0
        %v1413 = vadd.f32 0.0, %v1412
        %1414 = vmatmul.f32.gmra.mxu0 %v1236
        %v1415 = vpop.f32.mrf.mxu0
        %v1416 = vadd.f32 0.0, %v1415
        %1417 = vmatmul.f32.gmra.mxu0 %v1237
        %v1418 = vpop.f32.mrf.mxu0
        %v1419 = vadd.f32 0.0, %v1418
        %1420 = vmatmul.f32.gmra.mxu0 %v1238
        %v1421 = vpop.f32.mrf.mxu0
        %v1422 = vadd.f32 0.0, %v1421
        %1423 = vmatmul.f32.gmra.mxu0 %v1239
        %v1424 = vpop.f32.mrf.mxu0
        %v1425 = vadd.f32 0.0, %v1424
        %1426 = vmatmul.f32.gmra.mxu0 %v1240
        %v1427 = vpop.f32.mrf.mxu0
        %v1428 = vadd.f32 0.0, %v1427
        %1429 = vmatmul.f32.gmra.mxu0 %v1241
        %v1430 = vpop.f32.mrf.mxu0
        %v1431 = vadd.f32 0.0, %v1430
        %1432 = vmatmul.f32.gmra.mxu0 %v1242
        %v1433 = vpop.f32.mrf.mxu0
        %v1434 = vadd.f32 0.0, %v1433
        %1435 = vmatmul.f32.gmra.mxu0 %v1243
        %v1436 = vpop.f32.mrf.mxu0
        %v1437 = vadd.f32 0.0, %v1436
        %1438 = vmatmul.f32.gmra.mxu0 %v1244
        %v1439 = vpop.f32.mrf.mxu0
        %v1440 = vadd.f32 0.0, %v1439
        %1441 = vmatmul.f32.gmra.mxu0 %v1245
        %v1442 = vpop.f32.mrf.mxu0
        %v1443 = vadd.f32 0.0, %v1442
        %1444 = vmatmul.f32.gmra.mxu0 %v1246
        %v1445 = vpop.f32.mrf.mxu0
        %v1446 = vadd.f32 0.0, %v1445
        %1447 = vmatmul.f32.gmra.mxu0 %v1247
        %v1448 = vpop.f32.mrf.mxu0
        %v1449 = vadd.f32 0.0, %v1448
        %1450 = vmatmul.f32.gmra.mxu0 %v1248
        %v1451 = vpop.f32.mrf.mxu0
        %v1452 = vadd.f32 0.0, %v1451
        %1453 = vmatmul.f32.gmra.mxu0 %v1249
        %v1454 = vpop.f32.mrf.mxu0
        %v1455 = vadd.f32 0.0, %v1454
        %1456 = vmatmul.f32.gmra.mxu0 %v1250
        %v1457 = vpop.f32.mrf.mxu0
        %v1458 = vadd.f32 0.0, %v1457
        %1459 = vdwg.mxu0
        %v1460 = vmul.f32 %v1269, 0.0625
        %v1461 = vmul.f32 %v1272, 0.0625
        %v1462 = vmul.f32 %v1275, 0.0625
        %v1463 = vmul.f32 %v1278, 0.0625
        %v1464 = vmul.f32 %v1281, 0.0625
        %v1465 = vmul.f32 %v1284, 0.0625
        %v1466 = vmul.f32 %v1287, 0.0625
        %v1467 = vmul.f32 %v1290, 0.0625
        %v1468 = vmul.f32 %v1293, 0.0625
        %v1469 = vmul.f32 %v1296, 0.0625
        %v1470 = vmul.f32 %v1299, 0.0625
        %v1471 = vmul.f32 %v1302, 0.0625
        %v1472 = vmul.f32 %v1305, 0.0625
        %v1473 = vmul.f32 %v1308, 0.0625
        %v1474 = vmul.f32 %v1311, 0.0625
        %v1475 = vmul.f32 %v1314, 0.0625
        %v1476 = vmul.f32 %v1317, 0.0625
        %v1477 = vmul.f32 %v1320, 0.0625
        %v1478 = vmul.f32 %v1323, 0.0625
        %v1479 = vmul.f32 %v1326, 0.0625
        %v1480 = vmul.f32 %v1329, 0.0625
        %v1481 = vmul.f32 %v1332, 0.0625
        %v1482 = vmul.f32 %v1335, 0.0625
        %v1483 = vmul.f32 %v1338, 0.0625
        %v1484 = vmul.f32 %v1341, 0.0625
        %v1485 = vmul.f32 %v1344, 0.0625
        %v1486 = vmul.f32 %v1347, 0.0625
        %v1487 = vmul.f32 %v1350, 0.0625
        %v1488 = vmul.f32 %v1353, 0.0625
        %v1489 = vmul.f32 %v1356, 0.0625
        %v1490 = vmul.f32 %v1359, 0.0625
        %v1491 = vmul.f32 %v1362, 0.0625
        %v1492 = vmul.f32 %v1365, 0.0625
        %v1493 = vmul.f32 %v1368, 0.0625
        %v1494 = vmul.f32 %v1371, 0.0625
        %v1495 = vmul.f32 %v1374, 0.0625
        %v1496 = vmul.f32 %v1377, 0.0625
        %v1497 = vmul.f32 %v1380, 0.0625
        %v1498 = vmul.f32 %v1383, 0.0625
        %v1499 = vmul.f32 %v1386, 0.0625
        %v1500 = vmul.f32 %v1389, 0.0625
        %v1501 = vmul.f32 %v1392, 0.0625
        %v1502 = vmul.f32 %v1395, 0.0625
        %v1503 = vmul.f32 %v1398, 0.0625
        %v1504 = vmul.f32 %v1401, 0.0625
        %v1505 = vmul.f32 %v1404, 0.0625
        %v1506 = vmul.f32 %v1407, 0.0625
        %v1507 = vmul.f32 %v1410, 0.0625
        %v1508 = vmul.f32 %v1413, 0.0625
        %v1509 = vmul.f32 %v1416, 0.0625
        %v1510 = vmul.f32 %v1419, 0.0625
        %v1511 = vmul.f32 %v1422, 0.0625
        %v1512 = vmul.f32 %v1425, 0.0625
        %v1513 = vmul.f32 %v1428, 0.0625
        %v1514 = vmul.f32 %v1431, 0.0625
        %v1515 = vmul.f32 %v1434, 0.0625
        %v1516 = vmul.f32 %v1437, 0.0625
        %v1517 = vmul.f32 %v1440, 0.0625
        %v1518 = vmul.f32 %v1443, 0.0625
        %v1519 = vmul.f32 %v1446, 0.0625
        %v1520 = vmul.f32 %v1449, 0.0625
        %v1521 = vmul.f32 %v1452, 0.0625
        %v1522 = vmul.f32 %v1455, 0.0625
        %v1523 = vmul.f32 %v1458, 0.0625
        %v1524 = vsub.f32 %v1187, %v1460
        %v1525 = vsub.f32 %v1188, %v1461
        %v1526 = vsub.f32 %v1189, %v1462
        %v1527 = vsub.f32 %v1190, %v1463
        %v1528 = vsub.f32 %v1191, %v1464
        %v1529 = vsub.f32 %v1192, %v1465
        %v1530 = vsub.f32 %v1193, %v1466
        %v1531 = vsub.f32 %v1194, %v1467
        %v1532 = vsub.f32 %v1195, %v1468
        %v1533 = vsub.f32 %v1196, %v1469
        %v1534 = vsub.f32 %v1197, %v1470
        %v1535 = vsub.f32 %v1198, %v1471
        %v1536 = vsub.f32 %v1199, %v1472
        %v1537 = vsub.f32 %v1200, %v1473
        %v1538 = vsub.f32 %v1201, %v1474
        %v1539 = vsub.f32 %v1202, %v1475
        %v1540 = vsub.f32 %v1203, %v1476
        %v1541 = vsub.f32 %v1204, %v1477
        %v1542 = vsub.f32 %v1205, %v1478
        %v1543 = vsub.f32 %v1206, %v1479
        %v1544 = vsub.f32 %v1207, %v1480
        %v1545 = vsub.f32 %v1208, %v1481
        %v1546 = vsub.f32 %v1209, %v1482
        %v1547 = vsub.f32 %v1210, %v1483
        %v1548 = vsub.f32 %v1211, %v1484
        %v1549 = vsub.f32 %v1212, %v1485
        %v1550 = vsub.f32 %v1213, %v1486
        %v1551 = vsub.f32 %v1214, %v1487
        %v1552 = vsub.f32 %v1215, %v1488
        %v1553 = vsub.f32 %v1216, %v1489
        %v1554 = vsub.f32 %v1217, %v1490
        %v1555 = vsub.f32 %v1218, %v1491
        %v1556 = vsub.f32 %v1219, %v1492
        %v1557 = vsub.f32 %v1220, %v1493
        %v1558 = vsub.f32 %v1221, %v1494
        %v1559 = vsub.f32 %v1222, %v1495
        %v1560 = vsub.f32 %v1223, %v1496
        %v1561 = vsub.f32 %v1224, %v1497
        %v1562 = vsub.f32 %v1225, %v1498
        %v1563 = vsub.f32 %v1226, %v1499
        %v1564 = vsub.f32 %v1227, %v1500
        %v1565 = vsub.f32 %v1228, %v1501
        %v1566 = vsub.f32 %v1229, %v1502
        %v1567 = vsub.f32 %v1230, %v1503
        %v1568 = vsub.f32 %v1231, %v1504
        %v1569 = vsub.f32 %v1232, %v1505
        %v1570 = vsub.f32 %v1233, %v1506
        %v1571 = vsub.f32 %v1234, %v1507
        %v1572 = vsub.f32 %v1235, %v1508
        %v1573 = vsub.f32 %v1236, %v1509
        %v1574 = vsub.f32 %v1237, %v1510
        %v1575 = vsub.f32 %v1238, %v1511
        %v1576 = vsub.f32 %v1239, %v1512
        %v1577 = vsub.f32 %v1240, %v1513
        %v1578 = vsub.f32 %v1241, %v1514
        %v1579 = vsub.f32 %v1242, %v1515
        %v1580 = vsub.f32 %v1243, %v1516
        %v1581 = vsub.f32 %v1244, %v1517
        %v1582 = vsub.f32 %v1245, %v1518
        %v1583 = vsub.f32 %v1246, %v1519
        %v1584 = vsub.f32 %v1247, %v1520
        %v1585 = vsub.f32 %v1248, %v1521
        %v1586 = vsub.f32 %v1249, %v1522
        %v1587 = vsub.f32 %v1250, %v1523
        %v1588 = vmul.f32 %v1524, 1.442695
        %v1589 = vpow.pop %v1588
        %v1590 = vmul.f32 %v1525, 1.442695
        %v1591 = vpow.pop %v1590
        %v1592 = vmul.f32 %v1526, 1.442695
        %v1593 = vpow.pop %v1592
        %v1594 = vmul.f32 %v1527, 1.442695
        %v1595 = vpow.pop %v1594
        %v1596 = vmul.f32 %v1528, 1.442695
        %v1597 = vpow.pop %v1596
        %v1598 = vmul.f32 %v1529, 1.442695
        %v1599 = vpow.pop %v1598
        %v1600 = vmul.f32 %v1530, 1.442695
        %v1601 = vpow.pop %v1600
        %v1602 = vmul.f32 %v1531, 1.442695
        %v1603 = vpow.pop %v1602
        %v1604 = vmul.f32 %v1532, 1.442695
        %v1605 = vpow.pop %v1604
        %v1606 = vmul.f32 %v1533, 1.442695
        %v1607 = vpow.pop %v1606
        %v1608 = vmul.f32 %v1534, 1.442695
        %v1609 = vpow.pop %v1608
        %v1610 = vmul.f32 %v1535, 1.442695
        %v1611 = vpow.pop %v1610
        %v1612 = vmul.f32 %v1536, 1.442695
        %v1613 = vpow.pop %v1612
        %v1614 = vmul.f32 %v1537, 1.442695
        %v1615 = vpow.pop %v1614
        %v1616 = vmul.f32 %v1538, 1.442695
        %v1617 = vpow.pop %v1616
        %v1618 = vmul.f32 %v1539, 1.442695
        %v1619 = vpow.pop %v1618
        %v1620 = vmul.f32 %v1540, 1.442695
        %v1621 = vpow.pop %v1620
        %v1622 = vmul.f32 %v1541, 1.442695
        %v1623 = vpow.pop %v1622
        %v1624 = vmul.f32 %v1542, 1.442695
        %v1625 = vpow.pop %v1624
        %v1626 = vmul.f32 %v1543, 1.442695
        %v1627 = vpow.pop %v1626
        %v1628 = vmul.f32 %v1544, 1.442695
        %v1629 = vpow.pop %v1628
        %v1630 = vmul.f32 %v1545, 1.442695
        %v1631 = vpow.pop %v1630
        %v1632 = vmul.f32 %v1546, 1.442695
        %v1633 = vpow.pop %v1632
        %v1634 = vmul.f32 %v1547, 1.442695
        %v1635 = vpow.pop %v1634
        %v1636 = vmul.f32 %v1548, 1.442695
        %v1637 = vpow.pop %v1636
        %v1638 = vmul.f32 %v1549, 1.442695
        %v1639 = vpow.pop %v1638
        %v1640 = vmul.f32 %v1550, 1.442695
        %v1641 = vpow.pop %v1640
        %v1642 = vmul.f32 %v1551, 1.442695
        %v1643 = vpow.pop %v1642
        %v1644 = vmul.f32 %v1552, 1.442695
        %v1645 = vpow.pop %v1644
        %v1646 = vmul.f32 %v1553, 1.442695
        %v1647 = vpow.pop %v1646
        %v1648 = vmul.f32 %v1554, 1.442695
        %v1649 = vpow.pop %v1648
        %v1650 = vmul.f32 %v1555, 1.442695
        %v1651 = vpow.pop %v1650
        %v1652 = vmul.f32 %v1556, 1.442695
        %v1653 = vpow.pop %v1652
        %v1654 = vmul.f32 %v1557, 1.442695
        %v1655 = vpow.pop %v1654
        %v1656 = vmul.f32 %v1558, 1.442695
        %v1657 = vpow.pop %v1656
        %v1658 = vmul.f32 %v1559, 1.442695
        %v1659 = vpow.pop %v1658
        %v1660 = vmul.f32 %v1560, 1.442695
        %v1661 = vpow.pop %v1660
        %v1662 = vmul.f32 %v1561, 1.442695
        %v1663 = vpow.pop %v1662
        %v1664 = vmul.f32 %v1562, 1.442695
        %v1665 = vpow.pop %v1664
        %v1666 = vmul.f32 %v1563, 1.442695
        %v1667 = vpow.pop %v1666
        %v1668 = vmul.f32 %v1564, 1.442695
        %v1669 = vpow.pop %v1668
        %v1670 = vmul.f32 %v1565, 1.442695
        %v1671 = vpow.pop %v1670
        %v1672 = vmul.f32 %v1566, 1.442695
        %v1673 = vpow.pop %v1672
        %v1674 = vmul.f32 %v1567, 1.442695
        %v1675 = vpow.pop %v1674
        %v1676 = vmul.f32 %v1568, 1.442695
        %v1677 = vpow.pop %v1676
        %v1678 = vmul.f32 %v1569, 1.442695
        %v1679 = vpow.pop %v1678
        %v1680 = vmul.f32 %v1570, 1.442695
        %v1681 = vpow.pop %v1680
        %v1682 = vmul.f32 %v1571, 1.442695
        %v1683 = vpow.pop %v1682
        %v1684 = vmul.f32 %v1572, 1.442695
        %v1685 = vpow.pop %v1684
        %v1686 = vmul.f32 %v1573, 1.442695
        %v1687 = vpow.pop %v1686
        %v1688 = vmul.f32 %v1574, 1.442695
        %v1689 = vpow.pop %v1688
        %v1690 = vmul.f32 %v1575, 1.442695
        %v1691 = vpow.pop %v1690
        %v1692 = vmul.f32 %v1576, 1.442695
        %v1693 = vpow.pop %v1692
        %v1694 = vmul.f32 %v1577, 1.442695
        %v1695 = vpow.pop %v1694
        %v1696 = vmul.f32 %v1578, 1.442695
        %v1697 = vpow.pop %v1696
        %v1698 = vmul.f32 %v1579, 1.442695
        %v1699 = vpow.pop %v1698
        %v1700 = vmul.f32 %v1580, 1.442695
        %v1701 = vpow.pop %v1700
        %v1702 = vmul.f32 %v1581, 1.442695
        %v1703 = vpow.pop %v1702
        %v1704 = vmul.f32 %v1582, 1.442695
        %v1705 = vpow.pop %v1704
        %v1706 = vmul.f32 %v1583, 1.442695
        %v1707 = vpow.pop %v1706
        %v1708 = vmul.f32 %v1584, 1.442695
        %v1709 = vpow.pop %v1708
        %v1710 = vmul.f32 %v1585, 1.442695
        %v1711 = vpow.pop %v1710
        %v1712 = vmul.f32 %v1586, 1.442695
        %v1713 = vpow.pop %v1712
        %v1714 = vmul.f32 %v1587, 1.442695
        %v1715 = vpow.pop %v1714
        %1716 = vmatpush.msra.mxu0 %v1117
        %1717 = vmatpush.msra.mxu0 %v1116
        %1718 = vmatpush.msra.mxu0 %v1115
        %1719 = vmatpush.msra.mxu0 %v1114
        %1720 = vmatpush.msra.mxu0 %v1113
        %1721 = vmatpush.msra.mxu0 %v1112
        %1722 = vmatpush.msra.mxu0 %v1111
        %1723 = vmatpush.msra.mxu0 %v1110
        %1724 = vmatpush.msra.mxu0 %v1109
        %1725 = vmatpush.msra.mxu0 %v1108
        %1726 = vmatpush.msra.mxu0 %v1107
        %1727 = vmatpush.msra.mxu0 %v1106
        %1728 = vmatpush.msra.mxu0 %v1105
        %1729 = vmatpush.msra.mxu0 %v1104
        %1730 = vmatpush.msra.mxu0 %v1103
        %1731 = vmatpush.msra.mxu0 %v1102
        %1732 = vmatmul.f32.gmra.mxu0 %v1589
        %v1733 = vpop.f32.mrf.mxu0
        %v1734 = vadd.f32 0.0, %v1733
        %1735 = vmatmul.f32.gmra.mxu0 %v1591
        %v1736 = vpop.f32.mrf.mxu0
        %v1737 = vadd.f32 0.0, %v1736
        %1738 = vmatmul.f32.gmra.mxu0 %v1593
        %v1739 = vpop.f32.mrf.mxu0
        %v1740 = vadd.f32 0.0, %v1739
        %1741 = vmatmul.f32.gmra.mxu0 %v1595
        %v1742 = vpop.f32.mrf.mxu0
        %v1743 = vadd.f32 0.0, %v1742
        %1744 = vmatmul.f32.gmra.mxu0 %v1597
        %v1745 = vpop.f32.mrf.mxu0
        %v1746 = vadd.f32 0.0, %v1745
        %1747 = vmatmul.f32.gmra.mxu0 %v1599
        %v1748 = vpop.f32.mrf.mxu0
        %v1749 = vadd.f32 0.0, %v1748
        %1750 = vmatmul.f32.gmra.mxu0 %v1601
        %v1751 = vpop.f32.mrf.mxu0
        %v1752 = vadd.f32 0.0, %v1751
        %1753 = vmatmul.f32.gmra.mxu0 %v1603
        %v1754 = vpop.f32.mrf.mxu0
        %v1755 = vadd.f32 0.0, %v1754
        %1756 = vmatmul.f32.gmra.mxu0 %v1605
        %v1757 = vpop.f32.mrf.mxu0
        %v1758 = vadd.f32 0.0, %v1757
        %1759 = vmatmul.f32.gmra.mxu0 %v1607
        %v1760 = vpop.f32.mrf.mxu0
        %v1761 = vadd.f32 0.0, %v1760
        %1762 = vmatmul.f32.gmra.mxu0 %v1609
        %v1763 = vpop.f32.mrf.mxu0
        %v1764 = vadd.f32 0.0, %v1763
        %1765 = vmatmul.f32.gmra.mxu0 %v1611
        %v1766 = vpop.f32.mrf.mxu0
        %v1767 = vadd.f32 0.0, %v1766
        %1768 = vmatmul.f32.gmra.mxu0 %v1613
        %v1769 = vpop.f32.mrf.mxu0
        %v1770 = vadd.f32 0.0, %v1769
        %1771 = vmatmul.f32.gmra.mxu0 %v1615
        %v1772 = vpop.f32.mrf.mxu0
        %v1773 = vadd.f32 0.0, %v1772
        %1774 = vmatmul.f32.gmra.mxu0 %v1617
        %v1775 = vpop.f32.mrf.mxu0
        %v1776 = vadd.f32 0.0, %v1775
        %1777 = vmatmul.f32.gmra.mxu0 %v1619
        %v1778 = vpop.f32.mrf.mxu0
        %v1779 = vadd.f32 0.0, %v1778
        %1780 = vmatmul.f32.gmra.mxu0 %v1621
        %v1781 = vpop.f32.mrf.mxu0
        %v1782 = vadd.f32 0.0, %v1781
        %1783 = vmatmul.f32.gmra.mxu0 %v1623
        %v1784 = vpop.f32.mrf.mxu0
        %v1785 = vadd.f32 0.0, %v1784
        %1786 = vmatmul.f32.gmra.mxu0 %v1625
        %v1787 = vpop.f32.mrf.mxu0
        %v1788 = vadd.f32 0.0, %v1787
        %1789 = vmatmul.f32.gmra.mxu0 %v1627
        %v1790 = vpop.f32.mrf.mxu0
        %v1791 = vadd.f32 0.0, %v1790
        %1792 = vmatmul.f32.gmra.mxu0 %v1629
        %v1793 = vpop.f32.mrf.mxu0
        %v1794 = vadd.f32 0.0, %v1793
        %1795 = vmatmul.f32.gmra.mxu0 %v1631
        %v1796 = vpop.f32.mrf.mxu0
        %v1797 = vadd.f32 0.0, %v1796
        %1798 = vmatmul.f32.gmra.mxu0 %v1633
        %v1799 = vpop.f32.mrf.mxu0
        %v1800 = vadd.f32 0.0, %v1799
        %1801 = vmatmul.f32.gmra.mxu0 %v1635
        %v1802 = vpop.f32.mrf.mxu0
        %v1803 = vadd.f32 0.0, %v1802
        %1804 = vmatmul.f32.gmra.mxu0 %v1637
        %v1805 = vpop.f32.mrf.mxu0
        %v1806 = vadd.f32 0.0, %v1805
        %1807 = vmatmul.f32.gmra.mxu0 %v1639
        %v1808 = vpop.f32.mrf.mxu0
        %v1809 = vadd.f32 0.0, %v1808
        %1810 = vmatmul.f32.gmra.mxu0 %v1641
        %v1811 = vpop.f32.mrf.mxu0
        %v1812 = vadd.f32 0.0, %v1811
        %1813 = vmatmul.f32.gmra.mxu0 %v1643
        %v1814 = vpop.f32.mrf.mxu0
        %v1815 = vadd.f32 0.0, %v1814
        %1816 = vmatmul.f32.gmra.mxu0 %v1645
        %v1817 = vpop.f32.mrf.mxu0
        %v1818 = vadd.f32 0.0, %v1817
        %1819 = vmatmul.f32.gmra.mxu0 %v1647
        %v1820 = vpop.f32.mrf.mxu0
        %v1821 = vadd.f32 0.0, %v1820
        %1822 = vmatmul.f32.gmra.mxu0 %v1649
        %v1823 = vpop.f32.mrf.mxu0
        %v1824 = vadd.f32 0.0, %v1823
        %1825 = vmatmul.f32.gmra.mxu0 %v1651
        %v1826 = vpop.f32.mrf.mxu0
        %v1827 = vadd.f32 0.0, %v1826
        %1828 = vmatmul.f32.gmra.mxu0 %v1653
        %v1829 = vpop.f32.mrf.mxu0
        %v1830 = vadd.f32 0.0, %v1829
        %1831 = vmatmul.f32.gmra.mxu0 %v1655
        %v1832 = vpop.f32.mrf.mxu0
        %v1833 = vadd.f32 0.0, %v1832
        %1834 = vmatmul.f32.gmra.mxu0 %v1657
        %v1835 = vpop.f32.mrf.mxu0
        %v1836 = vadd.f32 0.0, %v1835
        %1837 = vmatmul.f32.gmra.mxu0 %v1659
        %v1838 = vpop.f32.mrf.mxu0
        %v1839 = vadd.f32 0.0, %v1838
        %1840 = vmatmul.f32.gmra.mxu0 %v1661
        %v1841 = vpop.f32.mrf.mxu0
        %v1842 = vadd.f32 0.0, %v1841
        %1843 = vmatmul.f32.gmra.mxu0 %v1663
        %v1844 = vpop.f32.mrf.mxu0
        %v1845 = vadd.f32 0.0, %v1844
        %1846 = vmatmul.f32.gmra.mxu0 %v1665
        %v1847 = vpop.f32.mrf.mxu0
        %v1848 = vadd.f32 0.0, %v1847
        %1849 = vmatmul.f32.gmra.mxu0 %v1667
        %v1850 = vpop.f32.mrf.mxu0
        %v1851 = vadd.f32 0.0, %v1850
        %1852 = vmatmul.f32.gmra.mxu0 %v1669
        %v1853 = vpop.f32.mrf.mxu0
        %v1854 = vadd.f32 0.0, %v1853
        %1855 = vmatmul.f32.gmra.mxu0 %v1671
        %v1856 = vpop.f32.mrf.mxu0
        %v1857 = vadd.f32 0.0, %v1856
        %1858 = vmatmul.f32.gmra.mxu0 %v1673
        %v1859 = vpop.f32.mrf.mxu0
        %v1860 = vadd.f32 0.0, %v1859
        %1861 = vmatmul.f32.gmra.mxu0 %v1675
        %v1862 = vpop.f32.mrf.mxu0
        %v1863 = vadd.f32 0.0, %v1862
        %1864 = vmatmul.f32.gmra.mxu0 %v1677
        %v1865 = vpop.f32.mrf.mxu0
        %v1866 = vadd.f32 0.0, %v1865
        %1867 = vmatmul.f32.gmra.mxu0 %v1679
        %v1868 = vpop.f32.mrf.mxu0
        %v1869 = vadd.f32 0.0, %v1868
        %1870 = vmatmul.f32.gmra.mxu0 %v1681
        %v1871 = vpop.f32.mrf.mxu0
        %v1872 = vadd.f32 0.0, %v1871
        %1873 = vmatmul.f32.gmra.mxu0 %v1683
        %v1874 = vpop.f32.mrf.mxu0
        %v1875 = vadd.f32 0.0, %v1874
        %1876 = vmatmul.f32.gmra.mxu0 %v1685
        %v1877 = vpop.f32.mrf.mxu0
        %v1878 = vadd.f32 0.0, %v1877
        %1879 = vmatmul.f32.gmra.mxu0 %v1687
        %v1880 = vpop.f32.mrf.mxu0
        %v1881 = vadd.f32 0.0, %v1880
        %1882 = vmatmul.f32.gmra.mxu0 %v1689
        %v1883 = vpop.f32.mrf.mxu0
        %v1884 = vadd.f32 0.0, %v1883
        %1885 = vmatmul.f32.gmra.mxu0 %v1691
        %v1886 = vpop.f32.mrf.mxu0
        %v1887 = vadd.f32 0.0, %v1886
        %1888 = vmatmul.f32.gmra.mxu0 %v1693
        %v1889 = vpop.f32.mrf.mxu0
        %v1890 = vadd.f32 0.0, %v1889
        %1891 = vmatmul.f32.gmra.mxu0 %v1695
        %v1892 = vpop.f32.mrf.mxu0
        %v1893 = vadd.f32 0.0, %v1892
        %1894 = vmatmul.f32.gmra.mxu0 %v1697
        %v1895 = vpop.f32.mrf.mxu0
        %v1896 = vadd.f32 0.0, %v1895
        %1897 = vmatmul.f32.gmra.mxu0 %v1699
        %v1898 = vpop.f32.mrf.mxu0
        %v1899 = vadd.f32 0.0, %v1898
        %1900 = vmatmul.f32.gmra.mxu0 %v1701
        %v1901 = vpop.f32.mrf.mxu0
        %v1902 = vadd.f32 0.0, %v1901
        %1903 = vmatmul.f32.gmra.mxu0 %v1703
        %v1904 = vpop.f32.mrf.mxu0
        %v1905 = vadd.f32 0.0, %v1904
        %1906 = vmatmul.f32.gmra.mxu0 %v1705
        %v1907 = vpop.f32.mrf.mxu0
        %v1908 = vadd.f32 0.0, %v1907
        %1909 = vmatmul.f32.gmra.mxu0 %v1707
        %v1910 = vpop.f32.mrf.mxu0
        %v1911 = vadd.f32 0.0, %v1910
        %1912 = vmatmul.f32.gmra.mxu0 %v1709
        %v1913 = vpop.f32.mrf.mxu0
        %v1914 = vadd.f32 0.0, %v1913
        %1915 = vmatmul.f32.gmra.mxu0 %v1711
        %v1916 = vpop.f32.mrf.mxu0
        %v1917 = vadd.f32 0.0, %v1916
        %1918 = vmatmul.f32.gmra.mxu0 %v1713
        %v1919 = vpop.f32.mrf.mxu0
        %v1920 = vadd.f32 0.0, %v1919
        %1921 = vmatmul.f32.gmra.mxu0 %v1715
        %v1922 = vpop.f32.mrf.mxu0
        %v1923 = vadd.f32 0.0, %v1922
        %1924 = vdwg.mxu0
        %v1925 = vrcp.pop %v1734
        %v1926 = vrcp.pop %v1737
        %v1927 = vrcp.pop %v1740
        %v1928 = vrcp.pop %v1743
        %v1929 = vrcp.pop %v1746
        %v1930 = vrcp.pop %v1749
        %v1931 = vrcp.pop %v1752
        %v1932 = vrcp.pop %v1755
        %v1933 = vrcp.pop %v1758
        %v1934 = vrcp.pop %v1761
        %v1935 = vrcp.pop %v1764
        %v1936 = vrcp.pop %v1767
        %v1937 = vrcp.pop %v1770
        %v1938 = vrcp.pop %v1773
        %v1939 = vrcp.pop %v1776
        %v1940 = vrcp.pop %v1779
        %v1941 = vrcp.pop %v1782
        %v1942 = vrcp.pop %v1785
        %v1943 = vrcp.pop %v1788
        %v1944 = vrcp.pop %v1791
        %v1945 = vrcp.pop %v1794
        %v1946 = vrcp.pop %v1797
        %v1947 = vrcp.pop %v1800
        %v1948 = vrcp.pop %v1803
        %v1949 = vrcp.pop %v1806
        %v1950 = vrcp.pop %v1809
        %v1951 = vrcp.pop %v1812
        %v1952 = vrcp.pop %v1815
        %v1953 = vrcp.pop %v1818
        %v1954 = vrcp.pop %v1821
        %v1955 = vrcp.pop %v1824
        %v1956 = vrcp.pop %v1827
        %v1957 = vrcp.pop %v1830
        %v1958 = vrcp.pop %v1833
        %v1959 = vrcp.pop %v1836
        %v1960 = vrcp.pop %v1839
        %v1961 = vrcp.pop %v1842
        %v1962 = vrcp.pop %v1845
        %v1963 = vrcp.pop %v1848
        %v1964 = vrcp.pop %v1851
        %v1965 = vrcp.pop %v1854
        %v1966 = vrcp.pop %v1857
        %v1967 = vrcp.pop %v1860
        %v1968 = vrcp.pop %v1863
        %v1969 = vrcp.pop %v1866
        %v1970 = vrcp.pop %v1869
        %v1971 = vrcp.pop %v1872
        %v1972 = vrcp.pop %v1875
        %v1973 = vrcp.pop %v1878
        %v1974 = vrcp.pop %v1881
        %v1975 = vrcp.pop %v1884
        %v1976 = vrcp.pop %v1887
        %v1977 = vrcp.pop %v1890
        %v1978 = vrcp.pop %v1893
        %v1979 = vrcp.pop %v1896
        %v1980 = vrcp.pop %v1899
        %v1981 = vrcp.pop %v1902
        %v1982 = vrcp.pop %v1905
        %v1983 = vrcp.pop %v1908
        %v1984 = vrcp.pop %v1911
        %v1985 = vrcp.pop %v1914
        %v1986 = vrcp.pop %v1917
        %v1987 = vrcp.pop %v1920
        %v1988 = vrcp.pop %v1923
        %v1989 = vmul.f32 %v1589, %v1925
        %v1990 = vmul.f32 %v1591, %v1926
        %v1991 = vmul.f32 %v1593, %v1927
        %v1992 = vmul.f32 %v1595, %v1928
        %v1993 = vmul.f32 %v1597, %v1929
        %v1994 = vmul.f32 %v1599, %v1930
        %v1995 = vmul.f32 %v1601, %v1931
        %v1996 = vmul.f32 %v1603, %v1932
        %v1997 = vmul.f32 %v1605, %v1933
        %v1998 = vmul.f32 %v1607, %v1934
        %v1999 = vmul.f32 %v1609, %v1935
        %v2000 = vmul.f32 %v1611, %v1936
        %v2001 = vmul.f32 %v1613, %v1937
        %v2002 = vmul.f32 %v1615, %v1938
        %v2003 = vmul.f32 %v1617, %v1939
        %v2004 = vmul.f32 %v1619, %v1940
        %v2005 = vmul.f32 %v1621, %v1941
        %v2006 = vmul.f32 %v1623, %v1942
        %v2007 = vmul.f32 %v1625, %v1943
        %v2008 = vmul.f32 %v1627, %v1944
        %v2009 = vmul.f32 %v1629, %v1945
        %v2010 = vmul.f32 %v1631, %v1946
        %v2011 = vmul.f32 %v1633, %v1947
        %v2012 = vmul.f32 %v1635, %v1948
        %v2013 = vmul.f32 %v1637, %v1949
        %v2014 = vmul.f32 %v1639, %v1950
        %v2015 = vmul.f32 %v1641, %v1951
        %v2016 = vmul.f32 %v1643, %v1952
        %v2017 = vmul.f32 %v1645, %v1953
        %v2018 = vmul.f32 %v1647, %v1954
        %v2019 = vmul.f32 %v1649, %v1955
        %v2020 = vmul.f32 %v1651, %v1956
        %v2021 = vmul.f32 %v1653, %v1957
        %v2022 = vmul.f32 %v1655, %v1958
        %v2023 = vmul.f32 %v1657, %v1959
        %v2024 = vmul.f32 %v1659, %v1960
        %v2025 = vmul.f32 %v1661, %v1961
        %v2026 = vmul.f32 %v1663, %v1962
        %v2027 = vmul.f32 %v1665, %v1963
        %v2028 = vmul.f32 %v1667, %v1964
        %v2029 = vmul.f32 %v1669, %v1965
        %v2030 = vmul.f32 %v1671, %v1966
        %v2031 = vmul.f32 %v1673, %v1967
        %v2032 = vmul.f32 %v1675, %v1968
        %v2033 = vmul.f32 %v1677, %v1969
        %v2034 = vmul.f32 %v1679, %v1970
        %v2035 = vmul.f32 %v1681, %v1971
        %v2036 = vmul.f32 %v1683, %v1972
        %v2037 = vmul.f32 %v1685, %v1973
        %v2038 = vmul.f32 %v1687, %v1974
        %v2039 = vmul.f32 %v1689, %v1975
        %v2040 = vmul.f32 %v1691, %v1976
        %v2041 = vmul.f32 %v1693, %v1977
        %v2042 = vmul.f32 %v1695, %v1978
        %v2043 = vmul.f32 %v1697, %v1979
        %v2044 = vmul.f32 %v1699, %v1980
        %v2045 = vmul.f32 %v1701, %v1981
        %v2046 = vmul.f32 %v1703, %v1982
        %v2047 = vmul.f32 %v1705, %v1983
        %v2048 = vmul.f32 %v1707, %v1984
        %v2049 = vmul.f32 %v1709, %v1985
        %v2050 = vmul.f32 %v1711, %v1986
        %v2051 = vmul.f32 %v1713, %v1987
        %v2052 = vmul.f32 %v1715, %v1988
        %v2053 = vmul.f32 %v477, %v1989
        %v2054 = vmul.f32 %v479, %v1990
        %v2055 = vmul.f32 %v482, %v1991
        %v2056 = vmul.f32 %v484, %v1992
        %v2057 = vmul.f32 %v487, %v1993
        %v2058 = vmul.f32 %v489, %v1994
        %v2059 = vmul.f32 %v492, %v1995
        %v2060 = vmul.f32 %v494, %v1996
        %v2061 = vmul.f32 %v497, %v1997
        %v2062 = vmul.f32 %v499, %v1998
        %v2063 = vmul.f32 %v502, %v1999
        %v2064 = vmul.f32 %v504, %v2000
        %v2065 = vmul.f32 %v507, %v2001
        %v2066 = vmul.f32 %v509, %v2002
        %v2067 = vmul.f32 %v512, %v2003
        %v2068 = vmul.f32 %v514, %v2004
        %v2069 = vmul.f32 %v517, %v2005
        %v2070 = vmul.f32 %v519, %v2006
        %v2071 = vmul.f32 %v522, %v2007
        %v2072 = vmul.f32 %v524, %v2008
        %v2073 = vmul.f32 %v527, %v2009
        %v2074 = vmul.f32 %v529, %v2010
        %v2075 = vmul.f32 %v532, %v2011
        %v2076 = vmul.f32 %v534, %v2012
        %v2077 = vmul.f32 %v537, %v2013
        %v2078 = vmul.f32 %v539, %v2014
        %v2079 = vmul.f32 %v542, %v2015
        %v2080 = vmul.f32 %v544, %v2016
        %v2081 = vmul.f32 %v547, %v2017
        %v2082 = vmul.f32 %v549, %v2018
        %v2083 = vmul.f32 %v552, %v2019
        %v2084 = vmul.f32 %v554, %v2020
        %v2085 = vmul.f32 %v557, %v2021
        %v2086 = vmul.f32 %v559, %v2022
        %v2087 = vmul.f32 %v562, %v2023
        %v2088 = vmul.f32 %v564, %v2024
        %v2089 = vmul.f32 %v567, %v2025
        %v2090 = vmul.f32 %v569, %v2026
        %v2091 = vmul.f32 %v572, %v2027
        %v2092 = vmul.f32 %v574, %v2028
        %v2093 = vmul.f32 %v577, %v2029
        %v2094 = vmul.f32 %v579, %v2030
        %v2095 = vmul.f32 %v582, %v2031
        %v2096 = vmul.f32 %v584, %v2032
        %v2097 = vmul.f32 %v587, %v2033
        %v2098 = vmul.f32 %v589, %v2034
        %v2099 = vmul.f32 %v592, %v2035
        %v2100 = vmul.f32 %v594, %v2036
        %v2101 = vmul.f32 %v597, %v2037
        %v2102 = vmul.f32 %v599, %v2038
        %v2103 = vmul.f32 %v602, %v2039
        %v2104 = vmul.f32 %v604, %v2040
        %v2105 = vmul.f32 %v607, %v2041
        %v2106 = vmul.f32 %v609, %v2042
        %v2107 = vmul.f32 %v612, %v2043
        %v2108 = vmul.f32 %v614, %v2044
        %v2109 = vmul.f32 %v617, %v2045
        %v2110 = vmul.f32 %v619, %v2046
        %v2111 = vmul.f32 %v622, %v2047
        %v2112 = vmul.f32 %v624, %v2048
        %v2113 = vmul.f32 %v627, %v2049
        %v2114 = vmul.f32 %v629, %v2050
        %v2115 = vmul.f32 %v632, %v2051
        %v2116 = vmul.f32 %v634, %v2052
        %v2117 = vadd.f32 %v2053, %v2054
        %v2118 = vrot.slane %v2117, 4
        %v2119 = vadd.f32 %v2117, %v2118
        %v2120 = vrot.slane %v2119, 2
        %v2121 = vadd.f32 %v2119, %v2120
        %v2122 = vrot.slane %v2121, 1
        %v2123 = vadd.f32 %v2121, %v2122
        %v2124 = vadd.f32 %v2055, %v2056
        %v2125 = vrot.slane %v2124, 4
        %v2126 = vadd.f32 %v2124, %v2125
        %v2127 = vrot.slane %v2126, 2
        %v2128 = vadd.f32 %v2126, %v2127
        %v2129 = vrot.slane %v2128, 1
        %v2130 = vadd.f32 %v2128, %v2129
        %v2131 = vadd.f32 %v2057, %v2058
        %v2132 = vrot.slane %v2131, 4
        %v2133 = vadd.f32 %v2131, %v2132
        %v2134 = vrot.slane %v2133, 2
        %v2135 = vadd.f32 %v2133, %v2134
        %v2136 = vrot.slane %v2135, 1
        %v2137 = vadd.f32 %v2135, %v2136
        %v2138 = vadd.f32 %v2059, %v2060
        %v2139 = vrot.slane %v2138, 4
        %v2140 = vadd.f32 %v2138, %v2139
        %v2141 = vrot.slane %v2140, 2
        %v2142 = vadd.f32 %v2140, %v2141
        %v2143 = vrot.slane %v2142, 1
        %v2144 = vadd.f32 %v2142, %v2143
        %v2145 = vadd.f32 %v2061, %v2062
        %v2146 = vrot.slane %v2145, 4
        %v2147 = vadd.f32 %v2145, %v2146
        %v2148 = vrot.slane %v2147, 2
        %v2149 = vadd.f32 %v2147, %v2148
        %v2150 = vrot.slane %v2149, 1
        %v2151 = vadd.f32 %v2149, %v2150
        %v2152 = vadd.f32 %v2063, %v2064
        %v2153 = vrot.slane %v2152, 4
        %v2154 = vadd.f32 %v2152, %v2153
        %v2155 = vrot.slane %v2154, 2
        %v2156 = vadd.f32 %v2154, %v2155
        %v2157 = vrot.slane %v2156, 1
        %v2158 = vadd.f32 %v2156, %v2157
        %v2159 = vadd.f32 %v2065, %v2066
        %v2160 = vrot.slane %v2159, 4
        %v2161 = vadd.f32 %v2159, %v2160
        %v2162 = vrot.slane %v2161, 2
        %v2163 = vadd.f32 %v2161, %v2162
        %v2164 = vrot.slane %v2163, 1
        %v2165 = vadd.f32 %v2163, %v2164
        %v2166 = vadd.f32 %v2067, %v2068
        %v2167 = vrot.slane %v2166, 4
        %v2168 = vadd.f32 %v2166, %v2167
        %v2169 = vrot.slane %v2168, 2
        %v2170 = vadd.f32 %v2168, %v2169
        %v2171 = vrot.slane %v2170, 1
        %v2172 = vadd.f32 %v2170, %v2171
        %v2173 = vadd.f32 %v2069, %v2070
        %v2174 = vrot.slane %v2173, 4
        %v2175 = vadd.f32 %v2173, %v2174
        %v2176 = vrot.slane %v2175, 2
        %v2177 = vadd.f32 %v2175, %v2176
        %v2178 = vrot.slane %v2177, 1
        %v2179 = vadd.f32 %v2177, %v2178
        %v2180 = vadd.f32 %v2071, %v2072
        %v2181 = vrot.slane %v2180, 4
        %v2182 = vadd.f32 %v2180, %v2181
        %v2183 = vrot.slane %v2182, 2
        %v2184 = vadd.f32 %v2182, %v2183
        %v2185 = vrot.slane %v2184, 1
        %v2186 = vadd.f32 %v2184, %v2185
        %v2187 = vadd.f32 %v2073, %v2074
        %v2188 = vrot.slane %v2187, 4
        %v2189 = vadd.f32 %v2187, %v2188
        %v2190 = vrot.slane %v2189, 2
        %v2191 = vadd.f32 %v2189, %v2190
        %v2192 = vrot.slane %v2191, 1
        %v2193 = vadd.f32 %v2191, %v2192
        %v2194 = vadd.f32 %v2075, %v2076
        %v2195 = vrot.slane %v2194, 4
        %v2196 = vadd.f32 %v2194, %v2195
        %v2197 = vrot.slane %v2196, 2
        %v2198 = vadd.f32 %v2196, %v2197
        %v2199 = vrot.slane %v2198, 1
        %v2200 = vadd.f32 %v2198, %v2199
        %v2201 = vadd.f32 %v2077, %v2078
        %v2202 = vrot.slane %v2201, 4
        %v2203 = vadd.f32 %v2201, %v2202
        %v2204 = vrot.slane %v2203, 2
        %v2205 = vadd.f32 %v2203, %v2204
        %v2206 = vrot.slane %v2205, 1
        %v2207 = vadd.f32 %v2205, %v2206
        %v2208 = vadd.f32 %v2079, %v2080
        %v2209 = vrot.slane %v2208, 4
        %v2210 = vadd.f32 %v2208, %v2209
        %v2211 = vrot.slane %v2210, 2
        %v2212 = vadd.f32 %v2210, %v2211
        %v2213 = vrot.slane %v2212, 1
        %v2214 = vadd.f32 %v2212, %v2213
        %v2215 = vadd.f32 %v2081, %v2082
        %v2216 = vrot.slane %v2215, 4
        %v2217 = vadd.f32 %v2215, %v2216
        %v2218 = vrot.slane %v2217, 2
        %v2219 = vadd.f32 %v2217, %v2218
        %v2220 = vrot.slane %v2219, 1
        %v2221 = vadd.f32 %v2219, %v2220
        %v2222 = vadd.f32 %v2083, %v2084
        %v2223 = vrot.slane %v2222, 4
        %v2224 = vadd.f32 %v2222, %v2223
        %v2225 = vrot.slane %v2224, 2
        %v2226 = vadd.f32 %v2224, %v2225
        %v2227 = vrot.slane %v2226, 1
        %v2228 = vadd.f32 %v2226, %v2227
        %v2229 = vadd.f32 %v2085, %v2086
        %v2230 = vrot.slane %v2229, 4
        %v2231 = vadd.f32 %v2229, %v2230
        %v2232 = vrot.slane %v2231, 2
        %v2233 = vadd.f32 %v2231, %v2232
        %v2234 = vrot.slane %v2233, 1
        %v2235 = vadd.f32 %v2233, %v2234
        %v2236 = vadd.f32 %v2087, %v2088
        %v2237 = vrot.slane %v2236, 4
        %v2238 = vadd.f32 %v2236, %v2237
        %v2239 = vrot.slane %v2238, 2
        %v2240 = vadd.f32 %v2238, %v2239
        %v2241 = vrot.slane %v2240, 1
        %v2242 = vadd.f32 %v2240, %v2241
        %v2243 = vadd.f32 %v2089, %v2090
        %v2244 = vrot.slane %v2243, 4
        %v2245 = vadd.f32 %v2243, %v2244
        %v2246 = vrot.slane %v2245, 2
        %v2247 = vadd.f32 %v2245, %v2246
        %v2248 = vrot.slane %v2247, 1
        %v2249 = vadd.f32 %v2247, %v2248
        %v2250 = vadd.f32 %v2091, %v2092
        %v2251 = vrot.slane %v2250, 4
        %v2252 = vadd.f32 %v2250, %v2251
        %v2253 = vrot.slane %v2252, 2
        %v2254 = vadd.f32 %v2252, %v2253
        %v2255 = vrot.slane %v2254, 1
        %v2256 = vadd.f32 %v2254, %v2255
        %v2257 = vadd.f32 %v2093, %v2094
        %v2258 = vrot.slane %v2257, 4
        %v2259 = vadd.f32 %v2257, %v2258
        %v2260 = vrot.slane %v2259, 2
        %v2261 = vadd.f32 %v2259, %v2260
        %v2262 = vrot.slane %v2261, 1
        %v2263 = vadd.f32 %v2261, %v2262
        %v2264 = vadd.f32 %v2095, %v2096
        %v2265 = vrot.slane %v2264, 4
        %v2266 = vadd.f32 %v2264, %v2265
        %v2267 = vrot.slane %v2266, 2
        %v2268 = vadd.f32 %v2266, %v2267
        %v2269 = vrot.slane %v2268, 1
        %v2270 = vadd.f32 %v2268, %v2269
        %v2271 = vadd.f32 %v2097, %v2098
        %v2272 = vrot.slane %v2271, 4
        %v2273 = vadd.f32 %v2271, %v2272
        %v2274 = vrot.slane %v2273, 2
        %v2275 = vadd.f32 %v2273, %v2274
        %v2276 = vrot.slane %v2275, 1
        %v2277 = vadd.f32 %v2275, %v2276
        %v2278 = vadd.f32 %v2099, %v2100
        %v2279 = vrot.slane %v2278, 4
        %v2280 = vadd.f32 %v2278, %v2279
        %v2281 = vrot.slane %v2280, 2
        %v2282 = vadd.f32 %v2280, %v2281
        %v2283 = vrot.slane %v2282, 1
        %v2284 = vadd.f32 %v2282, %v2283
        %v2285 = vadd.f32 %v2101, %v2102
        %v2286 = vrot.slane %v2285, 4
        %v2287 = vadd.f32 %v2285, %v2286
        %v2288 = vrot.slane %v2287, 2
        %v2289 = vadd.f32 %v2287, %v2288
        %v2290 = vrot.slane %v2289, 1
        %v2291 = vadd.f32 %v2289, %v2290
        %v2292 = vadd.f32 %v2103, %v2104
        %v2293 = vrot.slane %v2292, 4
        %v2294 = vadd.f32 %v2292, %v2293
        %v2295 = vrot.slane %v2294, 2
        %v2296 = vadd.f32 %v2294, %v2295
        %v2297 = vrot.slane %v2296, 1
        %v2298 = vadd.f32 %v2296, %v2297
        %v2299 = vadd.f32 %v2105, %v2106
        %v2300 = vrot.slane %v2299, 4
        %v2301 = vadd.f32 %v2299, %v2300
        %v2302 = vrot.slane %v2301, 2
        %v2303 = vadd.f32 %v2301, %v2302
        %v2304 = vrot.slane %v2303, 1
        %v2305 = vadd.f32 %v2303, %v2304
        %v2306 = vadd.f32 %v2107, %v2108
        %v2307 = vrot.slane %v2306, 4
        %v2308 = vadd.f32 %v2306, %v2307
        %v2309 = vrot.slane %v2308, 2
        %v2310 = vadd.f32 %v2308, %v2309
        %v2311 = vrot.slane %v2310, 1
        %v2312 = vadd.f32 %v2310, %v2311
        %v2313 = vadd.f32 %v2109, %v2110
        %v2314 = vrot.slane %v2313, 4
        %v2315 = vadd.f32 %v2313, %v2314
        %v2316 = vrot.slane %v2315, 2
        %v2317 = vadd.f32 %v2315, %v2316
        %v2318 = vrot.slane %v2317, 1
        %v2319 = vadd.f32 %v2317, %v2318
        %v2320 = vadd.f32 %v2111, %v2112
        %v2321 = vrot.slane %v2320, 4
        %v2322 = vadd.f32 %v2320, %v2321
        %v2323 = vrot.slane %v2322, 2
        %v2324 = vadd.f32 %v2322, %v2323
        %v2325 = vrot.slane %v2324, 1
        %v2326 = vadd.f32 %v2324, %v2325
        %v2327 = vadd.f32 %v2113, %v2114
        %v2328 = vrot.slane %v2327, 4
        %v2329 = vadd.f32 %v2327, %v2328
        %v2330 = vrot.slane %v2329, 2
        %v2331 = vadd.f32 %v2329, %v2330
        %v2332 = vrot.slane %v2331, 1
        %v2333 = vadd.f32 %v2331, %v2332
        %v2334 = vadd.f32 %v2115, %v2116
        %v2335 = vrot.slane %v2334, 4
        %v2336 = vadd.f32 %v2334, %v2335
        %v2337 = vrot.slane %v2336, 2
        %v2338 = vadd.f32 %v2336, %v2337
        %v2339 = vrot.slane %v2338, 1
        %v2340 = vadd.f32 %v2338, %v2339
        %v2341 = vmul.f32 %v2123, %v710
        %v2342 = vmul.f32 %v2123, %v712
        %v2343 = vmul.f32 %v2130, %v715
        %v2344 = vmul.f32 %v2130, %v717
        %v2345 = vmul.f32 %v2137, %v720
        %v2346 = vmul.f32 %v2137, %v722
        %v2347 = vmul.f32 %v2144, %v725
        %v2348 = vmul.f32 %v2144, %v727
        %v2349 = vmul.f32 %v2151, %v730
        %v2350 = vmul.f32 %v2151, %v732
        %v2351 = vmul.f32 %v2158, %v735
        %v2352 = vmul.f32 %v2158, %v737
        %v2353 = vmul.f32 %v2165, %v740
        %v2354 = vmul.f32 %v2165, %v742
        %v2355 = vmul.f32 %v2172, %v745
        %v2356 = vmul.f32 %v2172, %v747
        %v2357 = vmul.f32 %v2179, %v750
        %v2358 = vmul.f32 %v2179, %v752
        %v2359 = vmul.f32 %v2186, %v755
        %v2360 = vmul.f32 %v2186, %v757
        %v2361 = vmul.f32 %v2193, %v760
        %v2362 = vmul.f32 %v2193, %v762
        %v2363 = vmul.f32 %v2200, %v765
        %v2364 = vmul.f32 %v2200, %v767
        %v2365 = vmul.f32 %v2207, %v770
        %v2366 = vmul.f32 %v2207, %v772
        %v2367 = vmul.f32 %v2214, %v775
        %v2368 = vmul.f32 %v2214, %v777
        %v2369 = vmul.f32 %v2221, %v780
        %v2370 = vmul.f32 %v2221, %v782
        %v2371 = vmul.f32 %v2228, %v785
        %v2372 = vmul.f32 %v2228, %v787
        %v2373 = vmul.f32 %v2235, %v790
        %v2374 = vmul.f32 %v2235, %v792
        %v2375 = vmul.f32 %v2242, %v795
        %v2376 = vmul.f32 %v2242, %v797
        %v2377 = vmul.f32 %v2249, %v800
        %v2378 = vmul.f32 %v2249, %v802
        %v2379 = vmul.f32 %v2256, %v805
        %v2380 = vmul.f32 %v2256, %v807
        %v2381 = vmul.f32 %v2263, %v810
        %v2382 = vmul.f32 %v2263, %v812
        %v2383 = vmul.f32 %v2270, %v815
        %v2384 = vmul.f32 %v2270, %v817
        %v2385 = vmul.f32 %v2277, %v820
        %v2386 = vmul.f32 %v2277, %v822
        %v2387 = vmul.f32 %v2284, %v825
        %v2388 = vmul.f32 %v2284, %v827
        %v2389 = vmul.f32 %v2291, %v830
        %v2390 = vmul.f32 %v2291, %v832
        %v2391 = vmul.f32 %v2298, %v835
        %v2392 = vmul.f32 %v2298, %v837
        %v2393 = vmul.f32 %v2305, %v840
        %v2394 = vmul.f32 %v2305, %v842
        %v2395 = vmul.f32 %v2312, %v845
        %v2396 = vmul.f32 %v2312, %v847
        %v2397 = vmul.f32 %v2319, %v850
        %v2398 = vmul.f32 %v2319, %v852
        %v2399 = vmul.f32 %v2326, %v855
        %v2400 = vmul.f32 %v2326, %v857
        %v2401 = vmul.f32 %v2333, %v860
        %v2402 = vmul.f32 %v2333, %v862
        %v2403 = vmul.f32 %v2340, %v865
        %v2404 = vmul.f32 %v2340, %v867
        %v2406 = vperm.slane %v1119, 0
        %v2408 = vmul.f32 %v2341, %v2406
        %v2409 = vmul.f32 %v2342, %v2406
        %v2410 = vmul.f32 %v2343, %v2406
        %v2411 = vmul.f32 %v2344, %v2406
        %v2412 = vmul.f32 %v2345, %v2406
        %v2413 = vmul.f32 %v2346, %v2406
        %v2414 = vmul.f32 %v2347, %v2406
        %v2415 = vmul.f32 %v2348, %v2406
        %v2416 = vmul.f32 %v2349, %v2406
        %v2417 = vmul.f32 %v2350, %v2406
        %v2418 = vmul.f32 %v2351, %v2406
        %v2419 = vmul.f32 %v2352, %v2406
        %v2420 = vmul.f32 %v2353, %v2406
        %v2421 = vmul.f32 %v2354, %v2406
        %v2422 = vmul.f32 %v2355, %v2406
        %v2423 = vmul.f32 %v2356, %v2406
        %v2424 = vmul.f32 %v2357, %v2406
        %v2425 = vmul.f32 %v2358, %v2406
        %v2426 = vmul.f32 %v2359, %v2406
        %v2427 = vmul.f32 %v2360, %v2406
        %v2428 = vmul.f32 %v2361, %v2406
        %v2429 = vmul.f32 %v2362, %v2406
        %v2430 = vmul.f32 %v2363, %v2406
        %v2431 = vmul.f32 %v2364, %v2406
        %v2432 = vmul.f32 %v2365, %v2406
        %v2433 = vmul.f32 %v2366, %v2406
        %v2434 = vmul.f32 %v2367, %v2406
        %v2435 = vmul.f32 %v2368, %v2406
        %v2436 = vmul.f32 %v2369, %v2406
        %v2437 = vmul.f32 %v2370, %v2406
        %v2438 = vmul.f32 %v2371, %v2406
        %v2439 = vmul.f32 %v2372, %v2406
        %v2440 = vmul.f32 %v2373, %v2406
        %v2441 = vmul.f32 %v2374, %v2406
        %v2442 = vmul.f32 %v2375, %v2406
        %v2443 = vmul.f32 %v2376, %v2406
        %v2444 = vmul.f32 %v2377, %v2406
        %v2445 = vmul.f32 %v2378, %v2406
        %v2446 = vmul.f32 %v2379, %v2406
        %v2447 = vmul.f32 %v2380, %v2406
        %v2448 = vmul.f32 %v2381, %v2406
        %v2449 = vmul.f32 %v2382, %v2406
        %v2450 = vmul.f32 %v2383, %v2406
        %v2451 = vmul.f32 %v2384, %v2406
        %v2452 = vmul.f32 %v2385, %v2406
        %v2453 = vmul.f32 %v2386, %v2406
        %v2454 = vmul.f32 %v2387, %v2406
        %v2455 = vmul.f32 %v2388, %v2406
        %v2456 = vmul.f32 %v2389, %v2406
        %v2457 = vmul.f32 %v2390, %v2406
        %v2458 = vmul.f32 %v2391, %v2406
        %v2459 = vmul.f32 %v2392, %v2406
        %v2460 = vmul.f32 %v2393, %v2406
        %v2461 = vmul.f32 %v2394, %v2406
        %v2462 = vmul.f32 %v2395, %v2406
        %v2463 = vmul.f32 %v2396, %v2406
        %v2464 = vmul.f32 %v2397, %v2406
        %v2465 = vmul.f32 %v2398, %v2406
        %v2466 = vmul.f32 %v2399, %v2406
        %v2467 = vmul.f32 %v2400, %v2406
        %v2468 = vmul.f32 %v2401, %v2406
        %v2469 = vmul.f32 %v2402, %v2406
        %v2470 = vmul.f32 %v2403, %v2406
        %v2471 = vmul.f32 %v2404, %v2406
        %v2472 = vmul.f32 %v2408, 0.088388346
        %v2473 = vmul.f32 %v2409, 0.088388346
        %v2474 = vmul.f32 %v2410, 0.088388346
        %v2475 = vmul.f32 %v2411, 0.088388346
        %v2476 = vmul.f32 %v2412, 0.088388346
        %v2477 = vmul.f32 %v2413, 0.088388346
        %v2478 = vmul.f32 %v2414, 0.088388346
        %v2479 = vmul.f32 %v2415, 0.088388346
        %v2480 = vmul.f32 %v2416, 0.088388346
        %v2481 = vmul.f32 %v2417, 0.088388346
        %v2482 = vmul.f32 %v2418, 0.088388346
        %v2483 = vmul.f32 %v2419, 0.088388346
        %v2484 = vmul.f32 %v2420, 0.088388346
        %v2485 = vmul.f32 %v2421, 0.088388346
        %v2486 = vmul.f32 %v2422, 0.088388346
        %v2487 = vmul.f32 %v2423, 0.088388346
        %v2488 = vmul.f32 %v2424, 0.088388346
        %v2489 = vmul.f32 %v2425, 0.088388346
        %v2490 = vmul.f32 %v2426, 0.088388346
        %v2491 = vmul.f32 %v2427, 0.088388346
        %v2492 = vmul.f32 %v2428, 0.088388346
        %v2493 = vmul.f32 %v2429, 0.088388346
        %v2494 = vmul.f32 %v2430, 0.088388346
        %v2495 = vmul.f32 %v2431, 0.088388346
        %v2496 = vmul.f32 %v2432, 0.088388346
        %v2497 = vmul.f32 %v2433, 0.088388346
        %v2498 = vmul.f32 %v2434, 0.088388346
        %v2499 = vmul.f32 %v2435, 0.088388346
        %v2500 = vmul.f32 %v2436, 0.088388346
        %v2501 = vmul.f32 %v2437, 0.088388346
        %v2502 = vmul.f32 %v2438, 0.088388346
        %v2503 = vmul.f32 %v2439, 0.088388346
        %v2504 = vmul.f32 %v2440, 0.088388346
        %v2505 = vmul.f32 %v2441, 0.088388346
        %v2506 = vmul.f32 %v2442, 0.088388346
        %v2507 = vmul.f32 %v2443, 0.088388346
        %v2508 = vmul.f32 %v2444, 0.088388346
        %v2509 = vmul.f32 %v2445, 0.088388346
        %v2510 = vmul.f32 %v2446, 0.088388346
        %v2511 = vmul.f32 %v2447, 0.088388346
        %v2512 = vmul.f32 %v2448, 0.088388346
        %v2513 = vmul.f32 %v2449, 0.088388346
        %v2514 = vmul.f32 %v2450, 0.088388346
        %v2515 = vmul.f32 %v2451, 0.088388346
        %v2516 = vmul.f32 %v2452, 0.088388346
        %v2517 = vmul.f32 %v2453, 0.088388346
        %v2518 = vmul.f32 %v2454, 0.088388346
        %v2519 = vmul.f32 %v2455, 0.088388346
        %v2520 = vmul.f32 %v2456, 0.088388346
        %v2521 = vmul.f32 %v2457, 0.088388346
        %v2522 = vmul.f32 %v2458, 0.088388346
        %v2523 = vmul.f32 %v2459, 0.088388346
        %v2524 = vmul.f32 %v2460, 0.088388346
        %v2525 = vmul.f32 %v2461, 0.088388346
        %v2526 = vmul.f32 %v2462, 0.088388346
        %v2527 = vmul.f32 %v2463, 0.088388346
        %v2528 = vmul.f32 %v2464, 0.088388346
        %v2529 = vmul.f32 %v2465, 0.088388346
        %v2530 = vmul.f32 %v2466, 0.088388346
        %v2531 = vmul.f32 %v2467, 0.088388346
        %v2532 = vmul.f32 %v2468, 0.088388346
        %v2533 = vmul.f32 %v2469, 0.088388346
        %v2534 = vmul.f32 %v2470, 0.088388346
        %v2535 = vmul.f32 %v2471, 0.088388346
        %2536 = vmatpush.msra.mxu0 %v1117
        %2537 = vmatpush.msra.mxu0 %v1116
        %2538 = vmatpush.msra.mxu0 %v1115
        %2539 = vmatpush.msra.mxu0 %v1114
        %2540 = vmatpush.msra.mxu0 %v1113
        %2541 = vmatpush.msra.mxu0 %v1112
        %2542 = vmatpush.msra.mxu0 %v1111
        %2543 = vmatpush.msra.mxu0 %v1110
        %2544 = vmatpush.msra.mxu0 %v1109
        %2545 = vmatpush.msra.mxu0 %v1108
        %2546 = vmatpush.msra.mxu0 %v1107
        %2547 = vmatpush.msra.mxu0 %v1106
        %2548 = vmatpush.msra.mxu0 %v1105
        %2549 = vmatpush.msra.mxu0 %v1104
        %2550 = vmatpush.msra.mxu0 %v1103
        %2551 = vmatpush.msra.mxu0 %v1102
        %2552 = vmatmul.f32.gmra.mxu0 %v2472
        %v2553 = vpop.f32.mrf.mxu0
        %v2554 = vadd.f32 0.0, %v2553
        %2555 = vmatmul.f32.gmra.mxu0 %v2473
        %v2556 = vpop.f32.mrf.mxu0
        %v2557 = vadd.f32 0.0, %v2556
        %2558 = vmatmul.f32.gmra.mxu0 %v2474
        %v2559 = vpop.f32.mrf.mxu0
        %v2560 = vadd.f32 0.0, %v2559
        %2561 = vmatmul.f32.gmra.mxu0 %v2475
        %v2562 = vpop.f32.mrf.mxu0
        %v2563 = vadd.f32 0.0, %v2562
        %2564 = vmatmul.f32.gmra.mxu0 %v2476
        %v2565 = vpop.f32.mrf.mxu0
        %v2566 = vadd.f32 0.0, %v2565
        %2567 = vmatmul.f32.gmra.mxu0 %v2477
        %v2568 = vpop.f32.mrf.mxu0
        %v2569 = vadd.f32 0.0, %v2568
        %2570 = vmatmul.f32.gmra.mxu0 %v2478
        %v2571 = vpop.f32.mrf.mxu0
        %v2572 = vadd.f32 0.0, %v2571
        %2573 = vmatmul.f32.gmra.mxu0 %v2479
        %v2574 = vpop.f32.mrf.mxu0
        %v2575 = vadd.f32 0.0, %v2574
        %2576 = vmatmul.f32.gmra.mxu0 %v2480
        %v2577 = vpop.f32.mrf.mxu0
        %v2578 = vadd.f32 0.0, %v2577
        %2579 = vmatmul.f32.gmra.mxu0 %v2481
        %v2580 = vpop.f32.mrf.mxu0
        %v2581 = vadd.f32 0.0, %v2580
        %2582 = vmatmul.f32.gmra.mxu0 %v2482
        %v2583 = vpop.f32.mrf.mxu0
        %v2584 = vadd.f32 0.0, %v2583
        %2585 = vmatmul.f32.gmra.mxu0 %v2483
        %v2586 = vpop.f32.mrf.mxu0
        %v2587 = vadd.f32 0.0, %v2586
        %2588 = vmatmul.f32.gmra.mxu0 %v2484
        %v2589 = vpop.f32.mrf.mxu0
        %v2590 = vadd.f32 0.0, %v2589
        %2591 = vmatmul.f32.gmra.mxu0 %v2485
        %v2592 = vpop.f32.mrf.mxu0
        %v2593 = vadd.f32 0.0, %v2592
        %2594 = vmatmul.f32.gmra.mxu0 %v2486
        %v2595 = vpop.f32.mrf.mxu0
        %v2596 = vadd.f32 0.0, %v2595
        %2597 = vmatmul.f32.gmra.mxu0 %v2487
        %v2598 = vpop.f32.mrf.mxu0
        %v2599 = vadd.f32 0.0, %v2598
        %2600 = vmatmul.f32.gmra.mxu0 %v2488
        %v2601 = vpop.f32.mrf.mxu0
        %v2602 = vadd.f32 0.0, %v2601
        %2603 = vmatmul.f32.gmra.mxu0 %v2489
        %v2604 = vpop.f32.mrf.mxu0
        %v2605 = vadd.f32 0.0, %v2604
        %2606 = vmatmul.f32.gmra.mxu0 %v2490
        %v2607 = vpop.f32.mrf.mxu0
        %v2608 = vadd.f32 0.0, %v2607
        %2609 = vmatmul.f32.gmra.mxu0 %v2491
        %v2610 = vpop.f32.mrf.mxu0
        %v2611 = vadd.f32 0.0, %v2610
        %2612 = vmatmul.f32.gmra.mxu0 %v2492
        %v2613 = vpop.f32.mrf.mxu0
        %v2614 = vadd.f32 0.0, %v2613
        %2615 = vmatmul.f32.gmra.mxu0 %v2493
        %v2616 = vpop.f32.mrf.mxu0
        %v2617 = vadd.f32 0.0, %v2616
        %2618 = vmatmul.f32.gmra.mxu0 %v2494
        %v2619 = vpop.f32.mrf.mxu0
        %v2620 = vadd.f32 0.0, %v2619
        %2621 = vmatmul.f32.gmra.mxu0 %v2495
        %v2622 = vpop.f32.mrf.mxu0
        %v2623 = vadd.f32 0.0, %v2622
        %2624 = vmatmul.f32.gmra.mxu0 %v2496
        %v2625 = vpop.f32.mrf.mxu0
        %v2626 = vadd.f32 0.0, %v2625
        %2627 = vmatmul.f32.gmra.mxu0 %v2497
        %v2628 = vpop.f32.mrf.mxu0
        %v2629 = vadd.f32 0.0, %v2628
        %2630 = vmatmul.f32.gmra.mxu0 %v2498
        %v2631 = vpop.f32.mrf.mxu0
        %v2632 = vadd.f32 0.0, %v2631
        %2633 = vmatmul.f32.gmra.mxu0 %v2499
        %v2634 = vpop.f32.mrf.mxu0
        %v2635 = vadd.f32 0.0, %v2634
        %2636 = vmatmul.f32.gmra.mxu0 %v2500
        %v2637 = vpop.f32.mrf.mxu0
        %v2638 = vadd.f32 0.0, %v2637
        %2639 = vmatmul.f32.gmra.mxu0 %v2501
        %v2640 = vpop.f32.mrf.mxu0
        %v2641 = vadd.f32 0.0, %v2640
        %2642 = vmatmul.f32.gmra.mxu0 %v2502
        %v2643 = vpop.f32.mrf.mxu0
        %v2644 = vadd.f32 0.0, %v2643
        %2645 = vmatmul.f32.gmra.mxu0 %v2503
        %v2646 = vpop.f32.mrf.mxu0
        %v2647 = vadd.f32 0.0, %v2646
        %2648 = vmatmul.f32.gmra.mxu0 %v2504
        %v2649 = vpop.f32.mrf.mxu0
        %v2650 = vadd.f32 0.0, %v2649
        %2651 = vmatmul.f32.gmra.mxu0 %v2505
        %v2652 = vpop.f32.mrf.mxu0
        %v2653 = vadd.f32 0.0, %v2652
        %2654 = vmatmul.f32.gmra.mxu0 %v2506
        %v2655 = vpop.f32.mrf.mxu0
        %v2656 = vadd.f32 0.0, %v2655
        %2657 = vmatmul.f32.gmra.mxu0 %v2507
        %v2658 = vpop.f32.mrf.mxu0
        %v2659 = vadd.f32 0.0, %v2658
        %2660 = vmatmul.f32.gmra.mxu0 %v2508
        %v2661 = vpop.f32.mrf.mxu0
        %v2662 = vadd.f32 0.0, %v2661
        %2663 = vmatmul.f32.gmra.mxu0 %v2509
        %v2664 = vpop.f32.mrf.mxu0
        %v2665 = vadd.f32 0.0, %v2664
        %2666 = vmatmul.f32.gmra.mxu0 %v2510
        %v2667 = vpop.f32.mrf.mxu0
        %v2668 = vadd.f32 0.0, %v2667
        %2669 = vmatmul.f32.gmra.mxu0 %v2511
        %v2670 = vpop.f32.mrf.mxu0
        %v2671 = vadd.f32 0.0, %v2670
        %2672 = vmatmul.f32.gmra.mxu0 %v2512
        %v2673 = vpop.f32.mrf.mxu0
        %v2674 = vadd.f32 0.0, %v2673
        %2675 = vmatmul.f32.gmra.mxu0 %v2513
        %v2676 = vpop.f32.mrf.mxu0
        %v2677 = vadd.f32 0.0, %v2676
        %2678 = vmatmul.f32.gmra.mxu0 %v2514
        %v2679 = vpop.f32.mrf.mxu0
        %v2680 = vadd.f32 0.0, %v2679
        %2681 = vmatmul.f32.gmra.mxu0 %v2515
        %v2682 = vpop.f32.mrf.mxu0
        %v2683 = vadd.f32 0.0, %v2682
        %2684 = vmatmul.f32.gmra.mxu0 %v2516
        %v2685 = vpop.f32.mrf.mxu0
        %v2686 = vadd.f32 0.0, %v2685
        %2687 = vmatmul.f32.gmra.mxu0 %v2517
        %v2688 = vpop.f32.mrf.mxu0
        %v2689 = vadd.f32 0.0, %v2688
        %2690 = vmatmul.f32.gmra.mxu0 %v2518
        %v2691 = vpop.f32.mrf.mxu0
        %v2692 = vadd.f32 0.0, %v2691
        %2693 = vmatmul.f32.gmra.mxu0 %v2519
        %v2694 = vpop.f32.mrf.mxu0
        %v2695 = vadd.f32 0.0, %v2694
        %2696 = vmatmul.f32.gmra.mxu0 %v2520
        %v2697 = vpop.f32.mrf.mxu0
        %v2698 = vadd.f32 0.0, %v2697
        %2699 = vmatmul.f32.gmra.mxu0 %v2521
        %v2700 = vpop.f32.mrf.mxu0
        %v2701 = vadd.f32 0.0, %v2700
        %2702 = vmatmul.f32.gmra.mxu0 %v2522
        %v2703 = vpop.f32.mrf.mxu0
        %v2704 = vadd.f32 0.0, %v2703
        %2705 = vmatmul.f32.gmra.mxu0 %v2523
        %v2706 = vpop.f32.mrf.mxu0
        %v2707 = vadd.f32 0.0, %v2706
        %2708 = vmatmul.f32.gmra.mxu0 %v2524
        %v2709 = vpop.f32.mrf.mxu0
        %v2710 = vadd.f32 0.0, %v2709
        %2711 = vmatmul.f32.gmra.mxu0 %v2525
        %v2712 = vpop.f32.mrf.mxu0
        %v2713 = vadd.f32 0.0, %v2712
        %2714 = vmatmul.f32.gmra.mxu0 %v2526
        %v2715 = vpop.f32.mrf.mxu0
        %v2716 = vadd.f32 0.0, %v2715
        %2717 = vmatmul.f32.gmra.mxu0 %v2527
        %v2718 = vpop.f32.mrf.mxu0
        %v2719 = vadd.f32 0.0, %v2718
        %2720 = vmatmul.f32.gmra.mxu0 %v2528
        %v2721 = vpop.f32.mrf.mxu0
        %v2722 = vadd.f32 0.0, %v2721
        %2723 = vmatmul.f32.gmra.mxu0 %v2529
        %v2724 = vpop.f32.mrf.mxu0
        %v2725 = vadd.f32 0.0, %v2724
        %2726 = vmatmul.f32.gmra.mxu0 %v2530
        %v2727 = vpop.f32.mrf.mxu0
        %v2728 = vadd.f32 0.0, %v2727
        %2729 = vmatmul.f32.gmra.mxu0 %v2531
        %v2730 = vpop.f32.mrf.mxu0
        %v2731 = vadd.f32 0.0, %v2730
        %2732 = vmatmul.f32.gmra.mxu0 %v2532
        %v2733 = vpop.f32.mrf.mxu0
        %v2734 = vadd.f32 0.0, %v2733
        %2735 = vmatmul.f32.gmra.mxu0 %v2533
        %v2736 = vpop.f32.mrf.mxu0
        %v2737 = vadd.f32 0.0, %v2736
        %2738 = vmatmul.f32.gmra.mxu0 %v2534
        %v2739 = vpop.f32.mrf.mxu0
        %v2740 = vadd.f32 0.0, %v2739
        %2741 = vmatmul.f32.gmra.mxu0 %v2535
        %v2742 = vpop.f32.mrf.mxu0
        %v2743 = vadd.f32 0.0, %v2742
        %2744 = vdwg.mxu0
        %v2745 = vmul.f32 %v2554, 0.0625
        %v2746 = vmul.f32 %v2557, 0.0625
        %v2747 = vmul.f32 %v2560, 0.0625
        %v2748 = vmul.f32 %v2563, 0.0625
        %v2749 = vmul.f32 %v2566, 0.0625
        %v2750 = vmul.f32 %v2569, 0.0625
        %v2751 = vmul.f32 %v2572, 0.0625
        %v2752 = vmul.f32 %v2575, 0.0625
        %v2753 = vmul.f32 %v2578, 0.0625
        %v2754 = vmul.f32 %v2581, 0.0625
        %v2755 = vmul.f32 %v2584, 0.0625
        %v2756 = vmul.f32 %v2587, 0.0625
        %v2757 = vmul.f32 %v2590, 0.0625
        %v2758 = vmul.f32 %v2593, 0.0625
        %v2759 = vmul.f32 %v2596, 0.0625
        %v2760 = vmul.f32 %v2599, 0.0625
        %v2761 = vmul.f32 %v2602, 0.0625
        %v2762 = vmul.f32 %v2605, 0.0625
        %v2763 = vmul.f32 %v2608, 0.0625
        %v2764 = vmul.f32 %v2611, 0.0625
        %v2765 = vmul.f32 %v2614, 0.0625
        %v2766 = vmul.f32 %v2617, 0.0625
        %v2767 = vmul.f32 %v2620, 0.0625
        %v2768 = vmul.f32 %v2623, 0.0625
        %v2769 = vmul.f32 %v2626, 0.0625
        %v2770 = vmul.f32 %v2629, 0.0625
        %v2771 = vmul.f32 %v2632, 0.0625
        %v2772 = vmul.f32 %v2635, 0.0625
        %v2773 = vmul.f32 %v2638, 0.0625
        %v2774 = vmul.f32 %v2641, 0.0625
        %v2775 = vmul.f32 %v2644, 0.0625
        %v2776 = vmul.f32 %v2647, 0.0625
        %v2777 = vmul.f32 %v2650, 0.0625
        %v2778 = vmul.f32 %v2653, 0.0625
        %v2779 = vmul.f32 %v2656, 0.0625
        %v2780 = vmul.f32 %v2659, 0.0625
        %v2781 = vmul.f32 %v2662, 0.0625
        %v2782 = vmul.f32 %v2665, 0.0625
        %v2783 = vmul.f32 %v2668, 0.0625
        %v2784 = vmul.f32 %v2671, 0.0625
        %v2785 = vmul.f32 %v2674, 0.0625
        %v2786 = vmul.f32 %v2677, 0.0625
        %v2787 = vmul.f32 %v2680, 0.0625
        %v2788 = vmul.f32 %v2683, 0.0625
        %v2789 = vmul.f32 %v2686, 0.0625
        %v2790 = vmul.f32 %v2689, 0.0625
        %v2791 = vmul.f32 %v2692, 0.0625
        %v2792 = vmul.f32 %v2695, 0.0625
        %v2793 = vmul.f32 %v2698, 0.0625
        %v2794 = vmul.f32 %v2701, 0.0625
        %v2795 = vmul.f32 %v2704, 0.0625
        %v2796 = vmul.f32 %v2707, 0.0625
        %v2797 = vmul.f32 %v2710, 0.0625
        %v2798 = vmul.f32 %v2713, 0.0625
        %v2799 = vmul.f32 %v2716, 0.0625
        %v2800 = vmul.f32 %v2719, 0.0625
        %v2801 = vmul.f32 %v2722, 0.0625
        %v2802 = vmul.f32 %v2725, 0.0625
        %v2803 = vmul.f32 %v2728, 0.0625
        %v2804 = vmul.f32 %v2731, 0.0625
        %v2805 = vmul.f32 %v2734, 0.0625
        %v2806 = vmul.f32 %v2737, 0.0625
        %v2807 = vmul.f32 %v2740, 0.0625
        %v2808 = vmul.f32 %v2743, 0.0625
        %v2809 = vsub.f32 %v2472, %v2745
        %v2810 = vsub.f32 %v2473, %v2746
        %v2811 = vsub.f32 %v2474, %v2747
        %v2812 = vsub.f32 %v2475, %v2748
        %v2813 = vsub.f32 %v2476, %v2749
        %v2814 = vsub.f32 %v2477, %v2750
        %v2815 = vsub.f32 %v2478, %v2751
        %v2816 = vsub.f32 %v2479, %v2752
        %v2817 = vsub.f32 %v2480, %v2753
        %v2818 = vsub.f32 %v2481, %v2754
        %v2819 = vsub.f32 %v2482, %v2755
        %v2820 = vsub.f32 %v2483, %v2756
        %v2821 = vsub.f32 %v2484, %v2757
        %v2822 = vsub.f32 %v2485, %v2758
        %v2823 = vsub.f32 %v2486, %v2759
        %v2824 = vsub.f32 %v2487, %v2760
        %v2825 = vsub.f32 %v2488, %v2761
        %v2826 = vsub.f32 %v2489, %v2762
        %v2827 = vsub.f32 %v2490, %v2763
        %v2828 = vsub.f32 %v2491, %v2764
        %v2829 = vsub.f32 %v2492, %v2765
        %v2830 = vsub.f32 %v2493, %v2766
        %v2831 = vsub.f32 %v2494, %v2767
        %v2832 = vsub.f32 %v2495, %v2768
        %v2833 = vsub.f32 %v2496, %v2769
        %v2834 = vsub.f32 %v2497, %v2770
        %v2835 = vsub.f32 %v2498, %v2771
        %v2836 = vsub.f32 %v2499, %v2772
        %v2837 = vsub.f32 %v2500, %v2773
        %v2838 = vsub.f32 %v2501, %v2774
        %v2839 = vsub.f32 %v2502, %v2775
        %v2840 = vsub.f32 %v2503, %v2776
        %v2841 = vsub.f32 %v2504, %v2777
        %v2842 = vsub.f32 %v2505, %v2778
        %v2843 = vsub.f32 %v2506, %v2779
        %v2844 = vsub.f32 %v2507, %v2780
        %v2845 = vsub.f32 %v2508, %v2781
        %v2846 = vsub.f32 %v2509, %v2782
        %v2847 = vsub.f32 %v2510, %v2783
        %v2848 = vsub.f32 %v2511, %v2784
        %v2849 = vsub.f32 %v2512, %v2785
        %v2850 = vsub.f32 %v2513, %v2786
        %v2851 = vsub.f32 %v2514, %v2787
        %v2852 = vsub.f32 %v2515, %v2788
        %v2853 = vsub.f32 %v2516, %v2789
        %v2854 = vsub.f32 %v2517, %v2790
        %v2855 = vsub.f32 %v2518, %v2791
        %v2856 = vsub.f32 %v2519, %v2792
        %v2857 = vsub.f32 %v2520, %v2793
        %v2858 = vsub.f32 %v2521, %v2794
        %v2859 = vsub.f32 %v2522, %v2795
        %v2860 = vsub.f32 %v2523, %v2796
        %v2861 = vsub.f32 %v2524, %v2797
        %v2862 = vsub.f32 %v2525, %v2798
        %v2863 = vsub.f32 %v2526, %v2799
        %v2864 = vsub.f32 %v2527, %v2800
        %v2865 = vsub.f32 %v2528, %v2801
        %v2866 = vsub.f32 %v2529, %v2802
        %v2867 = vsub.f32 %v2530, %v2803
        %v2868 = vsub.f32 %v2531, %v2804
        %v2869 = vsub.f32 %v2532, %v2805
        %v2870 = vsub.f32 %v2533, %v2806
        %v2871 = vsub.f32 %v2534, %v2807
        %v2872 = vsub.f32 %v2535, %v2808
        %v2873 = vmul.f32 %v2809, 1.442695
        %v2874 = vpow.pop %v2873
        %v2875 = vmul.f32 %v2810, 1.442695
        %v2876 = vpow.pop %v2875
        %v2877 = vmul.f32 %v2811, 1.442695
        %v2878 = vpow.pop %v2877
        %v2879 = vmul.f32 %v2812, 1.442695
        %v2880 = vpow.pop %v2879
        %v2881 = vmul.f32 %v2813, 1.442695
        %v2882 = vpow.pop %v2881
        %v2883 = vmul.f32 %v2814, 1.442695
        %v2884 = vpow.pop %v2883
        %v2885 = vmul.f32 %v2815, 1.442695
        %v2886 = vpow.pop %v2885
        %v2887 = vmul.f32 %v2816, 1.442695
        %v2888 = vpow.pop %v2887
        %v2889 = vmul.f32 %v2817, 1.442695
        %v2890 = vpow.pop %v2889
        %v2891 = vmul.f32 %v2818, 1.442695
        %v2892 = vpow.pop %v2891
        %v2893 = vmul.f32 %v2819, 1.442695
        %v2894 = vpow.pop %v2893
        %v2895 = vmul.f32 %v2820, 1.442695
        %v2896 = vpow.pop %v2895
        %v2897 = vmul.f32 %v2821, 1.442695
        %v2898 = vpow.pop %v2897
        %v2899 = vmul.f32 %v2822, 1.442695
        %v2900 = vpow.pop %v2899
        %v2901 = vmul.f32 %v2823, 1.442695
        %v2902 = vpow.pop %v2901
        %v2903 = vmul.f32 %v2824, 1.442695
        %v2904 = vpow.pop %v2903
        %v2905 = vmul.f32 %v2825, 1.442695
        %v2906 = vpow.pop %v2905
        %v2907 = vmul.f32 %v2826, 1.442695
        %v2908 = vpow.pop %v2907
        %v2909 = vmul.f32 %v2827, 1.442695
        %v2910 = vpow.pop %v2909
        %v2911 = vmul.f32 %v2828, 1.442695
        %v2912 = vpow.pop %v2911
        %v2913 = vmul.f32 %v2829, 1.442695
        %v2914 = vpow.pop %v2913
        %v2915 = vmul.f32 %v2830, 1.442695
        %v2916 = vpow.pop %v2915
        %v2917 = vmul.f32 %v2831, 1.442695
        %v2918 = vpow.pop %v2917
        %v2919 = vmul.f32 %v2832, 1.442695
        %v2920 = vpow.pop %v2919
        %v2921 = vmul.f32 %v2833, 1.442695
        %v2922 = vpow.pop %v2921
        %v2923 = vmul.f32 %v2834, 1.442695
        %v2924 = vpow.pop %v2923
        %v2925 = vmul.f32 %v2835, 1.442695
        %v2926 = vpow.pop %v2925
        %v2927 = vmul.f32 %v2836, 1.442695
        %v2928 = vpow.pop %v2927
        %v2929 = vmul.f32 %v2837, 1.442695
        %v2930 = vpow.pop %v2929
        %v2931 = vmul.f32 %v2838, 1.442695
        %v2932 = vpow.pop %v2931
        %v2933 = vmul.f32 %v2839, 1.442695
        %v2934 = vpow.pop %v2933
        %v2935 = vmul.f32 %v2840, 1.442695
        %v2936 = vpow.pop %v2935
        %v2937 = vmul.f32 %v2841, 1.442695
        %v2938 = vpow.pop %v2937
        %v2939 = vmul.f32 %v2842, 1.442695
        %v2940 = vpow.pop %v2939
        %v2941 = vmul.f32 %v2843, 1.442695
        %v2942 = vpow.pop %v2941
        %v2943 = vmul.f32 %v2844, 1.442695
        %v2944 = vpow.pop %v2943
        %v2945 = vmul.f32 %v2845, 1.442695
        %v2946 = vpow.pop %v2945
        %v2947 = vmul.f32 %v2846, 1.442695
        %v2948 = vpow.pop %v2947
        %v2949 = vmul.f32 %v2847, 1.442695
        %v2950 = vpow.pop %v2949
        %v2951 = vmul.f32 %v2848, 1.442695
        %v2952 = vpow.pop %v2951
        %v2953 = vmul.f32 %v2849, 1.442695
        %v2954 = vpow.pop %v2953
        %v2955 = vmul.f32 %v2850, 1.442695
        %v2956 = vpow.pop %v2955
        %v2957 = vmul.f32 %v2851, 1.442695
        %v2958 = vpow.pop %v2957
        %v2959 = vmul.f32 %v2852, 1.442695
        %v2960 = vpow.pop %v2959
        %v2961 = vmul.f32 %v2853, 1.442695
        %v2962 = vpow.pop %v2961
        %v2963 = vmul.f32 %v2854, 1.442695
        %v2964 = vpow.pop %v2963
        %v2965 = vmul.f32 %v2855, 1.442695
        %v2966 = vpow.pop %v2965
        %v2967 = vmul.f32 %v2856, 1.442695
        %v2968 = vpow.pop %v2967
        %v2969 = vmul.f32 %v2857, 1.442695
        %v2970 = vpow.pop %v2969
        %v2971 = vmul.f32 %v2858, 1.442695
        %v2972 = vpow.pop %v2971
        %v2973 = vmul.f32 %v2859, 1.442695
        %v2974 = vpow.pop %v2973
        %v2975 = vmul.f32 %v2860, 1.442695
        %v2976 = vpow.pop %v2975
        %v2977 = vmul.f32 %v2861, 1.442695
        %v2978 = vpow.pop %v2977
        %v2979 = vmul.f32 %v2862, 1.442695
        %v2980 = vpow.pop %v2979
        %v2981 = vmul.f32 %v2863, 1.442695
        %v2982 = vpow.pop %v2981
        %v2983 = vmul.f32 %v2864, 1.442695
        %v2984 = vpow.pop %v2983
        %v2985 = vmul.f32 %v2865, 1.442695
        %v2986 = vpow.pop %v2985
        %v2987 = vmul.f32 %v2866, 1.442695
        %v2988 = vpow.pop %v2987
        %v2989 = vmul.f32 %v2867, 1.442695
        %v2990 = vpow.pop %v2989
        %v2991 = vmul.f32 %v2868, 1.442695
        %v2992 = vpow.pop %v2991
        %v2993 = vmul.f32 %v2869, 1.442695
        %v2994 = vpow.pop %v2993
        %v2995 = vmul.f32 %v2870, 1.442695
        %v2996 = vpow.pop %v2995
        %v2997 = vmul.f32 %v2871, 1.442695
        %v2998 = vpow.pop %v2997
        %v2999 = vmul.f32 %v2872, 1.442695
        %v3000 = vpow.pop %v2999
        %3001 = vmatpush.msra.mxu0 %v1117
        %3002 = vmatpush.msra.mxu0 %v1116
        %3003 = vmatpush.msra.mxu0 %v1115
        %3004 = vmatpush.msra.mxu0 %v1114
        %3005 = vmatpush.msra.mxu0 %v1113
        %3006 = vmatpush.msra.mxu0 %v1112
        %3007 = vmatpush.msra.mxu0 %v1111
        %3008 = vmatpush.msra.mxu0 %v1110
        %3009 = vmatpush.msra.mxu0 %v1109
        %3010 = vmatpush.msra.mxu0 %v1108
        %3011 = vmatpush.msra.mxu0 %v1107
        %3012 = vmatpush.msra.mxu0 %v1106
        %3013 = vmatpush.msra.mxu0 %v1105
        %3014 = vmatpush.msra.mxu0 %v1104
        %3015 = vmatpush.msra.mxu0 %v1103
        %3016 = vmatpush.msra.mxu0 %v1102
        %3017 = vmatmul.f32.gmra.mxu0 %v2874
        %v3018 = vpop.f32.mrf.mxu0
        %v3019 = vadd.f32 0.0, %v3018
        %3020 = vmatmul.f32.gmra.mxu0 %v2876
        %v3021 = vpop.f32.mrf.mxu0
        %v3022 = vadd.f32 0.0, %v3021
        %3023 = vmatmul.f32.gmra.mxu0 %v2878
        %v3024 = vpop.f32.mrf.mxu0
        %v3025 = vadd.f32 0.0, %v3024
        %3026 = vmatmul.f32.gmra.mxu0 %v2880
        %v3027 = vpop.f32.mrf.mxu0
        %v3028 = vadd.f32 0.0, %v3027
        %3029 = vmatmul.f32.gmra.mxu0 %v2882
        %v3030 = vpop.f32.mrf.mxu0
        %v3031 = vadd.f32 0.0, %v3030
        %3032 = vmatmul.f32.gmra.mxu0 %v2884
        %v3033 = vpop.f32.mrf.mxu0
        %v3034 = vadd.f32 0.0, %v3033
        %3035 = vmatmul.f32.gmra.mxu0 %v2886
        %v3036 = vpop.f32.mrf.mxu0
        %v3037 = vadd.f32 0.0, %v3036
        %3038 = vmatmul.f32.gmra.mxu0 %v2888
        %v3039 = vpop.f32.mrf.mxu0
        %v3040 = vadd.f32 0.0, %v3039
        %3041 = vmatmul.f32.gmra.mxu0 %v2890
        %v3042 = vpop.f32.mrf.mxu0
        %v3043 = vadd.f32 0.0, %v3042
        %3044 = vmatmul.f32.gmra.mxu0 %v2892
        %v3045 = vpop.f32.mrf.mxu0
        %v3046 = vadd.f32 0.0, %v3045
        %3047 = vmatmul.f32.gmra.mxu0 %v2894
        %v3048 = vpop.f32.mrf.mxu0
        %v3049 = vadd.f32 0.0, %v3048
        %3050 = vmatmul.f32.gmra.mxu0 %v2896
        %v3051 = vpop.f32.mrf.mxu0
        %v3052 = vadd.f32 0.0, %v3051
        %3053 = vmatmul.f32.gmra.mxu0 %v2898
        %v3054 = vpop.f32.mrf.mxu0
        %v3055 = vadd.f32 0.0, %v3054
        %3056 = vmatmul.f32.gmra.mxu0 %v2900
        %v3057 = vpop.f32.mrf.mxu0
        %v3058 = vadd.f32 0.0, %v3057
        %3059 = vmatmul.f32.gmra.mxu0 %v2902
        %v3060 = vpop.f32.mrf.mxu0
        %v3061 = vadd.f32 0.0, %v3060
        %3062 = vmatmul.f32.gmra.mxu0 %v2904
        %v3063 = vpop.f32.mrf.mxu0
        %v3064 = vadd.f32 0.0, %v3063
        %3065 = vmatmul.f32.gmra.mxu0 %v2906
        %v3066 = vpop.f32.mrf.mxu0
        %v3067 = vadd.f32 0.0, %v3066
        %3068 = vmatmul.f32.gmra.mxu0 %v2908
        %v3069 = vpop.f32.mrf.mxu0
        %v3070 = vadd.f32 0.0, %v3069
        %3071 = vmatmul.f32.gmra.mxu0 %v2910
        %v3072 = vpop.f32.mrf.mxu0
        %v3073 = vadd.f32 0.0, %v3072
        %3074 = vmatmul.f32.gmra.mxu0 %v2912
        %v3075 = vpop.f32.mrf.mxu0
        %v3076 = vadd.f32 0.0, %v3075
        %3077 = vmatmul.f32.gmra.mxu0 %v2914
        %v3078 = vpop.f32.mrf.mxu0
        %v3079 = vadd.f32 0.0, %v3078
        %3080 = vmatmul.f32.gmra.mxu0 %v2916
        %v3081 = vpop.f32.mrf.mxu0
        %v3082 = vadd.f32 0.0, %v3081
        %3083 = vmatmul.f32.gmra.mxu0 %v2918
        %v3084 = vpop.f32.mrf.mxu0
        %v3085 = vadd.f32 0.0, %v3084
        %3086 = vmatmul.f32.gmra.mxu0 %v2920
        %v3087 = vpop.f32.mrf.mxu0
        %v3088 = vadd.f32 0.0, %v3087
        %3089 = vmatmul.f32.gmra.mxu0 %v2922
        %v3090 = vpop.f32.mrf.mxu0
        %v3091 = vadd.f32 0.0, %v3090
        %3092 = vmatmul.f32.gmra.mxu0 %v2924
        %v3093 = vpop.f32.mrf.mxu0
        %v3094 = vadd.f32 0.0, %v3093
        %3095 = vmatmul.f32.gmra.mxu0 %v2926
        %v3096 = vpop.f32.mrf.mxu0
        %v3097 = vadd.f32 0.0, %v3096
        %3098 = vmatmul.f32.gmra.mxu0 %v2928
        %v3099 = vpop.f32.mrf.mxu0
        %v3100 = vadd.f32 0.0, %v3099
        %3101 = vmatmul.f32.gmra.mxu0 %v2930
        %v3102 = vpop.f32.mrf.mxu0
        %v3103 = vadd.f32 0.0, %v3102
        %3104 = vmatmul.f32.gmra.mxu0 %v2932
        %v3105 = vpop.f32.mrf.mxu0
        %v3106 = vadd.f32 0.0, %v3105
        %3107 = vmatmul.f32.gmra.mxu0 %v2934
        %v3108 = vpop.f32.mrf.mxu0
        %v3109 = vadd.f32 0.0, %v3108
        %3110 = vmatmul.f32.gmra.mxu0 %v2936
        %v3111 = vpop.f32.mrf.mxu0
        %v3112 = vadd.f32 0.0, %v3111
        %3113 = vmatmul.f32.gmra.mxu0 %v2938
        %v3114 = vpop.f32.mrf.mxu0
        %v3115 = vadd.f32 0.0, %v3114
        %3116 = vmatmul.f32.gmra.mxu0 %v2940
        %v3117 = vpop.f32.mrf.mxu0
        %v3118 = vadd.f32 0.0, %v3117
        %3119 = vmatmul.f32.gmra.mxu0 %v2942
        %v3120 = vpop.f32.mrf.mxu0
        %v3121 = vadd.f32 0.0, %v3120
        %3122 = vmatmul.f32.gmra.mxu0 %v2944
        %v3123 = vpop.f32.mrf.mxu0
        %v3124 = vadd.f32 0.0, %v3123
        %3125 = vmatmul.f32.gmra.mxu0 %v2946
        %v3126 = vpop.f32.mrf.mxu0
        %v3127 = vadd.f32 0.0, %v3126
        %3128 = vmatmul.f32.gmra.mxu0 %v2948
        %v3129 = vpop.f32.mrf.mxu0
        %v3130 = vadd.f32 0.0, %v3129
        %3131 = vmatmul.f32.gmra.mxu0 %v2950
        %v3132 = vpop.f32.mrf.mxu0
        %v3133 = vadd.f32 0.0, %v3132
        %3134 = vmatmul.f32.gmra.mxu0 %v2952
        %v3135 = vpop.f32.mrf.mxu0
        %v3136 = vadd.f32 0.0, %v3135
        %3137 = vmatmul.f32.gmra.mxu0 %v2954
        %v3138 = vpop.f32.mrf.mxu0
        %v3139 = vadd.f32 0.0, %v3138
        %3140 = vmatmul.f32.gmra.mxu0 %v2956
        %v3141 = vpop.f32.mrf.mxu0
        %v3142 = vadd.f32 0.0, %v3141
        %3143 = vmatmul.f32.gmra.mxu0 %v2958
        %v3144 = vpop.f32.mrf.mxu0
        %v3145 = vadd.f32 0.0, %v3144
        %3146 = vmatmul.f32.gmra.mxu0 %v2960
        %v3147 = vpop.f32.mrf.mxu0
        %v3148 = vadd.f32 0.0, %v3147
        %3149 = vmatmul.f32.gmra.mxu0 %v2962
        %v3150 = vpop.f32.mrf.mxu0
        %v3151 = vadd.f32 0.0, %v3150
        %3152 = vmatmul.f32.gmra.mxu0 %v2964
        %v3153 = vpop.f32.mrf.mxu0
        %v3154 = vadd.f32 0.0, %v3153
        %3155 = vmatmul.f32.gmra.mxu0 %v2966
        %v3156 = vpop.f32.mrf.mxu0
        %v3157 = vadd.f32 0.0, %v3156
        %3158 = vmatmul.f32.gmra.mxu0 %v2968
        %v3159 = vpop.f32.mrf.mxu0
        %v3160 = vadd.f32 0.0, %v3159
        %3161 = vmatmul.f32.gmra.mxu0 %v2970
        %v3162 = vpop.f32.mrf.mxu0
        %v3163 = vadd.f32 0.0, %v3162
        %3164 = vmatmul.f32.gmra.mxu0 %v2972
        %v3165 = vpop.f32.mrf.mxu0
        %v3166 = vadd.f32 0.0, %v3165
        %3167 = vmatmul.f32.gmra.mxu0 %v2974
        %v3168 = vpop.f32.mrf.mxu0
        %v3169 = vadd.f32 0.0, %v3168
        %3170 = vmatmul.f32.gmra.mxu0 %v2976
        %v3171 = vpop.f32.mrf.mxu0
        %v3172 = vadd.f32 0.0, %v3171
        %3173 = vmatmul.f32.gmra.mxu0 %v2978
        %v3174 = vpop.f32.mrf.mxu0
        %v3175 = vadd.f32 0.0, %v3174
        %3176 = vmatmul.f32.gmra.mxu0 %v2980
        %v3177 = vpop.f32.mrf.mxu0
        %v3178 = vadd.f32 0.0, %v3177
        %3179 = vmatmul.f32.gmra.mxu0 %v2982
        %v3180 = vpop.f32.mrf.mxu0
        %v3181 = vadd.f32 0.0, %v3180
        %3182 = vmatmul.f32.gmra.mxu0 %v2984
        %v3183 = vpop.f32.mrf.mxu0
        %v3184 = vadd.f32 0.0, %v3183
        %3185 = vmatmul.f32.gmra.mxu0 %v2986
        %v3186 = vpop.f32.mrf.mxu0
        %v3187 = vadd.f32 0.0, %v3186
        %3188 = vmatmul.f32.gmra.mxu0 %v2988
        %v3189 = vpop.f32.mrf.mxu0
        %v3190 = vadd.f32 0.0, %v3189
        %3191 = vmatmul.f32.gmra.mxu0 %v2990
        %v3192 = vpop.f32.mrf.mxu0
        %v3193 = vadd.f32 0.0, %v3192
        %3194 = vmatmul.f32.gmra.mxu0 %v2992
        %v3195 = vpop.f32.mrf.mxu0
        %v3196 = vadd.f32 0.0, %v3195
        %3197 = vmatmul.f32.gmra.mxu0 %v2994
        %v3198 = vpop.f32.mrf.mxu0
        %v3199 = vadd.f32 0.0, %v3198
        %3200 = vmatmul.f32.gmra.mxu0 %v2996
        %v3201 = vpop.f32.mrf.mxu0
        %v3202 = vadd.f32 0.0, %v3201
        %3203 = vmatmul.f32.gmra.mxu0 %v2998
        %v3204 = vpop.f32.mrf.mxu0
        %v3205 = vadd.f32 0.0, %v3204
        %3206 = vmatmul.f32.gmra.mxu0 %v3000
        %v3207 = vpop.f32.mrf.mxu0
        %v3208 = vadd.f32 0.0, %v3207
        %3209 = vdwg.mxu0
        %v3210 = vrcp.pop %v3019
        %v3211 = vrcp.pop %v3022
        %v3212 = vrcp.pop %v3025
        %v3213 = vrcp.pop %v3028
        %v3214 = vrcp.pop %v3031
        %v3215 = vrcp.pop %v3034
        %v3216 = vrcp.pop %v3037
        %v3217 = vrcp.pop %v3040
        %v3218 = vrcp.pop %v3043
        %v3219 = vrcp.pop %v3046
        %v3220 = vrcp.pop %v3049
        %v3221 = vrcp.pop %v3052
        %v3222 = vrcp.pop %v3055
        %v3223 = vrcp.pop %v3058
        %v3224 = vrcp.pop %v3061
        %v3225 = vrcp.pop %v3064
        %v3226 = vrcp.pop %v3067
        %v3227 = vrcp.pop %v3070
        %v3228 = vrcp.pop %v3073
        %v3229 = vrcp.pop %v3076
        %v3230 = vrcp.pop %v3079
        %v3231 = vrcp.pop %v3082
        %v3232 = vrcp.pop %v3085
        %v3233 = vrcp.pop %v3088
        %v3234 = vrcp.pop %v3091
        %v3235 = vrcp.pop %v3094
        %v3236 = vrcp.pop %v3097
        %v3237 = vrcp.pop %v3100
        %v3238 = vrcp.pop %v3103
        %v3239 = vrcp.pop %v3106
        %v3240 = vrcp.pop %v3109
        %v3241 = vrcp.pop %v3112
        %v3242 = vrcp.pop %v3115
        %v3243 = vrcp.pop %v3118
        %v3244 = vrcp.pop %v3121
        %v3245 = vrcp.pop %v3124
        %v3246 = vrcp.pop %v3127
        %v3247 = vrcp.pop %v3130
        %v3248 = vrcp.pop %v3133
        %v3249 = vrcp.pop %v3136
        %v3250 = vrcp.pop %v3139
        %v3251 = vrcp.pop %v3142
        %v3252 = vrcp.pop %v3145
        %v3253 = vrcp.pop %v3148
        %v3254 = vrcp.pop %v3151
        %v3255 = vrcp.pop %v3154
        %v3256 = vrcp.pop %v3157
        %v3257 = vrcp.pop %v3160
        %v3258 = vrcp.pop %v3163
        %v3259 = vrcp.pop %v3166
        %v3260 = vrcp.pop %v3169
        %v3261 = vrcp.pop %v3172
        %v3262 = vrcp.pop %v3175
        %v3263 = vrcp.pop %v3178
        %v3264 = vrcp.pop %v3181
        %v3265 = vrcp.pop %v3184
        %v3266 = vrcp.pop %v3187
        %v3267 = vrcp.pop %v3190
        %v3268 = vrcp.pop %v3193
        %v3269 = vrcp.pop %v3196
        %v3270 = vrcp.pop %v3199
        %v3271 = vrcp.pop %v3202
        %v3272 = vrcp.pop %v3205
        %v3273 = vrcp.pop %v3208
        %v3274 = vmul.f32 %v2874, %v3210
        %v3275 = vmul.f32 %v2876, %v3211
        %v3276 = vmul.f32 %v2878, %v3212
        %v3277 = vmul.f32 %v2880, %v3213
        %v3278 = vmul.f32 %v2882, %v3214
        %v3279 = vmul.f32 %v2884, %v3215
        %v3280 = vmul.f32 %v2886, %v3216
        %v3281 = vmul.f32 %v2888, %v3217
        %v3282 = vmul.f32 %v2890, %v3218
        %v3283 = vmul.f32 %v2892, %v3219
        %v3284 = vmul.f32 %v2894, %v3220
        %v3285 = vmul.f32 %v2896, %v3221
        %v3286 = vmul.f32 %v2898, %v3222
        %v3287 = vmul.f32 %v2900, %v3223
        %v3288 = vmul.f32 %v2902, %v3224
        %v3289 = vmul.f32 %v2904, %v3225
        %v3290 = vmul.f32 %v2906, %v3226
        %v3291 = vmul.f32 %v2908, %v3227
        %v3292 = vmul.f32 %v2910, %v3228
        %v3293 = vmul.f32 %v2912, %v3229
        %v3294 = vmul.f32 %v2914, %v3230
        %v3295 = vmul.f32 %v2916, %v3231
        %v3296 = vmul.f32 %v2918, %v3232
        %v3297 = vmul.f32 %v2920, %v3233
        %v3298 = vmul.f32 %v2922, %v3234
        %v3299 = vmul.f32 %v2924, %v3235
        %v3300 = vmul.f32 %v2926, %v3236
        %v3301 = vmul.f32 %v2928, %v3237
        %v3302 = vmul.f32 %v2930, %v3238
        %v3303 = vmul.f32 %v2932, %v3239
        %v3304 = vmul.f32 %v2934, %v3240
        %v3305 = vmul.f32 %v2936, %v3241
        %v3306 = vmul.f32 %v2938, %v3242
        %v3307 = vmul.f32 %v2940, %v3243
        %v3308 = vmul.f32 %v2942, %v3244
        %v3309 = vmul.f32 %v2944, %v3245
        %v3310 = vmul.f32 %v2946, %v3246
        %v3311 = vmul.f32 %v2948, %v3247
        %v3312 = vmul.f32 %v2950, %v3248
        %v3313 = vmul.f32 %v2952, %v3249
        %v3314 = vmul.f32 %v2954, %v3250
        %v3315 = vmul.f32 %v2956, %v3251
        %v3316 = vmul.f32 %v2958, %v3252
        %v3317 = vmul.f32 %v2960, %v3253
        %v3318 = vmul.f32 %v2962, %v3254
        %v3319 = vmul.f32 %v2964, %v3255
        %v3320 = vmul.f32 %v2966, %v3256
        %v3321 = vmul.f32 %v2968, %v3257
        %v3322 = vmul.f32 %v2970, %v3258
        %v3323 = vmul.f32 %v2972, %v3259
        %v3324 = vmul.f32 %v2974, %v3260
        %v3325 = vmul.f32 %v2976, %v3261
        %v3326 = vmul.f32 %v2978, %v3262
        %v3327 = vmul.f32 %v2980, %v3263
        %v3328 = vmul.f32 %v2982, %v3264
        %v3329 = vmul.f32 %v2984, %v3265
        %v3330 = vmul.f32 %v2986, %v3266
        %v3331 = vmul.f32 %v2988, %v3267
        %v3332 = vmul.f32 %v2990, %v3268
        %v3333 = vmul.f32 %v2992, %v3269
        %v3334 = vmul.f32 %v2994, %v3270
        %v3335 = vmul.f32 %v2996, %v3271
        %v3336 = vmul.f32 %v2998, %v3272
        %v3337 = vmul.f32 %v3000, %v3273
        %v3338 = vmul.f32 %v2341, %v3274
        %v3339 = vmul.f32 %v2342, %v3275
        %v3340 = vmul.f32 %v2343, %v3276
        %v3341 = vmul.f32 %v2344, %v3277
        %v3342 = vmul.f32 %v2345, %v3278
        %v3343 = vmul.f32 %v2346, %v3279
        %v3344 = vmul.f32 %v2347, %v3280
        %v3345 = vmul.f32 %v2348, %v3281
        %v3346 = vmul.f32 %v2349, %v3282
        %v3347 = vmul.f32 %v2350, %v3283
        %v3348 = vmul.f32 %v2351, %v3284
        %v3349 = vmul.f32 %v2352, %v3285
        %v3350 = vmul.f32 %v2353, %v3286
        %v3351 = vmul.f32 %v2354, %v3287
        %v3352 = vmul.f32 %v2355, %v3288
        %v3353 = vmul.f32 %v2356, %v3289
        %v3354 = vmul.f32 %v2357, %v3290
        %v3355 = vmul.f32 %v2358, %v3291
        %v3356 = vmul.f32 %v2359, %v3292
        %v3357 = vmul.f32 %v2360, %v3293
        %v3358 = vmul.f32 %v2361, %v3294
        %v3359 = vmul.f32 %v2362, %v3295
        %v3360 = vmul.f32 %v2363, %v3296
        %v3361 = vmul.f32 %v2364, %v3297
        %v3362 = vmul.f32 %v2365, %v3298
        %v3363 = vmul.f32 %v2366, %v3299
        %v3364 = vmul.f32 %v2367, %v3300
        %v3365 = vmul.f32 %v2368, %v3301
        %v3366 = vmul.f32 %v2369, %v3302
        %v3367 = vmul.f32 %v2370, %v3303
        %v3368 = vmul.f32 %v2371, %v3304
        %v3369 = vmul.f32 %v2372, %v3305
        %v3370 = vmul.f32 %v2373, %v3306
        %v3371 = vmul.f32 %v2374, %v3307
        %v3372 = vmul.f32 %v2375, %v3308
        %v3373 = vmul.f32 %v2376, %v3309
        %v3374 = vmul.f32 %v2377, %v3310
        %v3375 = vmul.f32 %v2378, %v3311
        %v3376 = vmul.f32 %v2379, %v3312
        %v3377 = vmul.f32 %v2380, %v3313
        %v3378 = vmul.f32 %v2381, %v3314
        %v3379 = vmul.f32 %v2382, %v3315
        %v3380 = vmul.f32 %v2383, %v3316
        %v3381 = vmul.f32 %v2384, %v3317
        %v3382 = vmul.f32 %v2385, %v3318
        %v3383 = vmul.f32 %v2386, %v3319
        %v3384 = vmul.f32 %v2387, %v3320
        %v3385 = vmul.f32 %v2388, %v3321
        %v3386 = vmul.f32 %v2389, %v3322
        %v3387 = vmul.f32 %v2390, %v3323
        %v3388 = vmul.f32 %v2391, %v3324
        %v3389 = vmul.f32 %v2392, %v3325
        %v3390 = vmul.f32 %v2393, %v3326
        %v3391 = vmul.f32 %v2394, %v3327
        %v3392 = vmul.f32 %v2395, %v3328
        %v3393 = vmul.f32 %v2396, %v3329
        %v3394 = vmul.f32 %v2397, %v3330
        %v3395 = vmul.f32 %v2398, %v3331
        %v3396 = vmul.f32 %v2399, %v3332
        %v3397 = vmul.f32 %v2400, %v3333
        %v3398 = vmul.f32 %v2401, %v3334
        %v3399 = vmul.f32 %v2402, %v3335
        %v3400 = vmul.f32 %v2403, %v3336
        %v3401 = vmul.f32 %v2404, %v3337
        %v3402 = vadd.f32 %v3338, %v3339
        %v3403 = vrot.slane %v3402, 4
        %v3404 = vadd.f32 %v3402, %v3403
        %v3405 = vrot.slane %v3404, 2
        %v3406 = vadd.f32 %v3404, %v3405
        %v3407 = vrot.slane %v3406, 1
        %v3408 = vadd.f32 %v3406, %v3407
        %v3409 = vadd.f32 %v3340, %v3341
        %v3410 = vrot.slane %v3409, 4
        %v3411 = vadd.f32 %v3409, %v3410
        %v3412 = vrot.slane %v3411, 2
        %v3413 = vadd.f32 %v3411, %v3412
        %v3414 = vrot.slane %v3413, 1
        %v3415 = vadd.f32 %v3413, %v3414
        %v3416 = vadd.f32 %v3342, %v3343
        %v3417 = vrot.slane %v3416, 4
        %v3418 = vadd.f32 %v3416, %v3417
        %v3419 = vrot.slane %v3418, 2
        %v3420 = vadd.f32 %v3418, %v3419
        %v3421 = vrot.slane %v3420, 1
        %v3422 = vadd.f32 %v3420, %v3421
        %v3423 = vadd.f32 %v3344, %v3345
        %v3424 = vrot.slane %v3423, 4
        %v3425 = vadd.f32 %v3423, %v3424
        %v3426 = vrot.slane %v3425, 2
        %v3427 = vadd.f32 %v3425, %v3426
        %v3428 = vrot.slane %v3427, 1
        %v3429 = vadd.f32 %v3427, %v3428
        %v3430 = vadd.f32 %v3346, %v3347
        %v3431 = vrot.slane %v3430, 4
        %v3432 = vadd.f32 %v3430, %v3431
        %v3433 = vrot.slane %v3432, 2
        %v3434 = vadd.f32 %v3432, %v3433
        %v3435 = vrot.slane %v3434, 1
        %v3436 = vadd.f32 %v3434, %v3435
        %v3437 = vadd.f32 %v3348, %v3349
        %v3438 = vrot.slane %v3437, 4
        %v3439 = vadd.f32 %v3437, %v3438
        %v3440 = vrot.slane %v3439, 2
        %v3441 = vadd.f32 %v3439, %v3440
        %v3442 = vrot.slane %v3441, 1
        %v3443 = vadd.f32 %v3441, %v3442
        %v3444 = vadd.f32 %v3350, %v3351
        %v3445 = vrot.slane %v3444, 4
        %v3446 = vadd.f32 %v3444, %v3445
        %v3447 = vrot.slane %v3446, 2
        %v3448 = vadd.f32 %v3446, %v3447
        %v3449 = vrot.slane %v3448, 1
        %v3450 = vadd.f32 %v3448, %v3449
        %v3451 = vadd.f32 %v3352, %v3353
        %v3452 = vrot.slane %v3451, 4
        %v3453 = vadd.f32 %v3451, %v3452
        %v3454 = vrot.slane %v3453, 2
        %v3455 = vadd.f32 %v3453, %v3454
        %v3456 = vrot.slane %v3455, 1
        %v3457 = vadd.f32 %v3455, %v3456
        %v3458 = vadd.f32 %v3354, %v3355
        %v3459 = vrot.slane %v3458, 4
        %v3460 = vadd.f32 %v3458, %v3459
        %v3461 = vrot.slane %v3460, 2
        %v3462 = vadd.f32 %v3460, %v3461
        %v3463 = vrot.slane %v3462, 1
        %v3464 = vadd.f32 %v3462, %v3463
        %v3465 = vadd.f32 %v3356, %v3357
        %v3466 = vrot.slane %v3465, 4
        %v3467 = vadd.f32 %v3465, %v3466
        %v3468 = vrot.slane %v3467, 2
        %v3469 = vadd.f32 %v3467, %v3468
        %v3470 = vrot.slane %v3469, 1
        %v3471 = vadd.f32 %v3469, %v3470
        %v3472 = vadd.f32 %v3358, %v3359
        %v3473 = vrot.slane %v3472, 4
        %v3474 = vadd.f32 %v3472, %v3473
        %v3475 = vrot.slane %v3474, 2
        %v3476 = vadd.f32 %v3474, %v3475
        %v3477 = vrot.slane %v3476, 1
        %v3478 = vadd.f32 %v3476, %v3477
        %v3479 = vadd.f32 %v3360, %v3361
        %v3480 = vrot.slane %v3479, 4
        %v3481 = vadd.f32 %v3479, %v3480
        %v3482 = vrot.slane %v3481, 2
        %v3483 = vadd.f32 %v3481, %v3482
        %v3484 = vrot.slane %v3483, 1
        %v3485 = vadd.f32 %v3483, %v3484
        %v3486 = vadd.f32 %v3362, %v3363
        %v3487 = vrot.slane %v3486, 4
        %v3488 = vadd.f32 %v3486, %v3487
        %v3489 = vrot.slane %v3488, 2
        %v3490 = vadd.f32 %v3488, %v3489
        %v3491 = vrot.slane %v3490, 1
        %v3492 = vadd.f32 %v3490, %v3491
        %v3493 = vadd.f32 %v3364, %v3365
        %v3494 = vrot.slane %v3493, 4
        %v3495 = vadd.f32 %v3493, %v3494
        %v3496 = vrot.slane %v3495, 2
        %v3497 = vadd.f32 %v3495, %v3496
        %v3498 = vrot.slane %v3497, 1
        %v3499 = vadd.f32 %v3497, %v3498
        %v3500 = vadd.f32 %v3366, %v3367
        %v3501 = vrot.slane %v3500, 4
        %v3502 = vadd.f32 %v3500, %v3501
        %v3503 = vrot.slane %v3502, 2
        %v3504 = vadd.f32 %v3502, %v3503
        %v3505 = vrot.slane %v3504, 1
        %v3506 = vadd.f32 %v3504, %v3505
        %v3507 = vadd.f32 %v3368, %v3369
        %v3508 = vrot.slane %v3507, 4
        %v3509 = vadd.f32 %v3507, %v3508
        %v3510 = vrot.slane %v3509, 2
        %v3511 = vadd.f32 %v3509, %v3510
        %v3512 = vrot.slane %v3511, 1
        %v3513 = vadd.f32 %v3511, %v3512
        %v3514 = vadd.f32 %v3370, %v3371
        %v3515 = vrot.slane %v3514, 4
        %v3516 = vadd.f32 %v3514, %v3515
        %v3517 = vrot.slane %v3516, 2
        %v3518 = vadd.f32 %v3516, %v3517
        %v3519 = vrot.slane %v3518, 1
        %v3520 = vadd.f32 %v3518, %v3519
        %v3521 = vadd.f32 %v3372, %v3373
        %v3522 = vrot.slane %v3521, 4
        %v3523 = vadd.f32 %v3521, %v3522
        %v3524 = vrot.slane %v3523, 2
        %v3525 = vadd.f32 %v3523, %v3524
        %v3526 = vrot.slane %v3525, 1
        %v3527 = vadd.f32 %v3525, %v3526
        %v3528 = vadd.f32 %v3374, %v3375
        %v3529 = vrot.slane %v3528, 4
        %v3530 = vadd.f32 %v3528, %v3529
        %v3531 = vrot.slane %v3530, 2
        %v3532 = vadd.f32 %v3530, %v3531
        %v3533 = vrot.slane %v3532, 1
        %v3534 = vadd.f32 %v3532, %v3533
        %v3535 = vadd.f32 %v3376, %v3377
        %v3536 = vrot.slane %v3535, 4
        %v3537 = vadd.f32 %v3535, %v3536
        %v3538 = vrot.slane %v3537, 2
        %v3539 = vadd.f32 %v3537, %v3538
        %v3540 = vrot.slane %v3539, 1
        %v3541 = vadd.f32 %v3539, %v3540
        %v3542 = vadd.f32 %v3378, %v3379
        %v3543 = vrot.slane %v3542, 4
        %v3544 = vadd.f32 %v3542, %v3543
        %v3545 = vrot.slane %v3544, 2
        %v3546 = vadd.f32 %v3544, %v3545
        %v3547 = vrot.slane %v3546, 1
        %v3548 = vadd.f32 %v3546, %v3547
        %v3549 = vadd.f32 %v3380, %v3381
        %v3550 = vrot.slane %v3549, 4
        %v3551 = vadd.f32 %v3549, %v3550
        %v3552 = vrot.slane %v3551, 2
        %v3553 = vadd.f32 %v3551, %v3552
        %v3554 = vrot.slane %v3553, 1
        %v3555 = vadd.f32 %v3553, %v3554
        %v3556 = vadd.f32 %v3382, %v3383
        %v3557 = vrot.slane %v3556, 4
        %v3558 = vadd.f32 %v3556, %v3557
        %v3559 = vrot.slane %v3558, 2
        %v3560 = vadd.f32 %v3558, %v3559
        %v3561 = vrot.slane %v3560, 1
        %v3562 = vadd.f32 %v3560, %v3561
        %v3563 = vadd.f32 %v3384, %v3385
        %v3564 = vrot.slane %v3563, 4
        %v3565 = vadd.f32 %v3563, %v3564
        %v3566 = vrot.slane %v3565, 2
        %v3567 = vadd.f32 %v3565, %v3566
        %v3568 = vrot.slane %v3567, 1
        %v3569 = vadd.f32 %v3567, %v3568
        %v3570 = vadd.f32 %v3386, %v3387
        %v3571 = vrot.slane %v3570, 4
        %v3572 = vadd.f32 %v3570, %v3571
        %v3573 = vrot.slane %v3572, 2
        %v3574 = vadd.f32 %v3572, %v3573
        %v3575 = vrot.slane %v3574, 1
        %v3576 = vadd.f32 %v3574, %v3575
        %v3577 = vadd.f32 %v3388, %v3389
        %v3578 = vrot.slane %v3577, 4
        %v3579 = vadd.f32 %v3577, %v3578
        %v3580 = vrot.slane %v3579, 2
        %v3581 = vadd.f32 %v3579, %v3580
        %v3582 = vrot.slane %v3581, 1
        %v3583 = vadd.f32 %v3581, %v3582
        %v3584 = vadd.f32 %v3390, %v3391
        %v3585 = vrot.slane %v3584, 4
        %v3586 = vadd.f32 %v3584, %v3585
        %v3587 = vrot.slane %v3586, 2
        %v3588 = vadd.f32 %v3586, %v3587
        %v3589 = vrot.slane %v3588, 1
        %v3590 = vadd.f32 %v3588, %v3589
        %v3591 = vadd.f32 %v3392, %v3393
        %v3592 = vrot.slane %v3591, 4
        %v3593 = vadd.f32 %v3591, %v3592
        %v3594 = vrot.slane %v3593, 2
        %v3595 = vadd.f32 %v3593, %v3594
        %v3596 = vrot.slane %v3595, 1
        %v3597 = vadd.f32 %v3595, %v3596
        %v3598 = vadd.f32 %v3394, %v3395
        %v3599 = vrot.slane %v3598, 4
        %v3600 = vadd.f32 %v3598, %v3599
        %v3601 = vrot.slane %v3600, 2
        %v3602 = vadd.f32 %v3600, %v3601
        %v3603 = vrot.slane %v3602, 1
        %v3604 = vadd.f32 %v3602, %v3603
        %v3605 = vadd.f32 %v3396, %v3397
        %v3606 = vrot.slane %v3605, 4
        %v3607 = vadd.f32 %v3605, %v3606
        %v3608 = vrot.slane %v3607, 2
        %v3609 = vadd.f32 %v3607, %v3608
        %v3610 = vrot.slane %v3609, 1
        %v3611 = vadd.f32 %v3609, %v3610
        %v3612 = vadd.f32 %v3398, %v3399
        %v3613 = vrot.slane %v3612, 4
        %v3614 = vadd.f32 %v3612, %v3613
        %v3615 = vrot.slane %v3614, 2
        %v3616 = vadd.f32 %v3614, %v3615
        %v3617 = vrot.slane %v3616, 1
        %v3618 = vadd.f32 %v3616, %v3617
        %v3619 = vadd.f32 %v3400, %v3401
        %v3620 = vrot.slane %v3619, 4
        %v3621 = vadd.f32 %v3619, %v3620
        %v3622 = vrot.slane %v3621, 2
        %v3623 = vadd.f32 %v3621, %v3622
        %v3624 = vrot.slane %v3623, 1
        %v3625 = vadd.f32 %v3623, %v3624
        %v3626 = vmul.f32 %v3408, %v943
        %v3627 = vmul.f32 %v3408, %v945
        %v3628 = vmul.f32 %v3415, %v948
        %v3629 = vmul.f32 %v3415, %v950
        %v3630 = vmul.f32 %v3422, %v953
        %v3631 = vmul.f32 %v3422, %v955
        %v3632 = vmul.f32 %v3429, %v958
        %v3633 = vmul.f32 %v3429, %v960
        %v3634 = vmul.f32 %v3436, %v963
        %v3635 = vmul.f32 %v3436, %v965
        %v3636 = vmul.f32 %v3443, %v968
        %v3637 = vmul.f32 %v3443, %v970
        %v3638 = vmul.f32 %v3450, %v973
        %v3639 = vmul.f32 %v3450, %v975
        %v3640 = vmul.f32 %v3457, %v978
        %v3641 = vmul.f32 %v3457, %v980
        %v3642 = vmul.f32 %v3464, %v983
        %v3643 = vmul.f32 %v3464, %v985
        %v3644 = vmul.f32 %v3471, %v988
        %v3645 = vmul.f32 %v3471, %v990
        %v3646 = vmul.f32 %v3478, %v993
        %v3647 = vmul.f32 %v3478, %v995
        %v3648 = vmul.f32 %v3485, %v998
        %v3649 = vmul.f32 %v3485, %v1000
        %v3650 = vmul.f32 %v3492, %v1003
        %v3651 = vmul.f32 %v3492, %v1005
        %v3652 = vmul.f32 %v3499, %v1008
        %v3653 = vmul.f32 %v3499, %v1010
        %v3654 = vmul.f32 %v3506, %v1013
        %v3655 = vmul.f32 %v3506, %v1015
        %v3656 = vmul.f32 %v3513, %v1018
        %v3657 = vmul.f32 %v3513, %v1020
        %v3658 = vmul.f32 %v3520, %v1023
        %v3659 = vmul.f32 %v3520, %v1025
        %v3660 = vmul.f32 %v3527, %v1028
        %v3661 = vmul.f32 %v3527, %v1030
        %v3662 = vmul.f32 %v3534, %v1033
        %v3663 = vmul.f32 %v3534, %v1035
        %v3664 = vmul.f32 %v3541, %v1038
        %v3665 = vmul.f32 %v3541, %v1040
        %v3666 = vmul.f32 %v3548, %v1043
        %v3667 = vmul.f32 %v3548, %v1045
        %v3668 = vmul.f32 %v3555, %v1048
        %v3669 = vmul.f32 %v3555, %v1050
        %v3670 = vmul.f32 %v3562, %v1053
        %v3671 = vmul.f32 %v3562, %v1055
        %v3672 = vmul.f32 %v3569, %v1058
        %v3673 = vmul.f32 %v3569, %v1060
        %v3674 = vmul.f32 %v3576, %v1063
        %v3675 = vmul.f32 %v3576, %v1065
        %v3676 = vmul.f32 %v3583, %v1068
        %v3677 = vmul.f32 %v3583, %v1070
        %v3678 = vmul.f32 %v3590, %v1073
        %v3679 = vmul.f32 %v3590, %v1075
        %v3680 = vmul.f32 %v3597, %v1078
        %v3681 = vmul.f32 %v3597, %v1080
        %v3682 = vmul.f32 %v3604, %v1083
        %v3683 = vmul.f32 %v3604, %v1085
        %v3684 = vmul.f32 %v3611, %v1088
        %v3685 = vmul.f32 %v3611, %v1090
        %v3686 = vmul.f32 %v3618, %v1093
        %v3687 = vmul.f32 %v3618, %v1095
        %v3688 = vmul.f32 %v3625, %v1098
        %v3689 = vmul.f32 %v3625, %v1100
        %v3690 = vpack.c.bf16 %v3627, %v3626
        %v3691 = vpack.c.bf16 %v3629, %v3628
        %v3692 = vpack.c.bf16 %v3631, %v3630
        %v3693 = vpack.c.bf16 %v3633, %v3632
        %v3694 = vpack.c.bf16 %v3635, %v3634
        %v3695 = vpack.c.bf16 %v3637, %v3636
        %v3696 = vpack.c.bf16 %v3639, %v3638
        %v3697 = vpack.c.bf16 %v3641, %v3640
        %v3698 = vpack.c.bf16 %v3643, %v3642
        %v3699 = vpack.c.bf16 %v3645, %v3644
        %v3700 = vpack.c.bf16 %v3647, %v3646
        %v3701 = vpack.c.bf16 %v3649, %v3648
        %v3702 = vpack.c.bf16 %v3651, %v3650
        %v3703 = vpack.c.bf16 %v3653, %v3652
        %v3704 = vpack.c.bf16 %v3655, %v3654
        %v3705 = vpack.c.bf16 %v3657, %v3656
        %v3706 = vpack.c.bf16 %v3659, %v3658
        %v3707 = vpack.c.bf16 %v3661, %v3660
        %v3708 = vpack.c.bf16 %v3663, %v3662
        %v3709 = vpack.c.bf16 %v3665, %v3664
        %v3710 = vpack.c.bf16 %v3667, %v3666
        %v3711 = vpack.c.bf16 %v3669, %v3668
        %v3712 = vpack.c.bf16 %v3671, %v3670
        %v3713 = vpack.c.bf16 %v3673, %v3672
        %v3714 = vpack.c.bf16 %v3675, %v3674
        %v3715 = vpack.c.bf16 %v3677, %v3676
        %v3716 = vpack.c.bf16 %v3679, %v3678
        %v3717 = vpack.c.bf16 %v3681, %v3680
        %v3718 = vpack.c.bf16 %v3683, %v3682
        %v3719 = vpack.c.bf16 %v3685, %v3684
        %v3720 = vpack.c.bf16 %v3687, %v3686
        %v3721 = vpack.c.bf16 %v3689, %v3688
        %v3722 = vld [vmem:[%s4] sm:$0xf]
        %v3723 = vld [vmem:[%s4 + $0x4] sm:$0xf]
        %v3724 = vld [vmem:[%s4 + $0x8] sm:$0xf]
        %v3725 = vld [vmem:[%s4 + $0xc] sm:$0xf]
        %v3726 = vld [vmem:[%s4 + $0x10] sm:$0xf]
        %v3727 = vld [vmem:[%s4 + $0x14] sm:$0xf]
        %v3728 = vld [vmem:[%s4 + $0x18] sm:$0xf]
        %v3729 = vld [vmem:[%s4 + $0x1c] sm:$0xf]
        %v3730 = vld [vmem:[%s4 + $0x20] sm:$0xf]
        %v3731 = vld [vmem:[%s4 + $0x24] sm:$0xf]
        %v3732 = vld [vmem:[%s4 + $0x28] sm:$0xf]
        %v3733 = vld [vmem:[%s4 + $0x2c] sm:$0xf]
        %v3734 = vld [vmem:[%s4 + $0x30] sm:$0xf]
        %v3735 = vld [vmem:[%s4 + $0x34] sm:$0xf]
        %v3736 = vld [vmem:[%s4 + $0x38] sm:$0xf]
        %v3737 = vld [vmem:[%s4 + $0x3c] sm:$0xf]
        %v3754 = vunpack.c.l.b16 %v3722
        %v3755 = vunpack.c.l.b16 %v3723
        %v3756 = vunpack.c.l.b16 %v3724
        %v3757 = vunpack.c.l.b16 %v3725
        %v3758 = vunpack.c.l.b16 %v3726
        %v3759 = vunpack.c.l.b16 %v3727
        %v3760 = vunpack.c.l.b16 %v3728
        %v3761 = vunpack.c.l.b16 %v3729
        %v3762 = vunpack.c.l.b16 %v3730
        %v3763 = vunpack.c.l.b16 %v3731
        %v3764 = vunpack.c.l.b16 %v3732
        %v3765 = vunpack.c.l.b16 %v3733
        %v3766 = vunpack.c.l.b16 %v3734
        %v3767 = vunpack.c.l.b16 %v3735
        %v3768 = vunpack.c.l.b16 %v3736
        %v3769 = vunpack.c.l.b16 %v3737
        %v3770 = vpack.c.b16 %v3755, %v3754
        %v3771 = vpack.c.b16 %v3757, %v3756
        %v3772 = vpack.c.b16 %v3759, %v3758
        %v3773 = vpack.c.b16 %v3761, %v3760
        %v3774 = vpack.c.b16 %v3763, %v3762
        %v3775 = vpack.c.b16 %v3765, %v3764
        %v3776 = vpack.c.b16 %v3767, %v3766
        %v3777 = vpack.c.b16 %v3769, %v3768
        %3786 = vmatpush.bf16.msra.mxu0 %v3777
        %3787 = vmatpush.bf16.msra.mxu0 %v3776
        %3788 = vmatpush.bf16.msra.mxu0 %v3775
        %3789 = vmatpush.bf16.msra.mxu0 %v3774
        %3790 = vmatpush.bf16.msra.mxu0 %v3773
        %3791 = vmatpush.bf16.msra.mxu0 %v3772
        %3792 = vmatpush.bf16.msra.mxu0 %v3771
        %3793 = vmatpush.bf16.msra.mxu0 %v3770
        %3794 = vmatmul.bf16.gmra.mxu0 %v3690
        %v3795 = vpop.f32.mrf.mxu0
        %v3796 = vadd.f32 %v477, %v3795
        %v3797 = vpop.f32.mrf.mxu0
        %v3798 = vadd.f32 %v479, %v3797
        %3799 = vmatmul.bf16.gmra.mxu0 %v3691
        %v3800 = vpop.f32.mrf.mxu0
        %v3801 = vadd.f32 %v482, %v3800
        %v3802 = vpop.f32.mrf.mxu0
        %v3803 = vadd.f32 %v484, %v3802
        %3804 = vmatmul.bf16.gmra.mxu0 %v3692
        %v3805 = vpop.f32.mrf.mxu0
        %v3806 = vadd.f32 %v487, %v3805
        %v3807 = vpop.f32.mrf.mxu0
        %v3808 = vadd.f32 %v489, %v3807
        %3809 = vmatmul.bf16.gmra.mxu0 %v3693
        %v3810 = vpop.f32.mrf.mxu0
        %v3811 = vadd.f32 %v492, %v3810
        %v3812 = vpop.f32.mrf.mxu0
        %v3813 = vadd.f32 %v494, %v3812
        %3814 = vmatmul.bf16.gmra.mxu0 %v3694
        %v3815 = vpop.f32.mrf.mxu0
        %v3816 = vadd.f32 %v497, %v3815
        %v3817 = vpop.f32.mrf.mxu0
        %v3818 = vadd.f32 %v499, %v3817
        %3819 = vmatmul.bf16.gmra.mxu0 %v3695
        %v3820 = vpop.f32.mrf.mxu0
        %v3821 = vadd.f32 %v502, %v3820
        %v3822 = vpop.f32.mrf.mxu0
        %v3823 = vadd.f32 %v504, %v3822
        %3824 = vmatmul.bf16.gmra.mxu0 %v3696
        %v3825 = vpop.f32.mrf.mxu0
        %v3826 = vadd.f32 %v507, %v3825
        %v3827 = vpop.f32.mrf.mxu0
        %v3828 = vadd.f32 %v509, %v3827
        %3829 = vmatmul.bf16.gmra.mxu0 %v3697
        %v3830 = vpop.f32.mrf.mxu0
        %v3831 = vadd.f32 %v512, %v3830
        %v3832 = vpop.f32.mrf.mxu0
        %v3833 = vadd.f32 %v514, %v3832
        %3834 = vmatmul.bf16.gmra.mxu0 %v3698
        %v3835 = vpop.f32.mrf.mxu0
        %v3836 = vadd.f32 %v517, %v3835
        %v3837 = vpop.f32.mrf.mxu0
        %v3838 = vadd.f32 %v519, %v3837
        %3839 = vmatmul.bf16.gmra.mxu0 %v3699
        %v3840 = vpop.f32.mrf.mxu0
        %v3841 = vadd.f32 %v522, %v3840
        %v3842 = vpop.f32.mrf.mxu0
        %v3843 = vadd.f32 %v524, %v3842
        %3844 = vmatmul.bf16.gmra.mxu0 %v3700
        %v3845 = vpop.f32.mrf.mxu0
        %v3846 = vadd.f32 %v527, %v3845
        %v3847 = vpop.f32.mrf.mxu0
        %v3848 = vadd.f32 %v529, %v3847
        %3849 = vmatmul.bf16.gmra.mxu0 %v3701
        %v3850 = vpop.f32.mrf.mxu0
        %v3851 = vadd.f32 %v532, %v3850
        %v3852 = vpop.f32.mrf.mxu0
        %v3853 = vadd.f32 %v534, %v3852
        %3854 = vmatmul.bf16.gmra.mxu0 %v3702
        %v3855 = vpop.f32.mrf.mxu0
        %v3856 = vadd.f32 %v537, %v3855
        %v3857 = vpop.f32.mrf.mxu0
        %v3858 = vadd.f32 %v539, %v3857
        %3859 = vmatmul.bf16.gmra.mxu0 %v3703
        %v3860 = vpop.f32.mrf.mxu0
        %v3861 = vadd.f32 %v542, %v3860
        %v3862 = vpop.f32.mrf.mxu0
        %v3863 = vadd.f32 %v544, %v3862
        %3864 = vmatmul.bf16.gmra.mxu0 %v3704
        %v3865 = vpop.f32.mrf.mxu0
        %v3866 = vadd.f32 %v547, %v3865
        %v3867 = vpop.f32.mrf.mxu0
        %v3868 = vadd.f32 %v549, %v3867
        %3869 = vmatmul.bf16.gmra.mxu0 %v3705
        %v3870 = vpop.f32.mrf.mxu0
        %v3871 = vadd.f32 %v552, %v3870
        %v3872 = vpop.f32.mrf.mxu0
        %v3873 = vadd.f32 %v554, %v3872
        %3874 = vmatmul.bf16.gmra.mxu0 %v3706
        %v3875 = vpop.f32.mrf.mxu0
        %v3876 = vadd.f32 %v557, %v3875
        %v3877 = vpop.f32.mrf.mxu0
        %v3878 = vadd.f32 %v559, %v3877
        %3879 = vmatmul.bf16.gmra.mxu0 %v3707
        %v3880 = vpop.f32.mrf.mxu0
        %v3881 = vadd.f32 %v562, %v3880
        %v3882 = vpop.f32.mrf.mxu0
        %v3883 = vadd.f32 %v564, %v3882
        %3884 = vmatmul.bf16.gmra.mxu0 %v3708
        %v3885 = vpop.f32.mrf.mxu0
        %v3886 = vadd.f32 %v567, %v3885
        %v3887 = vpop.f32.mrf.mxu0
        %v3888 = vadd.f32 %v569, %v3887
        %3889 = vmatmul.bf16.gmra.mxu0 %v3709
        %v3890 = vpop.f32.mrf.mxu0
        %v3891 = vadd.f32 %v572, %v3890
        %v3892 = vpop.f32.mrf.mxu0
        %v3893 = vadd.f32 %v574, %v3892
        %3894 = vmatmul.bf16.gmra.mxu0 %v3710
        %v3895 = vpop.f32.mrf.mxu0
        %v3896 = vadd.f32 %v577, %v3895
        %v3897 = vpop.f32.mrf.mxu0
        %v3898 = vadd.f32 %v579, %v3897
        %3899 = vmatmul.bf16.gmra.mxu0 %v3711
        %v3900 = vpop.f32.mrf.mxu0
        %v3901 = vadd.f32 %v582, %v3900
        %v3902 = vpop.f32.mrf.mxu0
        %v3903 = vadd.f32 %v584, %v3902
        %3904 = vmatmul.bf16.gmra.mxu0 %v3712
        %v3905 = vpop.f32.mrf.mxu0
        %v3906 = vadd.f32 %v587, %v3905
        %v3907 = vpop.f32.mrf.mxu0
        %v3908 = vadd.f32 %v589, %v3907
        %3909 = vmatmul.bf16.gmra.mxu0 %v3713
        %v3910 = vpop.f32.mrf.mxu0
        %v3911 = vadd.f32 %v592, %v3910
        %v3912 = vpop.f32.mrf.mxu0
        %v3913 = vadd.f32 %v594, %v3912
        %3914 = vmatmul.bf16.gmra.mxu0 %v3714
        %v3915 = vpop.f32.mrf.mxu0
        %v3916 = vadd.f32 %v597, %v3915
        %v3917 = vpop.f32.mrf.mxu0
        %v3918 = vadd.f32 %v599, %v3917
        %3919 = vmatmul.bf16.gmra.mxu0 %v3715
        %v3920 = vpop.f32.mrf.mxu0
        %v3921 = vadd.f32 %v602, %v3920
        %v3922 = vpop.f32.mrf.mxu0
        %v3923 = vadd.f32 %v604, %v3922
        %3924 = vmatmul.bf16.gmra.mxu0 %v3716
        %v3925 = vpop.f32.mrf.mxu0
        %v3926 = vadd.f32 %v607, %v3925
        %v3927 = vpop.f32.mrf.mxu0
        %v3928 = vadd.f32 %v609, %v3927
        %3929 = vmatmul.bf16.gmra.mxu0 %v3717
        %v3930 = vpop.f32.mrf.mxu0
        %v3931 = vadd.f32 %v612, %v3930
        %v3932 = vpop.f32.mrf.mxu0
        %v3933 = vadd.f32 %v614, %v3932
        %3934 = vmatmul.bf16.gmra.mxu0 %v3718
        %v3935 = vpop.f32.mrf.mxu0
        %v3936 = vadd.f32 %v617, %v3935
        %v3937 = vpop.f32.mrf.mxu0
        %v3938 = vadd.f32 %v619, %v3937
        %3939 = vmatmul.bf16.gmra.mxu0 %v3719
        %v3940 = vpop.f32.mrf.mxu0
        %v3941 = vadd.f32 %v622, %v3940
        %v3942 = vpop.f32.mrf.mxu0
        %v3943 = vadd.f32 %v624, %v3942
        %3944 = vmatmul.bf16.gmra.mxu0 %v3720
        %v3945 = vpop.f32.mrf.mxu0
        %v3946 = vadd.f32 %v627, %v3945
        %v3947 = vpop.f32.mrf.mxu0
        %v3948 = vadd.f32 %v629, %v3947
        %3949 = vmatmul.bf16.gmra.mxu0 %v3721
        %v3950 = vpop.f32.mrf.mxu0
        %v3951 = vadd.f32 %v632, %v3950
        %v3952 = vpop.f32.mrf.mxu0
        %v3953 = vadd.f32 %v634, %v3952
        %3954 = vdwg.mxu0
        %3955 = vst [vmem:[%s299] sm:$0xff] %v3796
        %3956 = vst [vmem:[%s299 + $0x8] sm:$0xff] %v3798
        %3957 = vst [vmem:[%s299 + $0x10] sm:$0xff] %v3801
        %3958 = vst [vmem:[%s299 + $0x18] sm:$0xff] %v3803
        %3959 = vst [vmem:[%s299 + $0x20] sm:$0xff] %v3806
        %3960 = vst [vmem:[%s299 + $0x28] sm:$0xff] %v3808
        %3961 = vst [vmem:[%s299 + $0x30] sm:$0xff] %v3811
        %3962 = vst [vmem:[%s299 + $0x38] sm:$0xff] %v3813
        %3963 = vst [vmem:[%s299 + $0x40] sm:$0xff] %v3816
        %3964 = vst [vmem:[%s299 + $0x48] sm:$0xff] %v3818
        %3965 = vst [vmem:[%s299 + $0x50] sm:$0xff] %v3821
        %3966 = vst [vmem:[%s299 + $0x58] sm:$0xff] %v3823
        %3967 = vst [vmem:[%s299 + $0x60] sm:$0xff] %v3826
        %3968 = vst [vmem:[%s299 + $0x68] sm:$0xff] %v3828
        %3969 = vst [vmem:[%s299 + $0x70] sm:$0xff] %v3831
        %3970 = vst [vmem:[%s299 + $0x78] sm:$0xff] %v3833
        %3971 = vst [vmem:[%s299 + $0x80] sm:$0xff] %v3836
        %3972 = vst [vmem:[%s299 + $0x88] sm:$0xff] %v3838
        %3973 = vst [vmem:[%s299 + $0x90] sm:$0xff] %v3841
        %3974 = vst [vmem:[%s299 + $0x98] sm:$0xff] %v3843
        %3975 = vst [vmem:[%s299 + $0xa0] sm:$0xff] %v3846
        %3976 = vst [vmem:[%s299 + $0xa8] sm:$0xff] %v3848
        %3977 = vst [vmem:[%s299 + $0xb0] sm:$0xff] %v3851
        %3978 = vst [vmem:[%s299 + $0xb8] sm:$0xff] %v3853
        %3979 = vst [vmem:[%s299 + $0xc0] sm:$0xff] %v3856
        %3980 = vst [vmem:[%s299 + $0xc8] sm:$0xff] %v3858
        %3981 = vst [vmem:[%s299 + $0xd0] sm:$0xff] %v3861
        %3982 = vst [vmem:[%s299 + $0xd8] sm:$0xff] %v3863
        %3983 = vst [vmem:[%s299 + $0xe0] sm:$0xff] %v3866
        %3984 = vst [vmem:[%s299 + $0xe8] sm:$0xff] %v3868
        %3985 = vst [vmem:[%s299 + $0xf0] sm:$0xff] %v3871
        %3986 = vst [vmem:[%s299 + $0xf8] sm:$0xff] %v3873
        %3987 = vst [vmem:[%s299 + $0x100] sm:$0xff] %v3876
        %3988 = vst [vmem:[%s299 + $0x108] sm:$0xff] %v3878
        %3989 = vst [vmem:[%s299 + $0x110] sm:$0xff] %v3881
        %3990 = vst [vmem:[%s299 + $0x118] sm:$0xff] %v3883
        %3991 = vst [vmem:[%s299 + $0x120] sm:$0xff] %v3886
        %3992 = vst [vmem:[%s299 + $0x128] sm:$0xff] %v3888
        %3993 = vst [vmem:[%s299 + $0x130] sm:$0xff] %v3891
        %3994 = vst [vmem:[%s299 + $0x138] sm:$0xff] %v3893
        %3995 = vst [vmem:[%s299 + $0x140] sm:$0xff] %v3896
        %3996 = vst [vmem:[%s299 + $0x148] sm:$0xff] %v3898
        %3997 = vst [vmem:[%s299 + $0x150] sm:$0xff] %v3901
        %3998 = vst [vmem:[%s299 + $0x158] sm:$0xff] %v3903
        %3999 = vst [vmem:[%s299 + $0x160] sm:$0xff] %v3906
        %4000 = vst [vmem:[%s299 + $0x168] sm:$0xff] %v3908
        %4001 = vst [vmem:[%s299 + $0x170] sm:$0xff] %v3911
        %4002 = vst [vmem:[%s299 + $0x178] sm:$0xff] %v3913
        %4003 = vst [vmem:[%s299 + $0x180] sm:$0xff] %v3916
        %4004 = vst [vmem:[%s299 + $0x188] sm:$0xff] %v3918
        %4005 = vst [vmem:[%s299 + $0x190] sm:$0xff] %v3921
        %4006 = vst [vmem:[%s299 + $0x198] sm:$0xff] %v3923
        %4007 = vst [vmem:[%s299 + $0x1a0] sm:$0xff] %v3926
        %4008 = vst [vmem:[%s299 + $0x1a8] sm:$0xff] %v3928
        %4009 = vst [vmem:[%s299 + $0x1b0] sm:$0xff] %v3931
        %4010 = vst [vmem:[%s299 + $0x1b8] sm:$0xff] %v3933
        %4011 = vst [vmem:[%s299 + $0x1c0] sm:$0xff] %v3936
        %4012 = vst [vmem:[%s299 + $0x1c8] sm:$0xff] %v3938
        %4013 = vst [vmem:[%s299 + $0x1d0] sm:$0xff] %v3941
        %4014 = vst [vmem:[%s299 + $0x1d8] sm:$0xff] %v3943
        %4015 = vst [vmem:[%s299 + $0x1e0] sm:$0xff] %v3946
        %4016 = vst [vmem:[%s299 + $0x1e8] sm:$0xff] %v3948
        %4017 = vst [vmem:[%s299 + $0x1f0] sm:$0xff] %v3951
        %4018 = vst [vmem:[%s299 + $0x1f8] sm:$0xff] %v3953
        %s4019 = sand.u32 %s203, 1
        %s4020 = scalar_lea.sflag [#allocation3], %s4019
        %s4021 = sand.u32 %s203, 1
        %s4022 = smul.addr %s4021, 512
        %s4023 = scalar_lea.vmem [#allocation2], %s4022
        // Predicated region
        $region53: #{lattention.1} parent=51 // pred_check
          %p4024 = pneg %p213
        $region54: #{lattention.1} parent=51 // pred_check_branch
          %4026 = sbr.rel (%p4024) target = $region56
        $region55: #{lattention.1} parent=51 // pred_region
          %s4027 = smul.u32 64, %s22
          %4029 = vsyncadd %s4020, 0
          %s4030 = smul.addr %s4027, 8
          %s4031 = scalar_lea.hbm %s8, %s4030
          %s4032 = sshll.u32 %s4023, 4
          %s4033 = int_to_ptr.vmem [resolvable:$true] %s4032
          %s4034 = sshll.u32 %s4031, 4
          %s4035 = int_to_ptr.hbm [resolvable:$true] %s4034
          %4040 = dma.vmem_to_hbm [thread:$0]  %s4033, 8192, %s4035, %s4020, 128, 128, 8
        $region56: #{lattention.1} parent=51 // pred_fallthru
          _
      $region52: #{lattention.1} parent=5 // pred_fallthru
        _
      %p4041 = scmp.le.s32.totalorder 2, %s17
      // Predicated region
      $region57: #{lattention.1} parent=5 // pred_check
        %p4042 = pneg %p4041
      $region58: #{lattention.1} parent=5 // pred_check_branch
        %4044 = sbr.rel (%p4042) target = $region60
      $region59: #{lattention.1} parent=5 // pred_region
        %s4045 = ssub.s32 %s17, 2
        // Predicated region
        $region61: #{lattention.1} parent=59 // pred_check
          %p4046 = pneg %p219
        $region62: #{lattention.1} parent=59 // pred_check_branch
          %4048 = sbr.rel (%p4046) target = $region64
        $region63: #{lattention.1} parent=59 // pred_region
          %s4049 = sand.u32 %s204, 1
          %s4050 = scalar_lea.sflag [#allocation3], %s4049
          %s4051 = sand.u32 %s204, 1
          %s4052 = smul.addr %s4051, 512
          %s4053 = scalar_lea.vmem [#allocation2], %s4052
          %4055 = dma.done %s4050, 8192
        $region64: #{lattention.1} parent=59 // pred_fallthru
          _
      $region60: #{lattention.1} parent=5 // pred_fallthru
        _
    $region6: #{lattention.1} parent=1 // loop_footer
      %s21 = sadd.s32 1, %s17
    $region7: #{lattention.1} parent=1 // loop_footer_branch
      %16 = sbr.rel target = $region3
    $region8: #{lattention.1} parent=1 // loop_exit
      _
    %4056 = vsyncpa [#allocation3], 1
    %s4057 = scalar_lea.sflag [#allocation3], 1
    %4058 = vsyncpa %s4057, 1

</llo_original>
